<compile_context>
chip_gen: v7x
topology: tpu7x:2x2x1
jax: 0.10.0
libtpu: 0.0.40
codegen_flags: <defaults>
</compile_context>

<pallas_src>
import functools

import numpy as np
import jax
import jax.numpy as jnp
from jax import lax
from jax.experimental import pallas as pl
from jax.experimental.pallas import tpu as pltpu

EPS = 1e-5


def _layer_body(slab, w_ref, gamma_ref, beta_ref, zmask_ref, src_ref, dmask_ref,
                cfg):
    """One Conv->BN(train)->ReLU->(MaxPool) layer on in-VMEM values.

    slab : (cin, 2*G + Mp) bf16 -- SAME-padded activations, flat (n, r, c)
           column order, G = Wp+1 zero guard columns each side.
    Returns (cout, out_w) f32: the NEXT layer's guarded padded slab (interior
    filled, padding/guards exactly zero) or, for the last layer, the dense
    (n, h, w) output.
    """
    N, H, W = cfg["N"], cfg["H"], cfg["W"]
    Hp, Wp = H + 2, W + 2
    Mp = N * Hp * Wp
    G = Wp + 1

    # --- conv: 9 lane-shifted taps -> 9 accumulating MXU dots (bf16 -> f32) ---
    z = None
    for dy in range(3):
        for dx in range(3):
            t = dy * 3 + dx
            off = G + (dy - 1) * Wp + (dx - 1)            # static, >= 0
            tap = slab[:, off:off + Mp]                   # (cin, Mp) bf16
            part = jnp.dot(w_ref[t], tap,                 # (cout,cin)@(cin,Mp)
                           preferred_element_type=jnp.float32)
            z = part if z is None else z + part           # (cout, Mp) f32

    # --- BatchNorm (training mode, biased variance) over interior columns ---
    zm = zmask_ref[...]                                   # (1, Mp) interior mask
    inv_cnt = 1.0 / float(N * H * W)
    mean = jnp.sum(z * zm, axis=1, keepdims=True) * inv_cnt        # (cout, 1)
    cen = (z - mean) * zm                                 # two-pass variance
    var = jnp.sum(cen * cen, axis=1, keepdims=True) * inv_cnt      # (cout, 1)
    scale = gamma_ref[...] * lax.rsqrt(var + EPS)
    shift = beta_ref[...] - mean * scale
    # Single fused BN-apply + ReLU pass (garbage at padding columns is never
    # selected downstream).
    y = jnp.maximum(z * scale + shift, 0.0)               # (cout, Mp) f32

    # --- optional 2x2/stride-2 max-pool: two lane-shifted pair-max passes ---
    if cfg["pool"]:
        hmax = jnp.maximum(y[:, :Mp - 1], y[:, 1:])               # horizontal
        y = jnp.maximum(hmax[:, :Mp - 1 - Wp], hmax[:, Wp:])      # + vertical
    rows = y.shape[1]

    # --- repack into the destination layout with a one-hot selection matmul:
    # out[:, d] = dmask[d] * y[:, src[d]].  Produces the next layer's guarded
    # padded slab (zeros at padding/guards) or the dense final output.
    row_iota = lax.broadcasted_iota(jnp.int32, (rows, cfg["out_w"]), 0)
    sel = (row_iota == src_ref[...]).astype(jnp.float32) * dmask_ref[...]
    return jnp.dot(y, sel, preferred_element_type=jnp.float32)


def _fused_block_kernel(*refs, cfgs):
    """Whole ConvBlock, fully fused.  refs = [x_slab, 6 refs per layer..., out]."""
    x_ref = refs[0]
    out_ref = refs[-1]
    layer_refs = refs[1:-1]
    slab = x_ref[...]                                     # (cin0, 2*G0+Mp0) bf16
    for l, cfg in enumerate(cfgs):
        w_ref, g_ref, b_ref, zm_ref, src_ref, dm_ref = layer_refs[6 * l:6 * l + 6]
        res = _layer_body(slab, w_ref, g_ref, b_ref, zm_ref, src_ref, dm_ref, cfg)
        if l + 1 < len(cfgs):
            slab = res.astype(jnp.bfloat16)               # next layer's slab
        else:
            out_ref[...] = res


def _layer_geometry(N, H, W, cin, pool, last):
    """Static shapes + tiny constant index vectors (numpy, trace time)."""
    Hp, Wp = H + 2, W + 2
    Mp = N * Hp * Wp
    Ho, Wo = (H // 2, W // 2) if pool else (H, W)
    if last:
        out_w = N * Ho * Wo                               # dense (n, h, w)
    else:
        Hp2, Wp2 = Ho + 2, Wo + 2
        out_w = 2 * (Wp2 + 1) + N * Hp2 * Wp2             # guarded padded slab

    # Interior mask over the conv (padded) grid -> exact BN batch statistics.
    zm = np.zeros((N, Hp, Wp), np.float32)
    zm[:, 1:1 + H, 1:1 + W] = 1.0
    zmask = zm.reshape(1, Mp)

    # One-hot repack tables: dest column d <- source column src[d] (dmask=1).
    n_i, r_i, c_i = np.meshgrid(np.arange(N), np.arange(Ho), np.arange(Wo),
                                indexing="ij")
    if pool:   # source = position of the 2x2 pair-maxed value
        p_idx = (n_i * Hp + 2 * r_i + 1) * Wp + (2 * c_i + 1)
    else:
        p_idx = (n_i * Hp + r_i + 1) * Wp + (c_i + 1)
    if last:
        d_idx = (n_i * Ho + r_i) * Wo + c_i
    else:
        Hp2, Wp2 = Ho + 2, Wo + 2
        d_idx = (Wp2 + 1) + (n_i * Hp2 + r_i + 1) * Wp2 + (c_i + 1)
    src = np.zeros((1, out_w), np.int32)
    dmask = np.zeros((1, out_w), np.float32)
    src[0, d_idx.ravel()] = p_idx.ravel().astype(np.int32)
    dmask[0, d_idx.ravel()] = 1.0

    rows = (Mp - 1 - Wp) if pool else Mp                  # rows of repack matmul
    assert int(p_idx.max()) < rows
    cfg = dict(N=N, H=H, W=W, cin=cin, pool=pool, out_w=out_w, Mp=Mp,
               rows=rows, Ho=Ho, Wo=Wo)
    return cfg, zmask, src, dmask


@functools.partial(jax.jit, static_argnames=("pool",))
def conv_block_forward(x_nchw, params, pool):
    """Forward of ConvBlock.  x_nchw: (N, C, H, W) f32, returns NCHW f32."""
    N, C0, H0, W0 = x_nchw.shape
    num_conv = len(params)
    cout = params[0][0].shape[-1]

    cfgs, consts = [], []
    H, W, cin = H0, W0, C0
    for l in range(num_conv):
        if pool:
            assert H % 2 == 0 and W % 2 == 0, "2x2 max-pool needs even H and W"
        cfg, zmask, src, dmask = _layer_geometry(N, H, W, cin, pool,
                                                 last=(l == num_conv - 1))
        cfgs.append(cfg)
        consts.append((zmask, src, dmask))
        H, W, cin = cfg["Ho"], cfg["Wo"], cout

    # Rough VMEM guard (per review): the fused block must fit one grid step.
    vmem_limit = 32 * 1024 * 1024                         # <= v7x-safe budget
    est = 0
    for cfg in cfgs:
        sel_bytes = 3 * 4 * cfg["rows"] * cfg["out_w"]    # iota + compare + sel
        act_bytes = 6 * 4 * cout * cfg["Mp"]              # z / y / temporaries
        est = max(est, sel_bytes + act_bytes)
    assert est < vmem_limit // 2, (
        f"fused ConvBlock layer needs ~{est} B VMEM; add an M/cout-tiled path")

    # Layer-0 guarded, SAME-padded, lane-dense slab (cheap XLA ops, 1x input).
    Hp0, Wp0 = H0 + 2, W0 + 2
    G0 = Wp0 + 1
    xs = jnp.transpose(x_nchw, (1, 0, 2, 3))              # (C, N, H, W)
    xs = jnp.pad(xs, ((0, 0), (0, 0), (1, 1), (1, 1)))
    xs = xs.reshape(C0, N * Hp0 * Wp0)
    xs = jnp.pad(xs, ((0, 0), (G0, G0))).astype(jnp.bfloat16)

    inputs = [xs]
    in_specs = [pl.BlockSpec(xs.shape, lambda i: (0, 0))]
    for l, (w, _b, gamma, beta) in enumerate(params):
        # Conv bias `_b` is intentionally not passed: training-mode BN subtracts
        # the batch mean, so the per-channel bias cancels exactly.
        cfg = cfgs[l]
        zmask, src, dmask = consts[l]
        wt = jnp.transpose(w, (0, 1, 3, 2)).reshape(9, cout, cfg["cin"])
        inputs += [wt.astype(jnp.bfloat16),
                   gamma.reshape(cout, 1).astype(jnp.float32),
                   beta.reshape(cout, 1).astype(jnp.float32),
                   jnp.asarray(zmask), jnp.asarray(src), jnp.asarray(dmask)]
        in_specs += [pl.BlockSpec((9, cout, cfg["cin"]), lambda i: (0, 0, 0)),
                     pl.BlockSpec((cout, 1), lambda i: (0, 0)),
                     pl.BlockSpec((cout, 1), lambda i: (0, 0)),
                     pl.BlockSpec((1, cfg["Mp"]), lambda i: (0, 0)),
                     pl.BlockSpec((1, cfg["out_w"]), lambda i: (0, 0)),
                     pl.BlockSpec((1, cfg["out_w"]), lambda i: (0, 0))]

    out_w_last = cfgs[-1]["out_w"]
    y = pl.pallas_call(
        functools.partial(_fused_block_kernel, cfgs=tuple(cfgs)),
        out_shape=jax.ShapeDtypeStruct((cout, out_w_last), jnp.float32),
        grid=(1,),
        in_specs=in_specs,
        out_specs=pl.BlockSpec((cout, out_w_last), lambda i: (0, 0)),
        compiler_params=pltpu.CompilerParams(
            dimension_semantics=("arbitrary",),
            vmem_limit_bytes=vmem_limit),
    )(*inputs)                                            # (cout, N*Hf*Wf)

    Hf, Wf = cfgs[-1]["Ho"], cfgs[-1]["Wo"]
    return y.reshape(cout, N, Hf, Wf).transpose(1, 0, 2, 3)   # -> NCHW


def init_params(key, in_features, out_features, num_conv):
    """Deterministic synthetic parameters (shapes follow ConvBlock.__init__)."""
    feats = [in_features] + [out_features] * num_conv
    params = []
    for i in range(num_conv):
        key, kw, kb, kg, kbt = jax.random.split(key, 5)
        cin, cout = feats[i], feats[i + 1]
        w = jax.random.normal(kw, (3, 3, cin, cout), jnp.float32) / np.sqrt(9 * cin)
        b = jax.random.normal(kb, (cout,), jnp.float32) * 0.1
        gamma = jax.random.uniform(kg, (cout,), jnp.float32, 0.5, 1.5)
        beta = jax.random.normal(kbt, (cout,), jnp.float32) * 0.1
        params.append((w, b, gamma, beta))
    return params


def ref_conv_block(x_nchw, params, pool):
    """Pure-JAX reference matching torch semantics (training-mode BN, with bias)."""
    x = x_nchw
    for (w, b, gamma, beta) in params:
        z = lax.conv_general_dilated(
            x, w, window_strides=(1, 1), padding="SAME",
            dimension_numbers=("NCHW", "HWIO", "NCHW"))
        z = z + b[None, :, None, None]
        mean = z.mean(axis=(0, 2, 3), keepdims=True)
        var = z.var(axis=(0, 2, 3), keepdims=True)        # biased, as torch BN
        z = (z - mean) * lax.rsqrt(var + EPS)
        z = z * gamma[None, :, None, None] + beta[None, :, None, None]
        z = jnp.maximum(z, 0.0)
        if pool:
            n, c, h, wd = z.shape
            z = z.reshape(n, c, h // 2, 2, wd // 2, 2).max(axis=(3, 5))
        x = z
    return x


if __name__ == "__main__":
    in_features, out_features, num_conv = 4, 8, 2

    key = jax.random.PRNGKey(0)
    key, kx = jax.random.split(key)
    x = jax.random.normal(kx, (2, in_features, 16, 16), jnp.float32)
    params = init_params(key, in_features, out_features, num_conv)

    for pool in (True, False):
        out = jax.block_until_ready(conv_block_forward(x, params, pool))
        ref = ref_conv_block(x, params, pool)
        assert out.shape == ref.shape, (pool, out.shape, ref.shape)
        np.testing.assert_allclose(np.asarray(out), np.asarray(ref),
                                   rtol=5e-2, atol=5e-2)
    print("KERNEL_OK")
</pallas_src>

<mosaic_0001>
module attributes {stable_mosaic.version = 11 : i64} {
  func.func @_fused_block_kernel(%arg0: i32, %arg1: memref<4x686xbf16, #tpu.memory_space<vmem>>, %arg2: memref<9x8x4xbf16, #tpu.memory_space<vmem>>, %arg3: memref<8x1xf32, #tpu.memory_space<vmem>>, %arg4: memref<8x1xf32, #tpu.memory_space<vmem>>, %arg5: memref<1x648xf32, #tpu.memory_space<vmem>>, %arg6: memref<1x222xi32, #tpu.memory_space<vmem>>, %arg7: memref<1x222xf32, #tpu.memory_space<vmem>>, %arg8: memref<9x8x8xbf16, #tpu.memory_space<vmem>>, %arg9: memref<8x1xf32, #tpu.memory_space<vmem>>, %arg10: memref<8x1xf32, #tpu.memory_space<vmem>>, %arg11: memref<1x200xf32, #tpu.memory_space<vmem>>, %arg12: memref<1x32xi32, #tpu.memory_space<vmem>>, %arg13: memref<1x32xf32, #tpu.memory_space<vmem>>, %arg14: memref<8x32xf32, #tpu.memory_space<vmem>>) attributes {dimension_semantics = [#tpu.dimension_semantics<arbitrary>], iteration_bounds = array<i64: 1>, scalar_prefetch = 0 : i64, scratch_operands = 0 : i64, tpu.core_type = #tpu.core_type<tc>, window_params = [{pipeline_mode = #tpu.pipeline_mode<synchronous>, transform_indices = @transform_0, window_bounds = array<i64: 4, 686>}, {pipeline_mode = #tpu.pipeline_mode<synchronous>, transform_indices = @transform_1, window_bounds = array<i64: 9, 8, 4>}, {pipeline_mode = #tpu.pipeline_mode<synchronous>, transform_indices = @transform_2, window_bounds = array<i64: 8, 1>}, {pipeline_mode = #tpu.pipeline_mode<synchronous>, transform_indices = @transform_3, window_bounds = array<i64: 8, 1>}, {pipeline_mode = #tpu.pipeline_mode<synchronous>, transform_indices = @transform_4, window_bounds = array<i64: 1, 648>}, {pipeline_mode = #tpu.pipeline_mode<synchronous>, transform_indices = @transform_5, window_bounds = array<i64: 1, 222>}, {pipeline_mode = #tpu.pipeline_mode<synchronous>, transform_indices = @transform_6, window_bounds = array<i64: 1, 222>}, {pipeline_mode = #tpu.pipeline_mode<synchronous>, transform_indices = @transform_7, window_bounds = array<i64: 9, 8, 8>}, {pipeline_mode = #tpu.pipeline_mode<synchronous>, transform_indices = @transform_8, window_bounds = array<i64: 8, 1>}, {pipeline_mode = #tpu.pipeline_mode<synchronous>, transform_indices = @transform_9, window_bounds = array<i64: 8, 1>}, {pipeline_mode = #tpu.pipeline_mode<synchronous>, transform_indices = @transform_10, window_bounds = array<i64: 1, 200>}, {pipeline_mode = #tpu.pipeline_mode<synchronous>, transform_indices = @transform_11, window_bounds = array<i64: 1, 32>}, {pipeline_mode = #tpu.pipeline_mode<synchronous>, transform_indices = @transform_12, window_bounds = array<i64: 1, 32>}, {pipeline_mode = #tpu.pipeline_mode<synchronous>, transform_indices = @transform_13, window_bounds = array<i64: 8, 32>}]} {
    %c0 = arith.constant 0 : index
    %c0_0 = arith.constant 0 : index
    %0 = vector.load %arg1[%c0, %c0_0] : memref<4x686xbf16, #tpu.memory_space<vmem>>, vector<4x686xbf16>
    %1 = vector.extract_strided_slice %0 {offsets = [0, 0], sizes = [4, 648], strides = [1, 1]} : vector<4x686xbf16> to vector<4x648xbf16>
    %c0_1 = arith.constant 0 : index
    %c0_2 = arith.constant 0 : index
    %c0_3 = arith.constant 0 : index
    %2 = vector.load %arg2[%c0_1, %c0_2, %c0_3] : memref<9x8x4xbf16, #tpu.memory_space<vmem>>, vector<1x8x4xbf16>
    %3 = vector.shape_cast %2 : vector<1x8x4xbf16> to vector<8x4xbf16>
    %cst = arith.constant dense<0.000000e+00> : vector<8x648xf32>
    %4 = tpu.matmul %3, %1, %cst {dimension_numbers = #tpu.dot_dimension_numbers<[1], [0], [0], [1], [0, 0, 1, 1], [], []>} : vector<8x4xbf16>, vector<4x648xbf16>, vector<8x648xf32> -> vector<8x648xf32>
    %5 = vector.extract_strided_slice %0 {offsets = [0, 1], sizes = [4, 648], strides = [1, 1]} : vector<4x686xbf16> to vector<4x648xbf16>
    %c1 = arith.constant 1 : index
    %c0_4 = arith.constant 0 : index
    %c0_5 = arith.constant 0 : index
    %6 = vector.load %arg2[%c1, %c0_4, %c0_5] : memref<9x8x4xbf16, #tpu.memory_space<vmem>>, vector<1x8x4xbf16>
    %7 = vector.shape_cast %6 : vector<1x8x4xbf16> to vector<8x4xbf16>
    %cst_6 = arith.constant dense<0.000000e+00> : vector<8x648xf32>
    %8 = tpu.matmul %7, %5, %cst_6 {dimension_numbers = #tpu.dot_dimension_numbers<[1], [0], [0], [1], [0, 0, 1, 1], [], []>} : vector<8x4xbf16>, vector<4x648xbf16>, vector<8x648xf32> -> vector<8x648xf32>
    %9 = arith.addf %4, %8 : vector<8x648xf32>
    %10 = vector.extract_strided_slice %0 {offsets = [0, 2], sizes = [4, 648], strides = [1, 1]} : vector<4x686xbf16> to vector<4x648xbf16>
    %c2 = arith.constant 2 : index
    %c0_7 = arith.constant 0 : index
    %c0_8 = arith.constant 0 : index
    %11 = vector.load %arg2[%c2, %c0_7, %c0_8] : memref<9x8x4xbf16, #tpu.memory_space<vmem>>, vector<1x8x4xbf16>
    %12 = vector.shape_cast %11 : vector<1x8x4xbf16> to vector<8x4xbf16>
    %cst_9 = arith.constant dense<0.000000e+00> : vector<8x648xf32>
    %13 = tpu.matmul %12, %10, %cst_9 {dimension_numbers = #tpu.dot_dimension_numbers<[1], [0], [0], [1], [0, 0, 1, 1], [], []>} : vector<8x4xbf16>, vector<4x648xbf16>, vector<8x648xf32> -> vector<8x648xf32>
    %14 = arith.addf %9, %13 : vector<8x648xf32>
    %15 = vector.extract_strided_slice %0 {offsets = [0, 18], sizes = [4, 648], strides = [1, 1]} : vector<4x686xbf16> to vector<4x648xbf16>
    %c3 = arith.constant 3 : index
    %c0_10 = arith.constant 0 : index
    %c0_11 = arith.constant 0 : index
    %16 = vector.load %arg2[%c3, %c0_10, %c0_11] : memref<9x8x4xbf16, #tpu.memory_space<vmem>>, vector<1x8x4xbf16>
    %17 = vector.shape_cast %16 : vector<1x8x4xbf16> to vector<8x4xbf16>
    %cst_12 = arith.constant dense<0.000000e+00> : vector<8x648xf32>
    %18 = tpu.matmul %17, %15, %cst_12 {dimension_numbers = #tpu.dot_dimension_numbers<[1], [0], [0], [1], [0, 0, 1, 1], [], []>} : vector<8x4xbf16>, vector<4x648xbf16>, vector<8x648xf32> -> vector<8x648xf32>
    %19 = arith.addf %14, %18 : vector<8x648xf32>
    %20 = vector.extract_strided_slice %0 {offsets = [0, 19], sizes = [4, 648], strides = [1, 1]} : vector<4x686xbf16> to vector<4x648xbf16>
    %c4 = arith.constant 4 : index
    %c0_13 = arith.constant 0 : index
    %c0_14 = arith.constant 0 : index
    %21 = vector.load %arg2[%c4, %c0_13, %c0_14] : memref<9x8x4xbf16, #tpu.memory_space<vmem>>, vector<1x8x4xbf16>
    %22 = vector.shape_cast %21 : vector<1x8x4xbf16> to vector<8x4xbf16>
    %cst_15 = arith.constant dense<0.000000e+00> : vector<8x648xf32>
    %23 = tpu.matmul %22, %20, %cst_15 {dimension_numbers = #tpu.dot_dimension_numbers<[1], [0], [0], [1], [0, 0, 1, 1], [], []>} : vector<8x4xbf16>, vector<4x648xbf16>, vector<8x648xf32> -> vector<8x648xf32>
    %24 = arith.addf %19, %23 : vector<8x648xf32>
    %25 = vector.extract_strided_slice %0 {offsets = [0, 20], sizes = [4, 648], strides = [1, 1]} : vector<4x686xbf16> to vector<4x648xbf16>
    %c5 = arith.constant 5 : index
    %c0_16 = arith.constant 0 : index
    %c0_17 = arith.constant 0 : index
    %26 = vector.load %arg2[%c5, %c0_16, %c0_17] : memref<9x8x4xbf16, #tpu.memory_space<vmem>>, vector<1x8x4xbf16>
    %27 = vector.shape_cast %26 : vector<1x8x4xbf16> to vector<8x4xbf16>
    %cst_18 = arith.constant dense<0.000000e+00> : vector<8x648xf32>
    %28 = tpu.matmul %27, %25, %cst_18 {dimension_numbers = #tpu.dot_dimension_numbers<[1], [0], [0], [1], [0, 0, 1, 1], [], []>} : vector<8x4xbf16>, vector<4x648xbf16>, vector<8x648xf32> -> vector<8x648xf32>
    %29 = arith.addf %24, %28 : vector<8x648xf32>
    %30 = vector.extract_strided_slice %0 {offsets = [0, 36], sizes = [4, 648], strides = [1, 1]} : vector<4x686xbf16> to vector<4x648xbf16>
    %c6 = arith.constant 6 : index
    %c0_19 = arith.constant 0 : index
    %c0_20 = arith.constant 0 : index
    %31 = vector.load %arg2[%c6, %c0_19, %c0_20] : memref<9x8x4xbf16, #tpu.memory_space<vmem>>, vector<1x8x4xbf16>
    %32 = vector.shape_cast %31 : vector<1x8x4xbf16> to vector<8x4xbf16>
    %cst_21 = arith.constant dense<0.000000e+00> : vector<8x648xf32>
    %33 = tpu.matmul %32, %30, %cst_21 {dimension_numbers = #tpu.dot_dimension_numbers<[1], [0], [0], [1], [0, 0, 1, 1], [], []>} : vector<8x4xbf16>, vector<4x648xbf16>, vector<8x648xf32> -> vector<8x648xf32>
    %34 = arith.addf %29, %33 : vector<8x648xf32>
    %35 = vector.extract_strided_slice %0 {offsets = [0, 37], sizes = [4, 648], strides = [1, 1]} : vector<4x686xbf16> to vector<4x648xbf16>
    %c7 = arith.constant 7 : index
    %c0_22 = arith.constant 0 : index
    %c0_23 = arith.constant 0 : index
    %36 = vector.load %arg2[%c7, %c0_22, %c0_23] : memref<9x8x4xbf16, #tpu.memory_space<vmem>>, vector<1x8x4xbf16>
    %37 = vector.shape_cast %36 : vector<1x8x4xbf16> to vector<8x4xbf16>
    %cst_24 = arith.constant dense<0.000000e+00> : vector<8x648xf32>
    %38 = tpu.matmul %37, %35, %cst_24 {dimension_numbers = #tpu.dot_dimension_numbers<[1], [0], [0], [1], [0, 0, 1, 1], [], []>} : vector<8x4xbf16>, vector<4x648xbf16>, vector<8x648xf32> -> vector<8x648xf32>
    %39 = arith.addf %34, %38 : vector<8x648xf32>
    %40 = vector.extract_strided_slice %0 {offsets = [0, 38], sizes = [4, 648], strides = [1, 1]} : vector<4x686xbf16> to vector<4x648xbf16>
    %c8 = arith.constant 8 : index
    %c0_25 = arith.constant 0 : index
    %c0_26 = arith.constant 0 : index
    %41 = vector.load %arg2[%c8, %c0_25, %c0_26] : memref<9x8x4xbf16, #tpu.memory_space<vmem>>, vector<1x8x4xbf16>
    %42 = vector.shape_cast %41 : vector<1x8x4xbf16> to vector<8x4xbf16>
    %cst_27 = arith.constant dense<0.000000e+00> : vector<8x648xf32>
    %43 = tpu.matmul %42, %40, %cst_27 {dimension_numbers = #tpu.dot_dimension_numbers<[1], [0], [0], [1], [0, 0, 1, 1], [], []>} : vector<8x4xbf16>, vector<4x648xbf16>, vector<8x648xf32> -> vector<8x648xf32>
    %44 = arith.addf %39, %43 : vector<8x648xf32>
    %c0_28 = arith.constant 0 : index
    %c0_29 = arith.constant 0 : index
    %45 = vector.load %arg5[%c0_28, %c0_29] : memref<1x648xf32, #tpu.memory_space<vmem>>, vector<1x648xf32>
    %46 = vector.broadcast %45 : vector<1x648xf32> to vector<8x648xf32>
    %47 = arith.mulf %44, %46 : vector<8x648xf32>
    %cst_30 = arith.constant dense<0.000000e+00> : vector<8xf32>
    %48 = vector.multi_reduction <add>, %47, %cst_30 [1] : vector<8x648xf32> to vector<8xf32>
    %49 = vector.shape_cast %48 : vector<8xf32> to vector<8x1xf32>
    %cst_31 = arith.constant 0.001953125 : f32
    %50 = vector.broadcast %cst_31 : f32 to vector<8x1xf32>
    %51 = arith.mulf %49, %50 : vector<8x1xf32>
    %52 = vector.broadcast %51 : vector<8x1xf32> to vector<8x648xf32>
    %53 = arith.subf %44, %52 : vector<8x648xf32>
    %54 = vector.broadcast %45 : vector<1x648xf32> to vector<8x648xf32>
    %55 = arith.mulf %53, %54 : vector<8x648xf32>
    %56 = arith.mulf %55, %55 : vector<8x648xf32>
    %cst_32 = arith.constant dense<0.000000e+00> : vector<8xf32>
    %57 = vector.multi_reduction <add>, %56, %cst_32 [1] : vector<8x648xf32> to vector<8xf32>
    %58 = vector.shape_cast %57 : vector<8xf32> to vector<8x1xf32>
    %cst_33 = arith.constant 0.001953125 : f32
    %59 = vector.broadcast %cst_33 : f32 to vector<8x1xf32>
    %60 = arith.mulf %58, %59 : vector<8x1xf32>
    %c0_34 = arith.constant 0 : index
    %c0_35 = arith.constant 0 : index
    %61 = vector.load %arg3[%c0_34, %c0_35] : memref<8x1xf32, #tpu.memory_space<vmem>>, vector<8x1xf32>
    %cst_36 = arith.constant 9.99999974E-6 : f32
    %62 = vector.broadcast %cst_36 : f32 to vector<8x1xf32>
    %63 = arith.addf %60, %62 : vector<8x1xf32>
    %64 = math.rsqrt %63 : vector<8x1xf32>
    %65 = arith.mulf %61, %64 : vector<8x1xf32>
    %c0_37 = arith.constant 0 : index
    %c0_38 = arith.constant 0 : index
    %66 = vector.load %arg4[%c0_37, %c0_38] : memref<8x1xf32, #tpu.memory_space<vmem>>, vector<8x1xf32>
    %67 = arith.mulf %51, %65 : vector<8x1xf32>
    %68 = arith.subf %66, %67 : vector<8x1xf32>
    %69 = vector.broadcast %65 : vector<8x1xf32> to vector<8x648xf32>
    %70 = arith.mulf %44, %69 : vector<8x648xf32>
    %71 = vector.broadcast %68 : vector<8x1xf32> to vector<8x648xf32>
    %72 = arith.addf %70, %71 : vector<8x648xf32>
    %cst_39 = arith.constant 0.000000e+00 : f32
    %73 = vector.broadcast %cst_39 : f32 to vector<8x648xf32>
    %74 = arith.maximumf %72, %73 : vector<8x648xf32>
    %75 = vector.extract_strided_slice %74 {offsets = [0, 0], sizes = [8, 647], strides = [1, 1]} : vector<8x648xf32> to vector<8x647xf32>
    %76 = vector.extract_strided_slice %74 {offsets = [0, 1], sizes = [8, 647], strides = [1, 1]} : vector<8x648xf32> to vector<8x647xf32>
    %77 = arith.maximumf %75, %76 : vector<8x647xf32>
    %78 = vector.extract_strided_slice %77 {offsets = [0, 0], sizes = [8, 629], strides = [1, 1]} : vector<8x647xf32> to vector<8x629xf32>
    %79 = vector.extract_strided_slice %77 {offsets = [0, 18], sizes = [8, 629], strides = [1, 1]} : vector<8x647xf32> to vector<8x629xf32>
    %80 = arith.maximumf %78, %79 : vector<8x629xf32>
    %81 = tpu.iota {dimensions = array<i32: 0>} : vector<629x222xi32>
    %c0_40 = arith.constant 0 : index
    %c0_41 = arith.constant 0 : index
    %82 = vector.load %arg6[%c0_40, %c0_41] : memref<1x222xi32, #tpu.memory_space<vmem>>, vector<1x222xi32>
    %83 = vector.broadcast %82 : vector<1x222xi32> to vector<629x222xi32>
    %84 = arith.cmpi eq, %81, %83 : vector<629x222xi32>
    %85 = arith.extui %84 : vector<629x222xi1> to vector<629x222xi32>
    %86 = arith.sitofp %85 : vector<629x222xi32> to vector<629x222xf32>
    %c0_42 = arith.constant 0 : index
    %c0_43 = arith.constant 0 : index
    %87 = vector.load %arg7[%c0_42, %c0_43] : memref<1x222xf32, #tpu.memory_space<vmem>>, vector<1x222xf32>
    %88 = vector.broadcast %87 : vector<1x222xf32> to vector<629x222xf32>
    %89 = arith.mulf %86, %88 : vector<629x222xf32>
    %cst_44 = arith.constant dense<0.000000e+00> : vector<8x222xf32>
    %90 = tpu.matmul %80, %89, %cst_44 {dimension_numbers = #tpu.dot_dimension_numbers<[1], [0], [0], [1], [0, 0, 1, 1], [], []>} : vector<8x629xf32>, vector<629x222xf32>, vector<8x222xf32> -> vector<8x222xf32>
    %91 = arith.truncf %90 : vector<8x222xf32> to vector<8x222xbf16>
    %92 = vector.extract_strided_slice %91 {offsets = [0, 0], sizes = [8, 200], strides = [1, 1]} : vector<8x222xbf16> to vector<8x200xbf16>
    %c0_45 = arith.constant 0 : index
    %c0_46 = arith.constant 0 : index
    %c0_47 = arith.constant 0 : index
    %93 = vector.load %arg8[%c0_45, %c0_46, %c0_47] : memref<9x8x8xbf16, #tpu.memory_space<vmem>>, vector<1x8x8xbf16>
    %94 = vector.shape_cast %93 : vector<1x8x8xbf16> to vector<8x8xbf16>
    %cst_48 = arith.constant dense<0.000000e+00> : vector<8x200xf32>
    %95 = tpu.matmul %94, %92, %cst_48 {dimension_numbers = #tpu.dot_dimension_numbers<[1], [0], [0], [1], [0, 0, 1, 1], [], []>} : vector<8x8xbf16>, vector<8x200xbf16>, vector<8x200xf32> -> vector<8x200xf32>
    %96 = vector.extract_strided_slice %91 {offsets = [0, 1], sizes = [8, 200], strides = [1, 1]} : vector<8x222xbf16> to vector<8x200xbf16>
    %c1_49 = arith.constant 1 : index
    %c0_50 = arith.constant 0 : index
    %c0_51 = arith.constant 0 : index
    %97 = vector.load %arg8[%c1_49, %c0_50, %c0_51] : memref<9x8x8xbf16, #tpu.memory_space<vmem>>, vector<1x8x8xbf16>
    %98 = vector.shape_cast %97 : vector<1x8x8xbf16> to vector<8x8xbf16>
    %cst_52 = arith.constant dense<0.000000e+00> : vector<8x200xf32>
    %99 = tpu.matmul %98, %96, %cst_52 {dimension_numbers = #tpu.dot_dimension_numbers<[1], [0], [0], [1], [0, 0, 1, 1], [], []>} : vector<8x8xbf16>, vector<8x200xbf16>, vector<8x200xf32> -> vector<8x200xf32>
    %100 = arith.addf %95, %99 : vector<8x200xf32>
    %101 = vector.extract_strided_slice %91 {offsets = [0, 2], sizes = [8, 200], strides = [1, 1]} : vector<8x222xbf16> to vector<8x200xbf16>
    %c2_53 = arith.constant 2 : index
    %c0_54 = arith.constant 0 : index
    %c0_55 = arith.constant 0 : index
    %102 = vector.load %arg8[%c2_53, %c0_54, %c0_55] : memref<9x8x8xbf16, #tpu.memory_space<vmem>>, vector<1x8x8xbf16>
    %103 = vector.shape_cast %102 : vector<1x8x8xbf16> to vector<8x8xbf16>
    %cst_56 = arith.constant dense<0.000000e+00> : vector<8x200xf32>
    %104 = tpu.matmul %103, %101, %cst_56 {dimension_numbers = #tpu.dot_dimension_numbers<[1], [0], [0], [1], [0, 0, 1, 1], [], []>} : vector<8x8xbf16>, vector<8x200xbf16>, vector<8x200xf32> -> vector<8x200xf32>
    %105 = arith.addf %100, %104 : vector<8x200xf32>
    %106 = vector.extract_strided_slice %91 {offsets = [0, 10], sizes = [8, 200], strides = [1, 1]} : vector<8x222xbf16> to vector<8x200xbf16>
    %c3_57 = arith.constant 3 : index
    %c0_58 = arith.constant 0 : index
    %c0_59 = arith.constant 0 : index
    %107 = vector.load %arg8[%c3_57, %c0_58, %c0_59] : memref<9x8x8xbf16, #tpu.memory_space<vmem>>, vector<1x8x8xbf16>
    %108 = vector.shape_cast %107 : vector<1x8x8xbf16> to vector<8x8xbf16>
    %cst_60 = arith.constant dense<0.000000e+00> : vector<8x200xf32>
    %109 = tpu.matmul %108, %106, %cst_60 {dimension_numbers = #tpu.dot_dimension_numbers<[1], [0], [0], [1], [0, 0, 1, 1], [], []>} : vector<8x8xbf16>, vector<8x200xbf16>, vector<8x200xf32> -> vector<8x200xf32>
    %110 = arith.addf %105, %109 : vector<8x200xf32>
    %111 = vector.extract_strided_slice %91 {offsets = [0, 11], sizes = [8, 200], strides = [1, 1]} : vector<8x222xbf16> to vector<8x200xbf16>
    %c4_61 = arith.constant 4 : index
    %c0_62 = arith.constant 0 : index
    %c0_63 = arith.constant 0 : index
    %112 = vector.load %arg8[%c4_61, %c0_62, %c0_63] : memref<9x8x8xbf16, #tpu.memory_space<vmem>>, vector<1x8x8xbf16>
    %113 = vector.shape_cast %112 : vector<1x8x8xbf16> to vector<8x8xbf16>
    %cst_64 = arith.constant dense<0.000000e+00> : vector<8x200xf32>
    %114 = tpu.matmul %113, %111, %cst_64 {dimension_numbers = #tpu.dot_dimension_numbers<[1], [0], [0], [1], [0, 0, 1, 1], [], []>} : vector<8x8xbf16>, vector<8x200xbf16>, vector<8x200xf32> -> vector<8x200xf32>
    %115 = arith.addf %110, %114 : vector<8x200xf32>
    %116 = vector.extract_strided_slice %91 {offsets = [0, 12], sizes = [8, 200], strides = [1, 1]} : vector<8x222xbf16> to vector<8x200xbf16>
    %c5_65 = arith.constant 5 : index
    %c0_66 = arith.constant 0 : index
    %c0_67 = arith.constant 0 : index
    %117 = vector.load %arg8[%c5_65, %c0_66, %c0_67] : memref<9x8x8xbf16, #tpu.memory_space<vmem>>, vector<1x8x8xbf16>
    %118 = vector.shape_cast %117 : vector<1x8x8xbf16> to vector<8x8xbf16>
    %cst_68 = arith.constant dense<0.000000e+00> : vector<8x200xf32>
    %119 = tpu.matmul %118, %116, %cst_68 {dimension_numbers = #tpu.dot_dimension_numbers<[1], [0], [0], [1], [0, 0, 1, 1], [], []>} : vector<8x8xbf16>, vector<8x200xbf16>, vector<8x200xf32> -> vector<8x200xf32>
    %120 = arith.addf %115, %119 : vector<8x200xf32>
    %121 = vector.extract_strided_slice %91 {offsets = [0, 20], sizes = [8, 200], strides = [1, 1]} : vector<8x222xbf16> to vector<8x200xbf16>
    %c6_69 = arith.constant 6 : index
    %c0_70 = arith.constant 0 : index
    %c0_71 = arith.constant 0 : index
    %122 = vector.load %arg8[%c6_69, %c0_70, %c0_71] : memref<9x8x8xbf16, #tpu.memory_space<vmem>>, vector<1x8x8xbf16>
    %123 = vector.shape_cast %122 : vector<1x8x8xbf16> to vector<8x8xbf16>
    %cst_72 = arith.constant dense<0.000000e+00> : vector<8x200xf32>
    %124 = tpu.matmul %123, %121, %cst_72 {dimension_numbers = #tpu.dot_dimension_numbers<[1], [0], [0], [1], [0, 0, 1, 1], [], []>} : vector<8x8xbf16>, vector<8x200xbf16>, vector<8x200xf32> -> vector<8x200xf32>
    %125 = arith.addf %120, %124 : vector<8x200xf32>
    %126 = vector.extract_strided_slice %91 {offsets = [0, 21], sizes = [8, 200], strides = [1, 1]} : vector<8x222xbf16> to vector<8x200xbf16>
    %c7_73 = arith.constant 7 : index
    %c0_74 = arith.constant 0 : index
    %c0_75 = arith.constant 0 : index
    %127 = vector.load %arg8[%c7_73, %c0_74, %c0_75] : memref<9x8x8xbf16, #tpu.memory_space<vmem>>, vector<1x8x8xbf16>
    %128 = vector.shape_cast %127 : vector<1x8x8xbf16> to vector<8x8xbf16>
    %cst_76 = arith.constant dense<0.000000e+00> : vector<8x200xf32>
    %129 = tpu.matmul %128, %126, %cst_76 {dimension_numbers = #tpu.dot_dimension_numbers<[1], [0], [0], [1], [0, 0, 1, 1], [], []>} : vector<8x8xbf16>, vector<8x200xbf16>, vector<8x200xf32> -> vector<8x200xf32>
    %130 = arith.addf %125, %129 : vector<8x200xf32>
    %131 = vector.extract_strided_slice %91 {offsets = [0, 22], sizes = [8, 200], strides = [1, 1]} : vector<8x222xbf16> to vector<8x200xbf16>
    %c8_77 = arith.constant 8 : index
    %c0_78 = arith.constant 0 : index
    %c0_79 = arith.constant 0 : index
    %132 = vector.load %arg8[%c8_77, %c0_78, %c0_79] : memref<9x8x8xbf16, #tpu.memory_space<vmem>>, vector<1x8x8xbf16>
    %133 = vector.shape_cast %132 : vector<1x8x8xbf16> to vector<8x8xbf16>
    %cst_80 = arith.constant dense<0.000000e+00> : vector<8x200xf32>
    %134 = tpu.matmul %133, %131, %cst_80 {dimension_numbers = #tpu.dot_dimension_numbers<[1], [0], [0], [1], [0, 0, 1, 1], [], []>} : vector<8x8xbf16>, vector<8x200xbf16>, vector<8x200xf32> -> vector<8x200xf32>
    %135 = arith.addf %130, %134 : vector<8x200xf32>
    %c0_81 = arith.constant 0 : index
    %c0_82 = arith.constant 0 : index
    %136 = vector.load %arg11[%c0_81, %c0_82] : memref<1x200xf32, #tpu.memory_space<vmem>>, vector<1x200xf32>
    %137 = vector.broadcast %136 : vector<1x200xf32> to vector<8x200xf32>
    %138 = arith.mulf %135, %137 : vector<8x200xf32>
    %cst_83 = arith.constant dense<0.000000e+00> : vector<8xf32>
    %139 = vector.multi_reduction <add>, %138, %cst_83 [1] : vector<8x200xf32> to vector<8xf32>
    %140 = vector.shape_cast %139 : vector<8xf32> to vector<8x1xf32>
    %cst_84 = arith.constant 7.812500e-03 : f32
    %141 = vector.broadcast %cst_84 : f32 to vector<8x1xf32>
    %142 = arith.mulf %140, %141 : vector<8x1xf32>
    %143 = vector.broadcast %142 : vector<8x1xf32> to vector<8x200xf32>
    %144 = arith.subf %135, %143 : vector<8x200xf32>
    %145 = vector.broadcast %136 : vector<1x200xf32> to vector<8x200xf32>
    %146 = arith.mulf %144, %145 : vector<8x200xf32>
    %147 = arith.mulf %146, %146 : vector<8x200xf32>
    %cst_85 = arith.constant dense<0.000000e+00> : vector<8xf32>
    %148 = vector.multi_reduction <add>, %147, %cst_85 [1] : vector<8x200xf32> to vector<8xf32>
    %149 = vector.shape_cast %148 : vector<8xf32> to vector<8x1xf32>
    %cst_86 = arith.constant 7.812500e-03 : f32
    %150 = vector.broadcast %cst_86 : f32 to vector<8x1xf32>
    %151 = arith.mulf %149, %150 : vector<8x1xf32>
    %c0_87 = arith.constant 0 : index
    %c0_88 = arith.constant 0 : index
    %152 = vector.load %arg9[%c0_87, %c0_88] : memref<8x1xf32, #tpu.memory_space<vmem>>, vector<8x1xf32>
    %cst_89 = arith.constant 9.99999974E-6 : f32
    %153 = vector.broadcast %cst_89 : f32 to vector<8x1xf32>
    %154 = arith.addf %151, %153 : vector<8x1xf32>
    %155 = math.rsqrt %154 : vector<8x1xf32>
    %156 = arith.mulf %152, %155 : vector<8x1xf32>
    %c0_90 = arith.constant 0 : index
    %c0_91 = arith.constant 0 : index
    %157 = vector.load %arg10[%c0_90, %c0_91] : memref<8x1xf32, #tpu.memory_space<vmem>>, vector<8x1xf32>
    %158 = arith.mulf %142, %156 : vector<8x1xf32>
    %159 = arith.subf %157, %158 : vector<8x1xf32>
    %160 = vector.broadcast %156 : vector<8x1xf32> to vector<8x200xf32>
    %161 = arith.mulf %135, %160 : vector<8x200xf32>
    %162 = vector.broadcast %159 : vector<8x1xf32> to vector<8x200xf32>
    %163 = arith.addf %161, %162 : vector<8x200xf32>
    %cst_92 = arith.constant 0.000000e+00 : f32
    %164 = vector.broadcast %cst_92 : f32 to vector<8x200xf32>
    %165 = arith.maximumf %163, %164 : vector<8x200xf32>
    %166 = vector.extract_strided_slice %165 {offsets = [0, 0], sizes = [8, 199], strides = [1, 1]} : vector<8x200xf32> to vector<8x199xf32>
    %167 = vector.extract_strided_slice %165 {offsets = [0, 1], sizes = [8, 199], strides = [1, 1]} : vector<8x200xf32> to vector<8x199xf32>
    %168 = arith.maximumf %166, %167 : vector<8x199xf32>
    %169 = vector.extract_strided_slice %168 {offsets = [0, 0], sizes = [8, 189], strides = [1, 1]} : vector<8x199xf32> to vector<8x189xf32>
    %170 = vector.extract_strided_slice %168 {offsets = [0, 10], sizes = [8, 189], strides = [1, 1]} : vector<8x199xf32> to vector<8x189xf32>
    %171 = arith.maximumf %169, %170 : vector<8x189xf32>
    %172 = tpu.iota {dimensions = array<i32: 0>} : vector<189x32xi32>
    %c0_93 = arith.constant 0 : index
    %c0_94 = arith.constant 0 : index
    %173 = vector.load %arg12[%c0_93, %c0_94] : memref<1x32xi32, #tpu.memory_space<vmem>>, vector<1x32xi32>
    %174 = vector.broadcast %173 : vector<1x32xi32> to vector<189x32xi32>
    %175 = arith.cmpi eq, %172, %174 : vector<189x32xi32>
    %176 = arith.extui %175 : vector<189x32xi1> to vector<189x32xi32>
    %177 = arith.sitofp %176 : vector<189x32xi32> to vector<189x32xf32>
    %c0_95 = arith.constant 0 : index
    %c0_96 = arith.constant 0 : index
    %178 = vector.load %arg13[%c0_95, %c0_96] : memref<1x32xf32, #tpu.memory_space<vmem>>, vector<1x32xf32>
    %179 = vector.broadcast %178 : vector<1x32xf32> to vector<189x32xf32>
    %180 = arith.mulf %177, %179 : vector<189x32xf32>
    %cst_97 = arith.constant dense<0.000000e+00> : vector<8x32xf32>
    %181 = tpu.matmul %171, %180, %cst_97 {dimension_numbers = #tpu.dot_dimension_numbers<[1], [0], [0], [1], [0, 0, 1, 1], [], []>} : vector<8x189xf32>, vector<189x32xf32>, vector<8x32xf32> -> vector<8x32xf32>
    %c0_98 = arith.constant 0 : index
    %c0_99 = arith.constant 0 : index
    %182 = vector.load %arg14[%c0_98, %c0_99] : memref<8x32xf32, #tpu.memory_space<vmem>>, vector<8x32xf32>
    tpu.vector_store %arg14[%c0_98, %c0_99], %181 {strides = array<i32>} : memref<8x32xf32, #tpu.memory_space<vmem>>, vector<8x32xf32>,
    return
  }
  func.func @transform_0(%arg0: i32) -> (i32, i32) {
    %c0_i32 = arith.constant 0 : i32
    %c0_i32_0 = arith.constant 0 : i32
    %c0_i32_1 = arith.constant 0 : i32
    return %c0_i32, %c0_i32_0 : i32, i32
  }
  func.func @transform_1(%arg0: i32) -> (i32, i32, i32) {
    %c0_i32 = arith.constant 0 : i32
    %c0_i32_0 = arith.constant 0 : i32
    %c0_i32_1 = arith.constant 0 : i32
    %c0_i32_2 = arith.constant 0 : i32
    return %c0_i32, %c0_i32_0, %c0_i32_1 : i32, i32, i32
  }
  func.func @transform_2(%arg0: i32) -> (i32, i32) {
    %c0_i32 = arith.constant 0 : i32
    %c0_i32_0 = arith.constant 0 : i32
    %c0_i32_1 = arith.constant 0 : i32
    return %c0_i32, %c0_i32_0 : i32, i32
  }
  func.func @transform_3(%arg0: i32) -> (i32, i32) {
    %c0_i32 = arith.constant 0 : i32
    %c0_i32_0 = arith.constant 0 : i32
    %c0_i32_1 = arith.constant 0 : i32
    return %c0_i32, %c0_i32_0 : i32, i32
  }
  func.func @transform_4(%arg0: i32) -> (i32, i32) {
    %c0_i32 = arith.constant 0 : i32
    %c0_i32_0 = arith.constant 0 : i32
    %c0_i32_1 = arith.constant 0 : i32
    return %c0_i32, %c0_i32_0 : i32, i32
  }
  func.func @transform_5(%arg0: i32) -> (i32, i32) {
    %c0_i32 = arith.constant 0 : i32
    %c0_i32_0 = arith.constant 0 : i32
    %c0_i32_1 = arith.constant 0 : i32
    return %c0_i32, %c0_i32_0 : i32, i32
  }
  func.func @transform_6(%arg0: i32) -> (i32, i32) {
    %c0_i32 = arith.constant 0 : i32
    %c0_i32_0 = arith.constant 0 : i32
    %c0_i32_1 = arith.constant 0 : i32
    return %c0_i32, %c0_i32_0 : i32, i32
  }
  func.func @transform_7(%arg0: i32) -> (i32, i32, i32) {
    %c0_i32 = arith.constant 0 : i32
    %c0_i32_0 = arith.constant 0 : i32
    %c0_i32_1 = arith.constant 0 : i32
    %c0_i32_2 = arith.constant 0 : i32
    return %c0_i32, %c0_i32_0, %c0_i32_1 : i32, i32, i32
  }
  func.func @transform_8(%arg0: i32) -> (i32, i32) {
    %c0_i32 = arith.constant 0 : i32
    %c0_i32_0 = arith.constant 0 : i32
    %c0_i32_1 = arith.constant 0 : i32
    return %c0_i32, %c0_i32_0 : i32, i32
  }
  func.func @transform_9(%arg0: i32) -> (i32, i32) {
    %c0_i32 = arith.constant 0 : i32
    %c0_i32_0 = arith.constant 0 : i32
    %c0_i32_1 = arith.constant 0 : i32
    return %c0_i32, %c0_i32_0 : i32, i32
  }
  func.func @transform_10(%arg0: i32) -> (i32, i32) {
    %c0_i32 = arith.constant 0 : i32
    %c0_i32_0 = arith.constant 0 : i32
    %c0_i32_1 = arith.constant 0 : i32
    return %c0_i32, %c0_i32_0 : i32, i32
  }
  func.func @transform_11(%arg0: i32) -> (i32, i32) {
    %c0_i32 = arith.constant 0 : i32
    %c0_i32_0 = arith.constant 0 : i32
    %c0_i32_1 = arith.constant 0 : i32
    return %c0_i32, %c0_i32_0 : i32, i32
  }
  func.func @transform_12(%arg0: i32) -> (i32, i32) {
    %c0_i32 = arith.constant 0 : i32
    %c0_i32_0 = arith.constant 0 : i32
    %c0_i32_1 = arith.constant 0 : i32
    return %c0_i32, %c0_i32_0 : i32, i32
  }
  func.func @transform_13(%arg0: i32) -> (i32, i32) {
    %c0_i32 = arith.constant 0 : i32
    %c0_i32_0 = arith.constant 0 : i32
    %c0_i32_1 = arith.constant 0 : i32
    return %c0_i32, %c0_i32_0 : i32, i32
  }
}

</mosaic_0001>

<llo_original>
// kernel: conv_block_forward.1
$region0: #{conv_block_forward.1}
  #allocation0 [shape = 'u32[]', space=smem, size = 0x4, offset = 0x4, fixed_abs, tag = 'smem constant byte address 0x4 - core index']
  #allocation1 [shape = 'u32[144,128]{1,0:T(1,128)}', space=vmem, size = 0x12000, scoped, tag = 'internal scratch']
  %s0 = inlined_call_operand.vmem [shape: bf16[4,686], index: 0, kind: input, shape index: {}]
  %s1 = inlined_call_operand.vmem [shape: bf16[9,8,4], index: 1, kind: input, shape index: {}]
  %s2 = inlined_call_operand.vmem [shape: f32[8,1], index: 2, kind: input, shape index: {}]
  %s3 = inlined_call_operand.vmem [shape: f32[8,1], index: 3, kind: input, shape index: {}]
  %s4 = inlined_call_operand.vmem [shape: f32[1,648], index: 4, kind: input, shape index: {}]
  %s5 = inlined_call_operand.vmem [shape: s32[1,222], index: 5, kind: input, shape index: {}]
  %s6 = inlined_call_operand.vmem [shape: f32[1,222], index: 6, kind: input, shape index: {}]
  %s7 = inlined_call_operand.vmem [shape: bf16[9,8,8], index: 7, kind: input, shape index: {}]
  %s8 = inlined_call_operand.vmem [shape: f32[8,1], index: 8, kind: input, shape index: {}]
  %s9 = inlined_call_operand.vmem [shape: f32[8,1], index: 9, kind: input, shape index: {}]
  %s10 = inlined_call_operand.vmem [shape: f32[1,200], index: 10, kind: input, shape index: {}]
  %s11 = inlined_call_operand.vmem [shape: s32[1,32], index: 11, kind: input, shape index: {}]
  %s12 = inlined_call_operand.vmem [shape: f32[1,32], index: 12, kind: input, shape index: {}]
  %s13 = inlined_call_operand.vmem [shape: f32[8,32], index: 13, kind: output, shape index: {}]
  %s14 = sld [smem:[#allocation0]]
  $region62: #{conv_block_forward.1} parent=0
    _
  %s16 = ssub.s32 1, %s14
  %s17 = scalar_select 0, %s16, %s14
  // Predicated region
  $region2: #{conv_block_forward.1} parent=0 // pred_check
    _
  $region3: #{conv_block_forward.1} parent=0 // pred_check_branch
    %19 = sbr.rel (0) target = $region5
  $region4: #{conv_block_forward.1} parent=0 // pred_region
    _
  $region5: #{conv_block_forward.1} parent=0 // pred_fallthru
    _
  // Predicated region
  $region6: #{conv_block_forward.1} parent=0 // pred_check
    _
  $region7: #{conv_block_forward.1} parent=0 // pred_check_branch
    %21 = sbr.rel (0) target = $region9
  $region8: #{conv_block_forward.1} parent=0 // pred_region
    _
  $region9: #{conv_block_forward.1} parent=0 // pred_fallthru
    _
  // Predicated region
  $region10: #{conv_block_forward.1} parent=0 // pred_check
    _
  $region11: #{conv_block_forward.1} parent=0 // pred_check_branch
    %23 = sbr.rel (0) target = $region13
  $region12: #{conv_block_forward.1} parent=0 // pred_region
    _
  $region13: #{conv_block_forward.1} parent=0 // pred_fallthru
    _
  // Predicated region
  $region14: #{conv_block_forward.1} parent=0 // pred_check
    _
  $region15: #{conv_block_forward.1} parent=0 // pred_check_branch
    %25 = sbr.rel (0) target = $region17
  $region16: #{conv_block_forward.1} parent=0 // pred_region
    _
  $region17: #{conv_block_forward.1} parent=0 // pred_fallthru
    _
  // Predicated region
  $region18: #{conv_block_forward.1} parent=0 // pred_check
    _
  $region19: #{conv_block_forward.1} parent=0 // pred_check_branch
    %27 = sbr.rel (0) target = $region21
  $region20: #{conv_block_forward.1} parent=0 // pred_region
    _
  $region21: #{conv_block_forward.1} parent=0 // pred_fallthru
    _
  // Predicated region
  $region22: #{conv_block_forward.1} parent=0 // pred_check
    _
  $region23: #{conv_block_forward.1} parent=0 // pred_check_branch
    %29 = sbr.rel (0) target = $region25
  $region24: #{conv_block_forward.1} parent=0 // pred_region
    _
  $region25: #{conv_block_forward.1} parent=0 // pred_fallthru
    _
  // Predicated region
  $region26: #{conv_block_forward.1} parent=0 // pred_check
    _
  $region27: #{conv_block_forward.1} parent=0 // pred_check_branch
    %31 = sbr.rel (0) target = $region29
  $region28: #{conv_block_forward.1} parent=0 // pred_region
    _
  $region29: #{conv_block_forward.1} parent=0 // pred_fallthru
    _
  // Predicated region
  $region30: #{conv_block_forward.1} parent=0 // pred_check
    _
  $region31: #{conv_block_forward.1} parent=0 // pred_check_branch
    %33 = sbr.rel (0) target = $region33
  $region32: #{conv_block_forward.1} parent=0 // pred_region
    _
  $region33: #{conv_block_forward.1} parent=0 // pred_fallthru
    _
  // Predicated region
  $region34: #{conv_block_forward.1} parent=0 // pred_check
    _
  $region35: #{conv_block_forward.1} parent=0 // pred_check_branch
    %35 = sbr.rel (0) target = $region37
  $region36: #{conv_block_forward.1} parent=0 // pred_region
    _
  $region37: #{conv_block_forward.1} parent=0 // pred_fallthru
    _
  // Predicated region
  $region38: #{conv_block_forward.1} parent=0 // pred_check
    _
  $region39: #{conv_block_forward.1} parent=0 // pred_check_branch
    %37 = sbr.rel (0) target = $region41
  $region40: #{conv_block_forward.1} parent=0 // pred_region
    _
  $region41: #{conv_block_forward.1} parent=0 // pred_fallthru
    _
  // Predicated region
  $region42: #{conv_block_forward.1} parent=0 // pred_check
    _
  $region43: #{conv_block_forward.1} parent=0 // pred_check_branch
    %39 = sbr.rel (0) target = $region45
  $region44: #{conv_block_forward.1} parent=0 // pred_region
    _
  $region45: #{conv_block_forward.1} parent=0 // pred_fallthru
    _
  // Predicated region
  $region46: #{conv_block_forward.1} parent=0 // pred_check
    _
  $region47: #{conv_block_forward.1} parent=0 // pred_check_branch
    %41 = sbr.rel (0) target = $region49
  $region48: #{conv_block_forward.1} parent=0 // pred_region
    _
  $region49: #{conv_block_forward.1} parent=0 // pred_fallthru
    _
  // Predicated region
  $region50: #{conv_block_forward.1} parent=0 // pred_check
    _
  $region51: #{conv_block_forward.1} parent=0 // pred_check_branch
    %43 = sbr.rel (0) target = $region53
  $region52: #{conv_block_forward.1} parent=0 // pred_region
    _
  $region53: #{conv_block_forward.1} parent=0 // pred_fallthru
    _
  %v45 = vld [vmem:[%s0] sm:$0xff]
  %v46 = vld [vmem:[%s0 + $0x8] sm:$0xf]
  %v47 = vld [vmem:[%s1] sm:$0xf]
  %s48 = scalar_lea.vmem %s1, 4
  %v49 = vld [vmem:[%s48] sm:$0xf]
  %v52 = vcombine.high %v45, %v45
  %v54 = vunpack.c.l.s4 1983009808
  %v55 = vunpack.c.0.s8 %v54
  %v56 = vlaneseq
  %v57 = vshrl.u32 %v56, 7
  %v58 = vsub.s32 %v55, %v57
  %v59 = vrot.slane %v45, %v58
  %v61 = vunpack.c.l.s4 1983009808
  %v62 = vunpack.c.0.s8 %v61
  %v63 = vlaneseq
  %v64 = vshrl.u32 %v63, 7
  %v65 = vsub.s32 %v62, %v64
  %v66 = vrot.slane %v52, %v65
  %v67 = vcombine.high %v59, %v59
  %v68 = vcombine.high %v66, %v66
  %v70 = vunpack.c.l.s4 1983009808
  %v71 = vunpack.c.0.s8 %v70
  %v72 = vlaneseq
  %v73 = vshrl.u32 %v72, 7
  %v74 = vsub.s32 %v71, %v73
  %v75 = vrot.slane %v46, %v74
  %v76 = vcombine.high %v75, %v75
  %77 = vrot.lane.b32.xlu0 %v59, 127
  %v78 = vpop.permute.xlu0 %77
  %79 = vrot.lane.b32.xlu0 %v67, 127
  %v80 = vpop.permute.xlu0 %79
  %81 = vrot.lane.b32.xlu0 %v66, 127
  %v82 = vpop.permute.xlu0 %81
  %83 = vrot.lane.b32.xlu0 %v68, 127
  %v84 = vpop.permute.xlu0 %83
  %85 = vrot.lane.b32.xlu0 %v75, 127
  %v86 = vpop.permute.xlu0 %85
  %87 = vrot.lane.b32.xlu0 %v76, 127
  %v88 = vpop.permute.xlu0 %87
  %vm89 = vcmask 1039360
  %v90 = vsel %vm89, %v78, %v80
  %v91 = vsel %vm89, %v80, %v82
  %v92 = vsel %vm89, %v82, %v84
  %v93 = vsel %vm89, %v84, %v86
  %v94 = vsel %vm89, %v86, %v88
  %vm95 = vcmask 31744
  %v97 = vsel %vm95, %v49, 0
  %vm99 = vcmask 1041408
  %v101 = vsel %vm99, %v90, 0
  %v104 = vsel %vm99, %v91, 0
  %v107 = vsel %vm99, %v92, 0
  %v110 = vsel %vm99, %v93, 0
  %v113 = vsel %vm99, %v94, 0
  %v116 = vsel %vm99, %v88, 0
  %118 = vmatprep.subr.bf16.mxu0 %v104
  %119 = vmatpush1.bf16.msra.mxu0 %v101
  %120 = vmatprep.subr.bf16.mxu0 0
  %121 = vmatpush1.bf16.msra.mxu0 0
  %122 = vmatprep.subr.bf16.mxu0 0
  %123 = vmatpush1.bf16.msra.mxu0 0
  %124 = vmatprep.subr.bf16.mxu0 0
  %125 = vmatpush1.bf16.msra.mxu0 0
  %126 = vmatprep.subr.bf16.mxu0 0
  %127 = vmatpush1.bf16.msra.mxu0 0
  %128 = vmatprep.subr.bf16.mxu0 0
  %129 = vmatpush1.bf16.msra.mxu0 0
  %130 = vmatprep.subr.bf16.mxu0 0
  %131 = vmatpush1.bf16.msra.mxu0 0
  %132 = vmatprep.subr.bf16.mxu0 0
  %133 = vmatpush1.bf16.msra.mxu0 0
  %134 = vmatprep.subr.bf16.mxu0 0
  %135 = vmatpush1.bf16.msra.mxu0 0
  %136 = vmatprep.subr.bf16.mxu0 0
  %137 = vmatpush1.bf16.msra.mxu0 0
  %138 = vmatprep.subr.bf16.mxu0 0
  %139 = vmatpush1.bf16.msra.mxu0 0
  %140 = vmatprep.subr.bf16.mxu0 0
  %141 = vmatpush1.bf16.msra.mxu0 0
  %142 = vmatprep.subr.bf16.mxu0 0
  %143 = vmatpush1.bf16.msra.mxu0 0
  %144 = vmatprep.subr.bf16.mxu0 0
  %145 = vmatpush1.bf16.msra.mxu0 0
  %146 = vmatprep.subr.bf16.mxu0 0
  %147 = vmatpush1.bf16.msra.mxu0 0
  %148 = vmatprep.subr.bf16.mxu0 0
  %149 = vmatpush1.bf16.msra.mxu0 0
  %150 = vmatprep.mubr.bf16.mxu0 0
  %151 = vmatmul.mubr.bf16.gmra.mrb[0].mxu0 %v97
  %v152 = vpop.f32.mrb[0].mxu0
  %v153 = vadd.f32 0.0, %v152
  %v154 = vpop.f32.mrb[0].mxu0
  %v155 = vadd.f32 0.0, %v154
  %v156 = vpop.f32.mrb[0].mxu0
  %v157 = vpop.f32.mrb[0].mxu0
  %158 = vdwg.mxu0
  %159 = vmatprep.subr.bf16.mxu0 %v110
  %160 = vmatpush1.bf16.msra.mxu0 %v107
  %161 = vmatprep.subr.bf16.mxu0 0
  %162 = vmatpush1.bf16.msra.mxu0 0
  %163 = vmatprep.subr.bf16.mxu0 0
  %164 = vmatpush1.bf16.msra.mxu0 0
  %165 = vmatprep.subr.bf16.mxu0 0
  %166 = vmatpush1.bf16.msra.mxu0 0
  %167 = vmatprep.subr.bf16.mxu0 0
  %168 = vmatpush1.bf16.msra.mxu0 0
  %169 = vmatprep.subr.bf16.mxu0 0
  %170 = vmatpush1.bf16.msra.mxu0 0
  %171 = vmatprep.subr.bf16.mxu0 0
  %172 = vmatpush1.bf16.msra.mxu0 0
  %173 = vmatprep.subr.bf16.mxu0 0
  %174 = vmatpush1.bf16.msra.mxu0 0
  %175 = vmatprep.subr.bf16.mxu0 0
  %176 = vmatpush1.bf16.msra.mxu0 0
  %177 = vmatprep.subr.bf16.mxu0 0
  %178 = vmatpush1.bf16.msra.mxu0 0
  %179 = vmatprep.subr.bf16.mxu0 0
  %180 = vmatpush1.bf16.msra.mxu0 0
  %181 = vmatprep.subr.bf16.mxu0 0
  %182 = vmatpush1.bf16.msra.mxu0 0
  %183 = vmatprep.subr.bf16.mxu0 0
  %184 = vmatpush1.bf16.msra.mxu0 0
  %185 = vmatprep.subr.bf16.mxu0 0
  %186 = vmatpush1.bf16.msra.mxu0 0
  %187 = vmatprep.subr.bf16.mxu0 0
  %188 = vmatpush1.bf16.msra.mxu0 0
  %189 = vmatprep.subr.bf16.mxu0 0
  %190 = vmatpush1.bf16.msra.mxu0 0
  %191 = vmatprep.mubr.bf16.mxu0 0
  %192 = vmatmul.mubr.bf16.gmra.mrb[0].mxu0 %v97
  %v193 = vpop.f32.mrb[0].mxu0
  %v194 = vadd.f32 0.0, %v193
  %v195 = vpop.f32.mrb[0].mxu0
  %v196 = vadd.f32 0.0, %v195
  %v197 = vpop.f32.mrb[0].mxu0
  %v198 = vpop.f32.mrb[0].mxu0
  %199 = vdwg.mxu0
  %200 = vmatprep.subr.bf16.mxu0 %v116
  %201 = vmatpush1.bf16.msra.mxu0 %v113
  %202 = vmatprep.subr.bf16.mxu0 0
  %203 = vmatpush1.bf16.msra.mxu0 0
  %204 = vmatprep.subr.bf16.mxu0 0
  %205 = vmatpush1.bf16.msra.mxu0 0
  %206 = vmatprep.subr.bf16.mxu0 0
  %207 = vmatpush1.bf16.msra.mxu0 0
  %208 = vmatprep.subr.bf16.mxu0 0
  %209 = vmatpush1.bf16.msra.mxu0 0
  %210 = vmatprep.subr.bf16.mxu0 0
  %211 = vmatpush1.bf16.msra.mxu0 0
  %212 = vmatprep.subr.bf16.mxu0 0
  %213 = vmatpush1.bf16.msra.mxu0 0
  %214 = vmatprep.subr.bf16.mxu0 0
  %215 = vmatpush1.bf16.msra.mxu0 0
  %216 = vmatprep.subr.bf16.mxu0 0
  %217 = vmatpush1.bf16.msra.mxu0 0
  %218 = vmatprep.subr.bf16.mxu0 0
  %219 = vmatpush1.bf16.msra.mxu0 0
  %220 = vmatprep.subr.bf16.mxu0 0
  %221 = vmatpush1.bf16.msra.mxu0 0
  %222 = vmatprep.subr.bf16.mxu0 0
  %223 = vmatpush1.bf16.msra.mxu0 0
  %224 = vmatprep.subr.bf16.mxu0 0
  %225 = vmatpush1.bf16.msra.mxu0 0
  %226 = vmatprep.subr.bf16.mxu0 0
  %227 = vmatpush1.bf16.msra.mxu0 0
  %228 = vmatprep.subr.bf16.mxu0 0
  %229 = vmatpush1.bf16.msra.mxu0 0
  %230 = vmatprep.subr.bf16.mxu0 0
  %231 = vmatpush1.bf16.msra.mxu0 0
  %232 = vmatprep.mubr.bf16.mxu0 0
  %233 = vmatmul.mubr.bf16.gmra.mrb[0].mxu0 %v97
  %v234 = vpop.f32.mrb[0].mxu0
  %v235 = vadd.f32 0.0, %v234
  %v236 = vpop.f32.mrb[0].mxu0
  %v237 = vadd.f32 0.0, %v236
  %v238 = vpop.f32.mrb[0].mxu0
  %v239 = vpop.f32.mrb[0].mxu0
  %240 = vdwg.mxu0
  %v242 = vsel %vm95, %v47, 0
  %v245 = vsel %vm99, %v59, 0
  %v248 = vsel %vm99, %v67, 0
  %v251 = vsel %vm99, %v66, 0
  %v254 = vsel %vm99, %v68, 0
  %v257 = vsel %vm99, %v75, 0
  %v260 = vsel %vm99, %v76, 0
  %262 = vmatprep.subr.bf16.mxu0 %v248
  %263 = vmatpush1.bf16.msra.mxu0 %v245
  %264 = vmatprep.subr.bf16.mxu0 0
  %265 = vmatpush1.bf16.msra.mxu0 0
  %266 = vmatprep.subr.bf16.mxu0 0
  %267 = vmatpush1.bf16.msra.mxu0 0
  %268 = vmatprep.subr.bf16.mxu0 0
  %269 = vmatpush1.bf16.msra.mxu0 0
  %270 = vmatprep.subr.bf16.mxu0 0
  %271 = vmatpush1.bf16.msra.mxu0 0
  %272 = vmatprep.subr.bf16.mxu0 0
  %273 = vmatpush1.bf16.msra.mxu0 0
  %274 = vmatprep.subr.bf16.mxu0 0
  %275 = vmatpush1.bf16.msra.mxu0 0
  %276 = vmatprep.subr.bf16.mxu0 0
  %277 = vmatpush1.bf16.msra.mxu0 0
  %278 = vmatprep.subr.bf16.mxu0 0
  %279 = vmatpush1.bf16.msra.mxu0 0
  %280 = vmatprep.subr.bf16.mxu0 0
  %281 = vmatpush1.bf16.msra.mxu0 0
  %282 = vmatprep.subr.bf16.mxu0 0
  %283 = vmatpush1.bf16.msra.mxu0 0
  %284 = vmatprep.subr.bf16.mxu0 0
  %285 = vmatpush1.bf16.msra.mxu0 0
  %286 = vmatprep.subr.bf16.mxu0 0
  %287 = vmatpush1.bf16.msra.mxu0 0
  %288 = vmatprep.subr.bf16.mxu0 0
  %289 = vmatpush1.bf16.msra.mxu0 0
  %290 = vmatprep.subr.bf16.mxu0 0
  %291 = vmatpush1.bf16.msra.mxu0 0
  %292 = vmatprep.subr.bf16.mxu0 0
  %293 = vmatpush1.bf16.msra.mxu0 0
  %294 = vmatprep.mubr.bf16.mxu0 0
  %295 = vmatmul.mubr.bf16.gmra.mrb[0].mxu0 %v242
  %v296 = vpop.f32.mrb[0].mxu0
  %v297 = vadd.f32 %v153, %v296
  %v298 = vpop.f32.mrb[0].mxu0
  %v299 = vadd.f32 %v155, %v298
  %v300 = vpop.f32.mrb[0].mxu0
  %v301 = vpop.f32.mrb[0].mxu0
  %302 = vdwg.mxu0
  %303 = vmatprep.subr.bf16.mxu0 %v254
  %304 = vmatpush1.bf16.msra.mxu0 %v251
  %305 = vmatprep.subr.bf16.mxu0 0
  %306 = vmatpush1.bf16.msra.mxu0 0
  %307 = vmatprep.subr.bf16.mxu0 0
  %308 = vmatpush1.bf16.msra.mxu0 0
  %309 = vmatprep.subr.bf16.mxu0 0
  %310 = vmatpush1.bf16.msra.mxu0 0
  %311 = vmatprep.subr.bf16.mxu0 0
  %312 = vmatpush1.bf16.msra.mxu0 0
  %313 = vmatprep.subr.bf16.mxu0 0
  %314 = vmatpush1.bf16.msra.mxu0 0
  %315 = vmatprep.subr.bf16.mxu0 0
  %316 = vmatpush1.bf16.msra.mxu0 0
  %317 = vmatprep.subr.bf16.mxu0 0
  %318 = vmatpush1.bf16.msra.mxu0 0
  %319 = vmatprep.subr.bf16.mxu0 0
  %320 = vmatpush1.bf16.msra.mxu0 0
  %321 = vmatprep.subr.bf16.mxu0 0
  %322 = vmatpush1.bf16.msra.mxu0 0
  %323 = vmatprep.subr.bf16.mxu0 0
  %324 = vmatpush1.bf16.msra.mxu0 0
  %325 = vmatprep.subr.bf16.mxu0 0
  %326 = vmatpush1.bf16.msra.mxu0 0
  %327 = vmatprep.subr.bf16.mxu0 0
  %328 = vmatpush1.bf16.msra.mxu0 0
  %329 = vmatprep.subr.bf16.mxu0 0
  %330 = vmatpush1.bf16.msra.mxu0 0
  %331 = vmatprep.subr.bf16.mxu0 0
  %332 = vmatpush1.bf16.msra.mxu0 0
  %333 = vmatprep.subr.bf16.mxu0 0
  %334 = vmatpush1.bf16.msra.mxu0 0
  %335 = vmatprep.mubr.bf16.mxu0 0
  %336 = vmatmul.mubr.bf16.gmra.mrb[0].mxu0 %v242
  %v337 = vpop.f32.mrb[0].mxu0
  %v338 = vadd.f32 %v194, %v337
  %v339 = vpop.f32.mrb[0].mxu0
  %v340 = vadd.f32 %v196, %v339
  %v341 = vpop.f32.mrb[0].mxu0
  %v342 = vpop.f32.mrb[0].mxu0
  %343 = vdwg.mxu0
  %344 = vmatprep.subr.bf16.mxu0 %v260
  %345 = vmatpush1.bf16.msra.mxu0 %v257
  %346 = vmatprep.subr.bf16.mxu0 0
  %347 = vmatpush1.bf16.msra.mxu0 0
  %348 = vmatprep.subr.bf16.mxu0 0
  %349 = vmatpush1.bf16.msra.mxu0 0
  %350 = vmatprep.subr.bf16.mxu0 0
  %351 = vmatpush1.bf16.msra.mxu0 0
  %352 = vmatprep.subr.bf16.mxu0 0
  %353 = vmatpush1.bf16.msra.mxu0 0
  %354 = vmatprep.subr.bf16.mxu0 0
  %355 = vmatpush1.bf16.msra.mxu0 0
  %356 = vmatprep.subr.bf16.mxu0 0
  %357 = vmatpush1.bf16.msra.mxu0 0
  %358 = vmatprep.subr.bf16.mxu0 0
  %359 = vmatpush1.bf16.msra.mxu0 0
  %360 = vmatprep.subr.bf16.mxu0 0
  %361 = vmatpush1.bf16.msra.mxu0 0
  %362 = vmatprep.subr.bf16.mxu0 0
  %363 = vmatpush1.bf16.msra.mxu0 0
  %364 = vmatprep.subr.bf16.mxu0 0
  %365 = vmatpush1.bf16.msra.mxu0 0
  %366 = vmatprep.subr.bf16.mxu0 0
  %367 = vmatpush1.bf16.msra.mxu0 0
  %368 = vmatprep.subr.bf16.mxu0 0
  %369 = vmatpush1.bf16.msra.mxu0 0
  %370 = vmatprep.subr.bf16.mxu0 0
  %371 = vmatpush1.bf16.msra.mxu0 0
  %372 = vmatprep.subr.bf16.mxu0 0
  %373 = vmatpush1.bf16.msra.mxu0 0
  %374 = vmatprep.subr.bf16.mxu0 0
  %375 = vmatpush1.bf16.msra.mxu0 0
  %376 = vmatprep.mubr.bf16.mxu0 0
  %377 = vmatmul.mubr.bf16.gmra.mrb[0].mxu0 %v242
  %v378 = vpop.f32.mrb[0].mxu0
  %v379 = vadd.f32 %v235, %v378
  %v380 = vpop.f32.mrb[0].mxu0
  %v381 = vadd.f32 %v237, %v380
  %v382 = vpop.f32.mrb[0].mxu0
  %v383 = vpop.f32.mrb[0].mxu0
  %384 = vdwg.mxu0
  %s385 = scalar_lea.vmem %s1, 8
  %v386 = vld [vmem:[%s385] sm:$0xf]
  %387 = vrot.lane.b32.xlu0 %v59, 126
  %v388 = vpop.permute.xlu0 %387
  %389 = vrot.lane.b32.xlu0 %v67, 126
  %v390 = vpop.permute.xlu0 %389
  %391 = vrot.lane.b32.xlu0 %v66, 126
  %v392 = vpop.permute.xlu0 %391
  %393 = vrot.lane.b32.xlu0 %v68, 126
  %v394 = vpop.permute.xlu0 %393
  %395 = vrot.lane.b32.xlu0 %v75, 126
  %v396 = vpop.permute.xlu0 %395
  %397 = vrot.lane.b32.xlu0 %v76, 126
  %v398 = vpop.permute.xlu0 %397
  %vm399 = vcmask 1031168
  %v400 = vsel %vm399, %v388, %v390
  %v401 = vsel %vm399, %v390, %v392
  %v402 = vsel %vm399, %v392, %v394
  %v403 = vsel %vm399, %v394, %v396
  %v404 = vsel %vm399, %v396, %v398
  %v406 = vsel %vm95, %v386, 0
  %v409 = vsel %vm99, %v400, 0
  %v412 = vsel %vm99, %v401, 0
  %v415 = vsel %vm99, %v402, 0
  %v418 = vsel %vm99, %v403, 0
  %v421 = vsel %vm99, %v404, 0
  %v424 = vsel %vm99, %v398, 0
  %426 = vmatprep.subr.bf16.mxu0 %v412
  %427 = vmatpush1.bf16.msra.mxu0 %v409
  %428 = vmatprep.subr.bf16.mxu0 0
  %429 = vmatpush1.bf16.msra.mxu0 0
  %430 = vmatprep.subr.bf16.mxu0 0
  %431 = vmatpush1.bf16.msra.mxu0 0
  %432 = vmatprep.subr.bf16.mxu0 0
  %433 = vmatpush1.bf16.msra.mxu0 0
  %434 = vmatprep.subr.bf16.mxu0 0
  %435 = vmatpush1.bf16.msra.mxu0 0
  %436 = vmatprep.subr.bf16.mxu0 0
  %437 = vmatpush1.bf16.msra.mxu0 0
  %438 = vmatprep.subr.bf16.mxu0 0
  %439 = vmatpush1.bf16.msra.mxu0 0
  %440 = vmatprep.subr.bf16.mxu0 0
  %441 = vmatpush1.bf16.msra.mxu0 0
  %442 = vmatprep.subr.bf16.mxu0 0
  %443 = vmatpush1.bf16.msra.mxu0 0
  %444 = vmatprep.subr.bf16.mxu0 0
  %445 = vmatpush1.bf16.msra.mxu0 0
  %446 = vmatprep.subr.bf16.mxu0 0
  %447 = vmatpush1.bf16.msra.mxu0 0
  %448 = vmatprep.subr.bf16.mxu0 0
  %449 = vmatpush1.bf16.msra.mxu0 0
  %450 = vmatprep.subr.bf16.mxu0 0
  %451 = vmatpush1.bf16.msra.mxu0 0
  %452 = vmatprep.subr.bf16.mxu0 0
  %453 = vmatpush1.bf16.msra.mxu0 0
  %454 = vmatprep.subr.bf16.mxu0 0
  %455 = vmatpush1.bf16.msra.mxu0 0
  %456 = vmatprep.subr.bf16.mxu0 0
  %457 = vmatpush1.bf16.msra.mxu0 0
  %458 = vmatprep.mubr.bf16.mxu0 0
  %459 = vmatmul.mubr.bf16.gmra.mrb[0].mxu0 %v406
  %v460 = vpop.f32.mrb[0].mxu0
  %v461 = vadd.f32 0.0, %v460
  %v462 = vpop.f32.mrb[0].mxu0
  %v463 = vadd.f32 0.0, %v462
  %v464 = vpop.f32.mrb[0].mxu0
  %v465 = vpop.f32.mrb[0].mxu0
  %466 = vdwg.mxu0
  %467 = vmatprep.subr.bf16.mxu0 %v418
  %468 = vmatpush1.bf16.msra.mxu0 %v415
  %469 = vmatprep.subr.bf16.mxu0 0
  %470 = vmatpush1.bf16.msra.mxu0 0
  %471 = vmatprep.subr.bf16.mxu0 0
  %472 = vmatpush1.bf16.msra.mxu0 0
  %473 = vmatprep.subr.bf16.mxu0 0
  %474 = vmatpush1.bf16.msra.mxu0 0
  %475 = vmatprep.subr.bf16.mxu0 0
  %476 = vmatpush1.bf16.msra.mxu0 0
  %477 = vmatprep.subr.bf16.mxu0 0
  %478 = vmatpush1.bf16.msra.mxu0 0
  %479 = vmatprep.subr.bf16.mxu0 0
  %480 = vmatpush1.bf16.msra.mxu0 0
  %481 = vmatprep.subr.bf16.mxu0 0
  %482 = vmatpush1.bf16.msra.mxu0 0
  %483 = vmatprep.subr.bf16.mxu0 0
  %484 = vmatpush1.bf16.msra.mxu0 0
  %485 = vmatprep.subr.bf16.mxu0 0
  %486 = vmatpush1.bf16.msra.mxu0 0
  %487 = vmatprep.subr.bf16.mxu0 0
  %488 = vmatpush1.bf16.msra.mxu0 0
  %489 = vmatprep.subr.bf16.mxu0 0
  %490 = vmatpush1.bf16.msra.mxu0 0
  %491 = vmatprep.subr.bf16.mxu0 0
  %492 = vmatpush1.bf16.msra.mxu0 0
  %493 = vmatprep.subr.bf16.mxu0 0
  %494 = vmatpush1.bf16.msra.mxu0 0
  %495 = vmatprep.subr.bf16.mxu0 0
  %496 = vmatpush1.bf16.msra.mxu0 0
  %497 = vmatprep.subr.bf16.mxu0 0
  %498 = vmatpush1.bf16.msra.mxu0 0
  %499 = vmatprep.mubr.bf16.mxu0 0
  %500 = vmatmul.mubr.bf16.gmra.mrb[0].mxu0 %v406
  %v501 = vpop.f32.mrb[0].mxu0
  %v502 = vadd.f32 0.0, %v501
  %v503 = vpop.f32.mrb[0].mxu0
  %v504 = vadd.f32 0.0, %v503
  %v505 = vpop.f32.mrb[0].mxu0
  %v506 = vpop.f32.mrb[0].mxu0
  %507 = vdwg.mxu0
  %508 = vmatprep.subr.bf16.mxu0 %v424
  %509 = vmatpush1.bf16.msra.mxu0 %v421
  %510 = vmatprep.subr.bf16.mxu0 0
  %511 = vmatpush1.bf16.msra.mxu0 0
  %512 = vmatprep.subr.bf16.mxu0 0
  %513 = vmatpush1.bf16.msra.mxu0 0
  %514 = vmatprep.subr.bf16.mxu0 0
  %515 = vmatpush1.bf16.msra.mxu0 0
  %516 = vmatprep.subr.bf16.mxu0 0
  %517 = vmatpush1.bf16.msra.mxu0 0
  %518 = vmatprep.subr.bf16.mxu0 0
  %519 = vmatpush1.bf16.msra.mxu0 0
  %520 = vmatprep.subr.bf16.mxu0 0
  %521 = vmatpush1.bf16.msra.mxu0 0
  %522 = vmatprep.subr.bf16.mxu0 0
  %523 = vmatpush1.bf16.msra.mxu0 0
  %524 = vmatprep.subr.bf16.mxu0 0
  %525 = vmatpush1.bf16.msra.mxu0 0
  %526 = vmatprep.subr.bf16.mxu0 0
  %527 = vmatpush1.bf16.msra.mxu0 0
  %528 = vmatprep.subr.bf16.mxu0 0
  %529 = vmatpush1.bf16.msra.mxu0 0
  %530 = vmatprep.subr.bf16.mxu0 0
  %531 = vmatpush1.bf16.msra.mxu0 0
  %532 = vmatprep.subr.bf16.mxu0 0
  %533 = vmatpush1.bf16.msra.mxu0 0
  %534 = vmatprep.subr.bf16.mxu0 0
  %535 = vmatpush1.bf16.msra.mxu0 0
  %536 = vmatprep.subr.bf16.mxu0 0
  %537 = vmatpush1.bf16.msra.mxu0 0
  %538 = vmatprep.subr.bf16.mxu0 0
  %539 = vmatpush1.bf16.msra.mxu0 0
  %540 = vmatprep.mubr.bf16.mxu0 0
  %541 = vmatmul.mubr.bf16.gmra.mrb[0].mxu0 %v406
  %v542 = vpop.f32.mrb[0].mxu0
  %v543 = vadd.f32 0.0, %v542
  %v544 = vpop.f32.mrb[0].mxu0
  %v545 = vadd.f32 0.0, %v544
  %v546 = vpop.f32.mrb[0].mxu0
  %v547 = vpop.f32.mrb[0].mxu0
  %548 = vdwg.mxu0
  %v549 = vadd.f32 %v297, %v461
  %v550 = vadd.f32 %v299, %v463
  %v551 = vadd.f32 %v338, %v502
  %v552 = vadd.f32 %v340, %v504
  %v553 = vadd.f32 %v379, %v543
  %v554 = vadd.f32 %v381, %v545
  %s555 = scalar_lea.vmem %s1, 12
  %v556 = vld [vmem:[%s555] sm:$0xf]
  %557 = vrot.lane.b32.xlu0 %v59, 110
  %v558 = vpop.permute.xlu0 %557
  %559 = vrot.lane.b32.xlu0 %v67, 110
  %v560 = vpop.permute.xlu0 %559
  %561 = vrot.lane.b32.xlu0 %v66, 110
  %v562 = vpop.permute.xlu0 %561
  %563 = vrot.lane.b32.xlu0 %v68, 110
  %v564 = vpop.permute.xlu0 %563
  %565 = vrot.lane.b32.xlu0 %v75, 110
  %v566 = vpop.permute.xlu0 %565
  %567 = vrot.lane.b32.xlu0 %v76, 110
  %v568 = vpop.permute.xlu0 %567
  %vm569 = vcmask 900096
  %v570 = vsel %vm569, %v558, %v560
  %v571 = vsel %vm569, %v560, %v562
  %v572 = vsel %vm569, %v562, %v564
  %v573 = vsel %vm569, %v564, %v566
  %v574 = vsel %vm569, %v566, %v568
  %v576 = vsel %vm95, %v556, 0
  %v579 = vsel %vm99, %v570, 0
  %v582 = vsel %vm99, %v571, 0
  %v585 = vsel %vm99, %v572, 0
  %v588 = vsel %vm99, %v573, 0
  %v591 = vsel %vm99, %v574, 0
  %v594 = vsel %vm99, %v568, 0
  %596 = vmatprep.subr.bf16.mxu0 %v582
  %597 = vmatpush1.bf16.msra.mxu0 %v579
  %598 = vmatprep.subr.bf16.mxu0 0
  %599 = vmatpush1.bf16.msra.mxu0 0
  %600 = vmatprep.subr.bf16.mxu0 0
  %601 = vmatpush1.bf16.msra.mxu0 0
  %602 = vmatprep.subr.bf16.mxu0 0
  %603 = vmatpush1.bf16.msra.mxu0 0
  %604 = vmatprep.subr.bf16.mxu0 0
  %605 = vmatpush1.bf16.msra.mxu0 0
  %606 = vmatprep.subr.bf16.mxu0 0
  %607 = vmatpush1.bf16.msra.mxu0 0
  %608 = vmatprep.subr.bf16.mxu0 0
  %609 = vmatpush1.bf16.msra.mxu0 0
  %610 = vmatprep.subr.bf16.mxu0 0
  %611 = vmatpush1.bf16.msra.mxu0 0
  %612 = vmatprep.subr.bf16.mxu0 0
  %613 = vmatpush1.bf16.msra.mxu0 0
  %614 = vmatprep.subr.bf16.mxu0 0
  %615 = vmatpush1.bf16.msra.mxu0 0
  %616 = vmatprep.subr.bf16.mxu0 0
  %617 = vmatpush1.bf16.msra.mxu0 0
  %618 = vmatprep.subr.bf16.mxu0 0
  %619 = vmatpush1.bf16.msra.mxu0 0
  %620 = vmatprep.subr.bf16.mxu0 0
  %621 = vmatpush1.bf16.msra.mxu0 0
  %622 = vmatprep.subr.bf16.mxu0 0
  %623 = vmatpush1.bf16.msra.mxu0 0
  %624 = vmatprep.subr.bf16.mxu0 0
  %625 = vmatpush1.bf16.msra.mxu0 0
  %626 = vmatprep.subr.bf16.mxu0 0
  %627 = vmatpush1.bf16.msra.mxu0 0
  %628 = vmatprep.mubr.bf16.mxu0 0
  %629 = vmatmul.mubr.bf16.gmra.mrb[0].mxu0 %v576
  %v630 = vpop.f32.mrb[0].mxu0
  %v631 = vadd.f32 0.0, %v630
  %v632 = vpop.f32.mrb[0].mxu0
  %v633 = vadd.f32 0.0, %v632
  %v634 = vpop.f32.mrb[0].mxu0
  %v635 = vpop.f32.mrb[0].mxu0
  %636 = vdwg.mxu0
  %637 = vmatprep.subr.bf16.mxu0 %v588
  %638 = vmatpush1.bf16.msra.mxu0 %v585
  %639 = vmatprep.subr.bf16.mxu0 0
  %640 = vmatpush1.bf16.msra.mxu0 0
  %641 = vmatprep.subr.bf16.mxu0 0
  %642 = vmatpush1.bf16.msra.mxu0 0
  %643 = vmatprep.subr.bf16.mxu0 0
  %644 = vmatpush1.bf16.msra.mxu0 0
  %645 = vmatprep.subr.bf16.mxu0 0
  %646 = vmatpush1.bf16.msra.mxu0 0
  %647 = vmatprep.subr.bf16.mxu0 0
  %648 = vmatpush1.bf16.msra.mxu0 0
  %649 = vmatprep.subr.bf16.mxu0 0
  %650 = vmatpush1.bf16.msra.mxu0 0
  %651 = vmatprep.subr.bf16.mxu0 0
  %652 = vmatpush1.bf16.msra.mxu0 0
  %653 = vmatprep.subr.bf16.mxu0 0
  %654 = vmatpush1.bf16.msra.mxu0 0
  %655 = vmatprep.subr.bf16.mxu0 0
  %656 = vmatpush1.bf16.msra.mxu0 0
  %657 = vmatprep.subr.bf16.mxu0 0
  %658 = vmatpush1.bf16.msra.mxu0 0
  %659 = vmatprep.subr.bf16.mxu0 0
  %660 = vmatpush1.bf16.msra.mxu0 0
  %661 = vmatprep.subr.bf16.mxu0 0
  %662 = vmatpush1.bf16.msra.mxu0 0
  %663 = vmatprep.subr.bf16.mxu0 0
  %664 = vmatpush1.bf16.msra.mxu0 0
  %665 = vmatprep.subr.bf16.mxu0 0
  %666 = vmatpush1.bf16.msra.mxu0 0
  %667 = vmatprep.subr.bf16.mxu0 0
  %668 = vmatpush1.bf16.msra.mxu0 0
  %669 = vmatprep.mubr.bf16.mxu0 0
  %670 = vmatmul.mubr.bf16.gmra.mrb[0].mxu0 %v576
  %v671 = vpop.f32.mrb[0].mxu0
  %v672 = vadd.f32 0.0, %v671
  %v673 = vpop.f32.mrb[0].mxu0
  %v674 = vadd.f32 0.0, %v673
  %v675 = vpop.f32.mrb[0].mxu0
  %v676 = vpop.f32.mrb[0].mxu0
  %677 = vdwg.mxu0
  %678 = vmatprep.subr.bf16.mxu0 %v594
  %679 = vmatpush1.bf16.msra.mxu0 %v591
  %680 = vmatprep.subr.bf16.mxu0 0
  %681 = vmatpush1.bf16.msra.mxu0 0
  %682 = vmatprep.subr.bf16.mxu0 0
  %683 = vmatpush1.bf16.msra.mxu0 0
  %684 = vmatprep.subr.bf16.mxu0 0
  %685 = vmatpush1.bf16.msra.mxu0 0
  %686 = vmatprep.subr.bf16.mxu0 0
  %687 = vmatpush1.bf16.msra.mxu0 0
  %688 = vmatprep.subr.bf16.mxu0 0
  %689 = vmatpush1.bf16.msra.mxu0 0
  %690 = vmatprep.subr.bf16.mxu0 0
  %691 = vmatpush1.bf16.msra.mxu0 0
  %692 = vmatprep.subr.bf16.mxu0 0
  %693 = vmatpush1.bf16.msra.mxu0 0
  %694 = vmatprep.subr.bf16.mxu0 0
  %695 = vmatpush1.bf16.msra.mxu0 0
  %696 = vmatprep.subr.bf16.mxu0 0
  %697 = vmatpush1.bf16.msra.mxu0 0
  %698 = vmatprep.subr.bf16.mxu0 0
  %699 = vmatpush1.bf16.msra.mxu0 0
  %700 = vmatprep.subr.bf16.mxu0 0
  %701 = vmatpush1.bf16.msra.mxu0 0
  %702 = vmatprep.subr.bf16.mxu0 0
  %703 = vmatpush1.bf16.msra.mxu0 0
  %704 = vmatprep.subr.bf16.mxu0 0
  %705 = vmatpush1.bf16.msra.mxu0 0
  %706 = vmatprep.subr.bf16.mxu0 0
  %707 = vmatpush1.bf16.msra.mxu0 0
  %708 = vmatprep.subr.bf16.mxu0 0
  %709 = vmatpush1.bf16.msra.mxu0 0
  %710 = vmatprep.mubr.bf16.mxu0 0
  %711 = vmatmul.mubr.bf16.gmra.mrb[0].mxu0 %v576
  %v712 = vpop.f32.mrb[0].mxu0
  %v713 = vadd.f32 0.0, %v712
  %v714 = vpop.f32.mrb[0].mxu0
  %v715 = vadd.f32 0.0, %v714
  %v716 = vpop.f32.mrb[0].mxu0
  %v717 = vpop.f32.mrb[0].mxu0
  %718 = vdwg.mxu0
  %v719 = vadd.f32 %v549, %v631
  %v720 = vadd.f32 %v550, %v633
  %v721 = vadd.f32 %v551, %v672
  %v722 = vadd.f32 %v552, %v674
  %v723 = vadd.f32 %v553, %v713
  %v724 = vadd.f32 %v554, %v715
  %s725 = scalar_lea.vmem %s1, 16
  %v726 = vld [vmem:[%s725] sm:$0xf]
  %727 = vrot.lane.b32.xlu0 %v59, 109
  %v728 = vpop.permute.xlu0 %727
  %729 = vrot.lane.b32.xlu0 %v67, 109
  %v730 = vpop.permute.xlu0 %729
  %731 = vrot.lane.b32.xlu0 %v66, 109
  %v732 = vpop.permute.xlu0 %731
  %733 = vrot.lane.b32.xlu0 %v68, 109
  %v734 = vpop.permute.xlu0 %733
  %735 = vrot.lane.b32.xlu0 %v75, 109
  %v736 = vpop.permute.xlu0 %735
  %737 = vrot.lane.b32.xlu0 %v76, 109
  %v738 = vpop.permute.xlu0 %737
  %vm739 = vcmask 891904
  %v740 = vsel %vm739, %v728, %v730
  %v741 = vsel %vm739, %v730, %v732
  %v742 = vsel %vm739, %v732, %v734
  %v743 = vsel %vm739, %v734, %v736
  %v744 = vsel %vm739, %v736, %v738
  %v746 = vsel %vm95, %v726, 0
  %v749 = vsel %vm99, %v740, 0
  %v752 = vsel %vm99, %v741, 0
  %v755 = vsel %vm99, %v742, 0
  %v758 = vsel %vm99, %v743, 0
  %v761 = vsel %vm99, %v744, 0
  %v764 = vsel %vm99, %v738, 0
  %766 = vmatprep.subr.bf16.mxu0 %v752
  %767 = vmatpush1.bf16.msra.mxu0 %v749
  %768 = vmatprep.subr.bf16.mxu0 0
  %769 = vmatpush1.bf16.msra.mxu0 0
  %770 = vmatprep.subr.bf16.mxu0 0
  %771 = vmatpush1.bf16.msra.mxu0 0
  %772 = vmatprep.subr.bf16.mxu0 0
  %773 = vmatpush1.bf16.msra.mxu0 0
  %774 = vmatprep.subr.bf16.mxu0 0
  %775 = vmatpush1.bf16.msra.mxu0 0
  %776 = vmatprep.subr.bf16.mxu0 0
  %777 = vmatpush1.bf16.msra.mxu0 0
  %778 = vmatprep.subr.bf16.mxu0 0
  %779 = vmatpush1.bf16.msra.mxu0 0
  %780 = vmatprep.subr.bf16.mxu0 0
  %781 = vmatpush1.bf16.msra.mxu0 0
  %782 = vmatprep.subr.bf16.mxu0 0
  %783 = vmatpush1.bf16.msra.mxu0 0
  %784 = vmatprep.subr.bf16.mxu0 0
  %785 = vmatpush1.bf16.msra.mxu0 0
  %786 = vmatprep.subr.bf16.mxu0 0
  %787 = vmatpush1.bf16.msra.mxu0 0
  %788 = vmatprep.subr.bf16.mxu0 0
  %789 = vmatpush1.bf16.msra.mxu0 0
  %790 = vmatprep.subr.bf16.mxu0 0
  %791 = vmatpush1.bf16.msra.mxu0 0
  %792 = vmatprep.subr.bf16.mxu0 0
  %793 = vmatpush1.bf16.msra.mxu0 0
  %794 = vmatprep.subr.bf16.mxu0 0
  %795 = vmatpush1.bf16.msra.mxu0 0
  %796 = vmatprep.subr.bf16.mxu0 0
  %797 = vmatpush1.bf16.msra.mxu0 0
  %798 = vmatprep.mubr.bf16.mxu0 0
  %799 = vmatmul.mubr.bf16.gmra.mrb[0].mxu0 %v746
  %v800 = vpop.f32.mrb[0].mxu0
  %v801 = vadd.f32 0.0, %v800
  %v802 = vpop.f32.mrb[0].mxu0
  %v803 = vadd.f32 0.0, %v802
  %v804 = vpop.f32.mrb[0].mxu0
  %v805 = vpop.f32.mrb[0].mxu0
  %806 = vdwg.mxu0
  %807 = vmatprep.subr.bf16.mxu0 %v758
  %808 = vmatpush1.bf16.msra.mxu0 %v755
  %809 = vmatprep.subr.bf16.mxu0 0
  %810 = vmatpush1.bf16.msra.mxu0 0
  %811 = vmatprep.subr.bf16.mxu0 0
  %812 = vmatpush1.bf16.msra.mxu0 0
  %813 = vmatprep.subr.bf16.mxu0 0
  %814 = vmatpush1.bf16.msra.mxu0 0
  %815 = vmatprep.subr.bf16.mxu0 0
  %816 = vmatpush1.bf16.msra.mxu0 0
  %817 = vmatprep.subr.bf16.mxu0 0
  %818 = vmatpush1.bf16.msra.mxu0 0
  %819 = vmatprep.subr.bf16.mxu0 0
  %820 = vmatpush1.bf16.msra.mxu0 0
  %821 = vmatprep.subr.bf16.mxu0 0
  %822 = vmatpush1.bf16.msra.mxu0 0
  %823 = vmatprep.subr.bf16.mxu0 0
  %824 = vmatpush1.bf16.msra.mxu0 0
  %825 = vmatprep.subr.bf16.mxu0 0
  %826 = vmatpush1.bf16.msra.mxu0 0
  %827 = vmatprep.subr.bf16.mxu0 0
  %828 = vmatpush1.bf16.msra.mxu0 0
  %829 = vmatprep.subr.bf16.mxu0 0
  %830 = vmatpush1.bf16.msra.mxu0 0
  %831 = vmatprep.subr.bf16.mxu0 0
  %832 = vmatpush1.bf16.msra.mxu0 0
  %833 = vmatprep.subr.bf16.mxu0 0
  %834 = vmatpush1.bf16.msra.mxu0 0
  %835 = vmatprep.subr.bf16.mxu0 0
  %836 = vmatpush1.bf16.msra.mxu0 0
  %837 = vmatprep.subr.bf16.mxu0 0
  %838 = vmatpush1.bf16.msra.mxu0 0
  %839 = vmatprep.mubr.bf16.mxu0 0
  %840 = vmatmul.mubr.bf16.gmra.mrb[0].mxu0 %v746
  %v841 = vpop.f32.mrb[0].mxu0
  %v842 = vadd.f32 0.0, %v841
  %v843 = vpop.f32.mrb[0].mxu0
  %v844 = vadd.f32 0.0, %v843
  %v845 = vpop.f32.mrb[0].mxu0
  %v846 = vpop.f32.mrb[0].mxu0
  %847 = vdwg.mxu0
  %848 = vmatprep.subr.bf16.mxu0 %v764
  %849 = vmatpush1.bf16.msra.mxu0 %v761
  %850 = vmatprep.subr.bf16.mxu0 0
  %851 = vmatpush1.bf16.msra.mxu0 0
  %852 = vmatprep.subr.bf16.mxu0 0
  %853 = vmatpush1.bf16.msra.mxu0 0
  %854 = vmatprep.subr.bf16.mxu0 0
  %855 = vmatpush1.bf16.msra.mxu0 0
  %856 = vmatprep.subr.bf16.mxu0 0
  %857 = vmatpush1.bf16.msra.mxu0 0
  %858 = vmatprep.subr.bf16.mxu0 0
  %859 = vmatpush1.bf16.msra.mxu0 0
  %860 = vmatprep.subr.bf16.mxu0 0
  %861 = vmatpush1.bf16.msra.mxu0 0
  %862 = vmatprep.subr.bf16.mxu0 0
  %863 = vmatpush1.bf16.msra.mxu0 0
  %864 = vmatprep.subr.bf16.mxu0 0
  %865 = vmatpush1.bf16.msra.mxu0 0
  %866 = vmatprep.subr.bf16.mxu0 0
  %867 = vmatpush1.bf16.msra.mxu0 0
  %868 = vmatprep.subr.bf16.mxu0 0
  %869 = vmatpush1.bf16.msra.mxu0 0
  %870 = vmatprep.subr.bf16.mxu0 0
  %871 = vmatpush1.bf16.msra.mxu0 0
  %872 = vmatprep.subr.bf16.mxu0 0
  %873 = vmatpush1.bf16.msra.mxu0 0
  %874 = vmatprep.subr.bf16.mxu0 0
  %875 = vmatpush1.bf16.msra.mxu0 0
  %876 = vmatprep.subr.bf16.mxu0 0
  %877 = vmatpush1.bf16.msra.mxu0 0
  %878 = vmatprep.subr.bf16.mxu0 0
  %879 = vmatpush1.bf16.msra.mxu0 0
  %880 = vmatprep.mubr.bf16.mxu0 0
  %881 = vmatmul.mubr.bf16.gmra.mrb[0].mxu0 %v746
  %v882 = vpop.f32.mrb[0].mxu0
  %v883 = vadd.f32 0.0, %v882
  %v884 = vpop.f32.mrb[0].mxu0
  %v885 = vadd.f32 0.0, %v884
  %v886 = vpop.f32.mrb[0].mxu0
  %v887 = vpop.f32.mrb[0].mxu0
  %888 = vdwg.mxu0
  %v889 = vadd.f32 %v719, %v801
  %v890 = vadd.f32 %v720, %v803
  %v891 = vadd.f32 %v721, %v842
  %v892 = vadd.f32 %v722, %v844
  %v893 = vadd.f32 %v723, %v883
  %v894 = vadd.f32 %v724, %v885
  %s895 = scalar_lea.vmem %s1, 20
  %v896 = vld [vmem:[%s895] sm:$0xf]
  %897 = vrot.lane.b32.xlu0 %v59, 108
  %v898 = vpop.permute.xlu0 %897
  %899 = vrot.lane.b32.xlu0 %v67, 108
  %v900 = vpop.permute.xlu0 %899
  %901 = vrot.lane.b32.xlu0 %v66, 108
  %v902 = vpop.permute.xlu0 %901
  %903 = vrot.lane.b32.xlu0 %v68, 108
  %v904 = vpop.permute.xlu0 %903
  %905 = vrot.lane.b32.xlu0 %v75, 108
  %v906 = vpop.permute.xlu0 %905
  %907 = vrot.lane.b32.xlu0 %v76, 108
  %v908 = vpop.permute.xlu0 %907
  %vm909 = vcmask 883712
  %v910 = vsel %vm909, %v898, %v900
  %v911 = vsel %vm909, %v900, %v902
  %v912 = vsel %vm909, %v902, %v904
  %v913 = vsel %vm909, %v904, %v906
  %v914 = vsel %vm909, %v906, %v908
  %v916 = vsel %vm95, %v896, 0
  %v919 = vsel %vm99, %v910, 0
  %v922 = vsel %vm99, %v911, 0
  %v925 = vsel %vm99, %v912, 0
  %v928 = vsel %vm99, %v913, 0
  %v931 = vsel %vm99, %v914, 0
  %v934 = vsel %vm99, %v908, 0
  %936 = vmatprep.subr.bf16.mxu0 %v922
  %937 = vmatpush1.bf16.msra.mxu0 %v919
  %938 = vmatprep.subr.bf16.mxu0 0
  %939 = vmatpush1.bf16.msra.mxu0 0
  %940 = vmatprep.subr.bf16.mxu0 0
  %941 = vmatpush1.bf16.msra.mxu0 0
  %942 = vmatprep.subr.bf16.mxu0 0
  %943 = vmatpush1.bf16.msra.mxu0 0
  %944 = vmatprep.subr.bf16.mxu0 0
  %945 = vmatpush1.bf16.msra.mxu0 0
  %946 = vmatprep.subr.bf16.mxu0 0
  %947 = vmatpush1.bf16.msra.mxu0 0
  %948 = vmatprep.subr.bf16.mxu0 0
  %949 = vmatpush1.bf16.msra.mxu0 0
  %950 = vmatprep.subr.bf16.mxu0 0
  %951 = vmatpush1.bf16.msra.mxu0 0
  %952 = vmatprep.subr.bf16.mxu0 0
  %953 = vmatpush1.bf16.msra.mxu0 0
  %954 = vmatprep.subr.bf16.mxu0 0
  %955 = vmatpush1.bf16.msra.mxu0 0
  %956 = vmatprep.subr.bf16.mxu0 0
  %957 = vmatpush1.bf16.msra.mxu0 0
  %958 = vmatprep.subr.bf16.mxu0 0
  %959 = vmatpush1.bf16.msra.mxu0 0
  %960 = vmatprep.subr.bf16.mxu0 0
  %961 = vmatpush1.bf16.msra.mxu0 0
  %962 = vmatprep.subr.bf16.mxu0 0
  %963 = vmatpush1.bf16.msra.mxu0 0
  %964 = vmatprep.subr.bf16.mxu0 0
  %965 = vmatpush1.bf16.msra.mxu0 0
  %966 = vmatprep.subr.bf16.mxu0 0
  %967 = vmatpush1.bf16.msra.mxu0 0
  %968 = vmatprep.mubr.bf16.mxu0 0
  %969 = vmatmul.mubr.bf16.gmra.mrb[0].mxu0 %v916
  %v970 = vpop.f32.mrb[0].mxu0
  %v971 = vadd.f32 0.0, %v970
  %v972 = vpop.f32.mrb[0].mxu0
  %v973 = vadd.f32 0.0, %v972
  %v974 = vpop.f32.mrb[0].mxu0
  %v975 = vpop.f32.mrb[0].mxu0
  %976 = vdwg.mxu0
  %977 = vmatprep.subr.bf16.mxu0 %v928
  %978 = vmatpush1.bf16.msra.mxu0 %v925
  %979 = vmatprep.subr.bf16.mxu0 0
  %980 = vmatpush1.bf16.msra.mxu0 0
  %981 = vmatprep.subr.bf16.mxu0 0
  %982 = vmatpush1.bf16.msra.mxu0 0
  %983 = vmatprep.subr.bf16.mxu0 0
  %984 = vmatpush1.bf16.msra.mxu0 0
  %985 = vmatprep.subr.bf16.mxu0 0
  %986 = vmatpush1.bf16.msra.mxu0 0
  %987 = vmatprep.subr.bf16.mxu0 0
  %988 = vmatpush1.bf16.msra.mxu0 0
  %989 = vmatprep.subr.bf16.mxu0 0
  %990 = vmatpush1.bf16.msra.mxu0 0
  %991 = vmatprep.subr.bf16.mxu0 0
  %992 = vmatpush1.bf16.msra.mxu0 0
  %993 = vmatprep.subr.bf16.mxu0 0
  %994 = vmatpush1.bf16.msra.mxu0 0
  %995 = vmatprep.subr.bf16.mxu0 0
  %996 = vmatpush1.bf16.msra.mxu0 0
  %997 = vmatprep.subr.bf16.mxu0 0
  %998 = vmatpush1.bf16.msra.mxu0 0
  %999 = vmatprep.subr.bf16.mxu0 0
  %1000 = vmatpush1.bf16.msra.mxu0 0
  %1001 = vmatprep.subr.bf16.mxu0 0
  %1002 = vmatpush1.bf16.msra.mxu0 0
  %1003 = vmatprep.subr.bf16.mxu0 0
  %1004 = vmatpush1.bf16.msra.mxu0 0
  %1005 = vmatprep.subr.bf16.mxu0 0
  %1006 = vmatpush1.bf16.msra.mxu0 0
  %1007 = vmatprep.subr.bf16.mxu0 0
  %1008 = vmatpush1.bf16.msra.mxu0 0
  %1009 = vmatprep.mubr.bf16.mxu0 0
  %1010 = vmatmul.mubr.bf16.gmra.mrb[0].mxu0 %v916
  %v1011 = vpop.f32.mrb[0].mxu0
  %v1012 = vadd.f32 0.0, %v1011
  %v1013 = vpop.f32.mrb[0].mxu0
  %v1014 = vadd.f32 0.0, %v1013
  %v1015 = vpop.f32.mrb[0].mxu0
  %v1016 = vpop.f32.mrb[0].mxu0
  %1017 = vdwg.mxu0
  %1018 = vmatprep.subr.bf16.mxu0 %v934
  %1019 = vmatpush1.bf16.msra.mxu0 %v931
  %1020 = vmatprep.subr.bf16.mxu0 0
  %1021 = vmatpush1.bf16.msra.mxu0 0
  %1022 = vmatprep.subr.bf16.mxu0 0
  %1023 = vmatpush1.bf16.msra.mxu0 0
  %1024 = vmatprep.subr.bf16.mxu0 0
  %1025 = vmatpush1.bf16.msra.mxu0 0
  %1026 = vmatprep.subr.bf16.mxu0 0
  %1027 = vmatpush1.bf16.msra.mxu0 0
  %1028 = vmatprep.subr.bf16.mxu0 0
  %1029 = vmatpush1.bf16.msra.mxu0 0
  %1030 = vmatprep.subr.bf16.mxu0 0
  %1031 = vmatpush1.bf16.msra.mxu0 0
  %1032 = vmatprep.subr.bf16.mxu0 0
  %1033 = vmatpush1.bf16.msra.mxu0 0
  %1034 = vmatprep.subr.bf16.mxu0 0
  %1035 = vmatpush1.bf16.msra.mxu0 0
  %1036 = vmatprep.subr.bf16.mxu0 0
  %1037 = vmatpush1.bf16.msra.mxu0 0
  %1038 = vmatprep.subr.bf16.mxu0 0
  %1039 = vmatpush1.bf16.msra.mxu0 0
  %1040 = vmatprep.subr.bf16.mxu0 0
  %1041 = vmatpush1.bf16.msra.mxu0 0
  %1042 = vmatprep.subr.bf16.mxu0 0
  %1043 = vmatpush1.bf16.msra.mxu0 0
  %1044 = vmatprep.subr.bf16.mxu0 0
  %1045 = vmatpush1.bf16.msra.mxu0 0
  %1046 = vmatprep.subr.bf16.mxu0 0
  %1047 = vmatpush1.bf16.msra.mxu0 0
  %1048 = vmatprep.subr.bf16.mxu0 0
  %1049 = vmatpush1.bf16.msra.mxu0 0
  %1050 = vmatprep.mubr.bf16.mxu0 0
  %1051 = vmatmul.mubr.bf16.gmra.mrb[0].mxu0 %v916
  %v1052 = vpop.f32.mrb[0].mxu0
  %v1053 = vadd.f32 0.0, %v1052
  %v1054 = vpop.f32.mrb[0].mxu0
  %v1055 = vadd.f32 0.0, %v1054
  %v1056 = vpop.f32.mrb[0].mxu0
  %v1057 = vpop.f32.mrb[0].mxu0
  %1058 = vdwg.mxu0
  %v1059 = vadd.f32 %v889, %v971
  %v1060 = vadd.f32 %v890, %v973
  %v1061 = vadd.f32 %v891, %v1012
  %v1062 = vadd.f32 %v892, %v1014
  %v1063 = vadd.f32 %v893, %v1053
  %v1064 = vadd.f32 %v894, %v1055
  %s1065 = scalar_lea.vmem %s1, 24
  %v1066 = vld [vmem:[%s1065] sm:$0xf]
  %1067 = vrot.lane.b32.xlu0 %v59, 92
  %v1068 = vpop.permute.xlu0 %1067
  %1069 = vrot.lane.b32.xlu0 %v67, 92
  %v1070 = vpop.permute.xlu0 %1069
  %1071 = vrot.lane.b32.xlu0 %v66, 92
  %v1072 = vpop.permute.xlu0 %1071
  %1073 = vrot.lane.b32.xlu0 %v68, 92
  %v1074 = vpop.permute.xlu0 %1073
  %1075 = vrot.lane.b32.xlu0 %v75, 92
  %v1076 = vpop.permute.xlu0 %1075
  %1077 = vrot.lane.b32.xlu0 %v76, 92
  %v1078 = vpop.permute.xlu0 %1077
  %vm1079 = vcmask 752640
  %v1080 = vsel %vm1079, %v1068, %v1070
  %v1081 = vsel %vm1079, %v1070, %v1072
  %v1082 = vsel %vm1079, %v1072, %v1074
  %v1083 = vsel %vm1079, %v1074, %v1076
  %v1084 = vsel %vm1079, %v1076, %v1078
  %v1086 = vsel %vm95, %v1066, 0
  %v1089 = vsel %vm99, %v1080, 0
  %v1092 = vsel %vm99, %v1081, 0
  %v1095 = vsel %vm99, %v1082, 0
  %v1098 = vsel %vm99, %v1083, 0
  %v1101 = vsel %vm99, %v1084, 0
  %v1104 = vsel %vm99, %v1078, 0
  %1106 = vmatprep.subr.bf16.mxu0 %v1092
  %1107 = vmatpush1.bf16.msra.mxu0 %v1089
  %1108 = vmatprep.subr.bf16.mxu0 0
  %1109 = vmatpush1.bf16.msra.mxu0 0
  %1110 = vmatprep.subr.bf16.mxu0 0
  %1111 = vmatpush1.bf16.msra.mxu0 0
  %1112 = vmatprep.subr.bf16.mxu0 0
  %1113 = vmatpush1.bf16.msra.mxu0 0
  %1114 = vmatprep.subr.bf16.mxu0 0
  %1115 = vmatpush1.bf16.msra.mxu0 0
  %1116 = vmatprep.subr.bf16.mxu0 0
  %1117 = vmatpush1.bf16.msra.mxu0 0
  %1118 = vmatprep.subr.bf16.mxu0 0
  %1119 = vmatpush1.bf16.msra.mxu0 0
  %1120 = vmatprep.subr.bf16.mxu0 0
  %1121 = vmatpush1.bf16.msra.mxu0 0
  %1122 = vmatprep.subr.bf16.mxu0 0
  %1123 = vmatpush1.bf16.msra.mxu0 0
  %1124 = vmatprep.subr.bf16.mxu0 0
  %1125 = vmatpush1.bf16.msra.mxu0 0
  %1126 = vmatprep.subr.bf16.mxu0 0
  %1127 = vmatpush1.bf16.msra.mxu0 0
  %1128 = vmatprep.subr.bf16.mxu0 0
  %1129 = vmatpush1.bf16.msra.mxu0 0
  %1130 = vmatprep.subr.bf16.mxu0 0
  %1131 = vmatpush1.bf16.msra.mxu0 0
  %1132 = vmatprep.subr.bf16.mxu0 0
  %1133 = vmatpush1.bf16.msra.mxu0 0
  %1134 = vmatprep.subr.bf16.mxu0 0
  %1135 = vmatpush1.bf16.msra.mxu0 0
  %1136 = vmatprep.subr.bf16.mxu0 0
  %1137 = vmatpush1.bf16.msra.mxu0 0
  %1138 = vmatprep.mubr.bf16.mxu0 0
  %1139 = vmatmul.mubr.bf16.gmra.mrb[0].mxu0 %v1086
  %v1140 = vpop.f32.mrb[0].mxu0
  %v1141 = vadd.f32 0.0, %v1140
  %v1142 = vpop.f32.mrb[0].mxu0
  %v1143 = vadd.f32 0.0, %v1142
  %v1144 = vpop.f32.mrb[0].mxu0
  %v1145 = vpop.f32.mrb[0].mxu0
  %1146 = vdwg.mxu0
  %1147 = vmatprep.subr.bf16.mxu0 %v1098
  %1148 = vmatpush1.bf16.msra.mxu0 %v1095
  %1149 = vmatprep.subr.bf16.mxu0 0
  %1150 = vmatpush1.bf16.msra.mxu0 0
  %1151 = vmatprep.subr.bf16.mxu0 0
  %1152 = vmatpush1.bf16.msra.mxu0 0
  %1153 = vmatprep.subr.bf16.mxu0 0
  %1154 = vmatpush1.bf16.msra.mxu0 0
  %1155 = vmatprep.subr.bf16.mxu0 0
  %1156 = vmatpush1.bf16.msra.mxu0 0
  %1157 = vmatprep.subr.bf16.mxu0 0
  %1158 = vmatpush1.bf16.msra.mxu0 0
  %1159 = vmatprep.subr.bf16.mxu0 0
  %1160 = vmatpush1.bf16.msra.mxu0 0
  %1161 = vmatprep.subr.bf16.mxu0 0
  %1162 = vmatpush1.bf16.msra.mxu0 0
  %1163 = vmatprep.subr.bf16.mxu0 0
  %1164 = vmatpush1.bf16.msra.mxu0 0
  %1165 = vmatprep.subr.bf16.mxu0 0
  %1166 = vmatpush1.bf16.msra.mxu0 0
  %1167 = vmatprep.subr.bf16.mxu0 0
  %1168 = vmatpush1.bf16.msra.mxu0 0
  %1169 = vmatprep.subr.bf16.mxu0 0
  %1170 = vmatpush1.bf16.msra.mxu0 0
  %1171 = vmatprep.subr.bf16.mxu0 0
  %1172 = vmatpush1.bf16.msra.mxu0 0
  %1173 = vmatprep.subr.bf16.mxu0 0
  %1174 = vmatpush1.bf16.msra.mxu0 0
  %1175 = vmatprep.subr.bf16.mxu0 0
  %1176 = vmatpush1.bf16.msra.mxu0 0
  %1177 = vmatprep.subr.bf16.mxu0 0
  %1178 = vmatpush1.bf16.msra.mxu0 0
  %1179 = vmatprep.mubr.bf16.mxu0 0
  %1180 = vmatmul.mubr.bf16.gmra.mrb[0].mxu0 %v1086
  %v1181 = vpop.f32.mrb[0].mxu0
  %v1182 = vadd.f32 0.0, %v1181
  %v1183 = vpop.f32.mrb[0].mxu0
  %v1184 = vadd.f32 0.0, %v1183
  %v1185 = vpop.f32.mrb[0].mxu0
  %v1186 = vpop.f32.mrb[0].mxu0
  %1187 = vdwg.mxu0
  %1188 = vmatprep.subr.bf16.mxu0 %v1104
  %1189 = vmatpush1.bf16.msra.mxu0 %v1101
  %1190 = vmatprep.subr.bf16.mxu0 0
  %1191 = vmatpush1.bf16.msra.mxu0 0
  %1192 = vmatprep.subr.bf16.mxu0 0
  %1193 = vmatpush1.bf16.msra.mxu0 0
  %1194 = vmatprep.subr.bf16.mxu0 0
  %1195 = vmatpush1.bf16.msra.mxu0 0
  %1196 = vmatprep.subr.bf16.mxu0 0
  %1197 = vmatpush1.bf16.msra.mxu0 0
  %1198 = vmatprep.subr.bf16.mxu0 0
  %1199 = vmatpush1.bf16.msra.mxu0 0
  %1200 = vmatprep.subr.bf16.mxu0 0
  %1201 = vmatpush1.bf16.msra.mxu0 0
  %1202 = vmatprep.subr.bf16.mxu0 0
  %1203 = vmatpush1.bf16.msra.mxu0 0
  %1204 = vmatprep.subr.bf16.mxu0 0
  %1205 = vmatpush1.bf16.msra.mxu0 0
  %1206 = vmatprep.subr.bf16.mxu0 0
  %1207 = vmatpush1.bf16.msra.mxu0 0
  %1208 = vmatprep.subr.bf16.mxu0 0
  %1209 = vmatpush1.bf16.msra.mxu0 0
  %1210 = vmatprep.subr.bf16.mxu0 0
  %1211 = vmatpush1.bf16.msra.mxu0 0
  %1212 = vmatprep.subr.bf16.mxu0 0
  %1213 = vmatpush1.bf16.msra.mxu0 0
  %1214 = vmatprep.subr.bf16.mxu0 0
  %1215 = vmatpush1.bf16.msra.mxu0 0
  %1216 = vmatprep.subr.bf16.mxu0 0
  %1217 = vmatpush1.bf16.msra.mxu0 0
  %1218 = vmatprep.subr.bf16.mxu0 0
  %1219 = vmatpush1.bf16.msra.mxu0 0
  %1220 = vmatprep.mubr.bf16.mxu0 0
  %1221 = vmatmul.mubr.bf16.gmra.mrb[0].mxu0 %v1086
  %v1222 = vpop.f32.mrb[0].mxu0
  %v1223 = vadd.f32 0.0, %v1222
  %v1224 = vpop.f32.mrb[0].mxu0
  %v1225 = vadd.f32 0.0, %v1224
  %v1226 = vpop.f32.mrb[0].mxu0
  %v1227 = vpop.f32.mrb[0].mxu0
  %1228 = vdwg.mxu0
  %v1229 = vadd.f32 %v1059, %v1141
  %v1230 = vadd.f32 %v1060, %v1143
  %v1231 = vadd.f32 %v1061, %v1182
  %v1232 = vadd.f32 %v1062, %v1184
  %v1233 = vadd.f32 %v1063, %v1223
  %v1234 = vadd.f32 %v1064, %v1225
  %s1235 = scalar_lea.vmem %s1, 28
  %v1236 = vld [vmem:[%s1235] sm:$0xf]
  %1237 = vrot.lane.b32.xlu0 %v59, 91
  %v1238 = vpop.permute.xlu0 %1237
  %1239 = vrot.lane.b32.xlu0 %v67, 91
  %v1240 = vpop.permute.xlu0 %1239
  %1241 = vrot.lane.b32.xlu0 %v66, 91
  %v1242 = vpop.permute.xlu0 %1241
  %1243 = vrot.lane.b32.xlu0 %v68, 91
  %v1244 = vpop.permute.xlu0 %1243
  %1245 = vrot.lane.b32.xlu0 %v75, 91
  %v1246 = vpop.permute.xlu0 %1245
  %1247 = vrot.lane.b32.xlu0 %v76, 91
  %v1248 = vpop.permute.xlu0 %1247
  %vm1249 = vcmask 744448
  %v1250 = vsel %vm1249, %v1238, %v1240
  %v1251 = vsel %vm1249, %v1240, %v1242
  %v1252 = vsel %vm1249, %v1242, %v1244
  %v1253 = vsel %vm1249, %v1244, %v1246
  %v1254 = vsel %vm1249, %v1246, %v1248
  %v1256 = vsel %vm95, %v1236, 0
  %v1259 = vsel %vm99, %v1250, 0
  %v1262 = vsel %vm99, %v1251, 0
  %v1265 = vsel %vm99, %v1252, 0
  %v1268 = vsel %vm99, %v1253, 0
  %v1271 = vsel %vm99, %v1254, 0
  %v1274 = vsel %vm99, %v1248, 0
  %1276 = vmatprep.subr.bf16.mxu0 %v1262
  %1277 = vmatpush1.bf16.msra.mxu0 %v1259
  %1278 = vmatprep.subr.bf16.mxu0 0
  %1279 = vmatpush1.bf16.msra.mxu0 0
  %1280 = vmatprep.subr.bf16.mxu0 0
  %1281 = vmatpush1.bf16.msra.mxu0 0
  %1282 = vmatprep.subr.bf16.mxu0 0
  %1283 = vmatpush1.bf16.msra.mxu0 0
  %1284 = vmatprep.subr.bf16.mxu0 0
  %1285 = vmatpush1.bf16.msra.mxu0 0
  %1286 = vmatprep.subr.bf16.mxu0 0
  %1287 = vmatpush1.bf16.msra.mxu0 0
  %1288 = vmatprep.subr.bf16.mxu0 0
  %1289 = vmatpush1.bf16.msra.mxu0 0
  %1290 = vmatprep.subr.bf16.mxu0 0
  %1291 = vmatpush1.bf16.msra.mxu0 0
  %1292 = vmatprep.subr.bf16.mxu0 0
  %1293 = vmatpush1.bf16.msra.mxu0 0
  %1294 = vmatprep.subr.bf16.mxu0 0
  %1295 = vmatpush1.bf16.msra.mxu0 0
  %1296 = vmatprep.subr.bf16.mxu0 0
  %1297 = vmatpush1.bf16.msra.mxu0 0
  %1298 = vmatprep.subr.bf16.mxu0 0
  %1299 = vmatpush1.bf16.msra.mxu0 0
  %1300 = vmatprep.subr.bf16.mxu0 0
  %1301 = vmatpush1.bf16.msra.mxu0 0
  %1302 = vmatprep.subr.bf16.mxu0 0
  %1303 = vmatpush1.bf16.msra.mxu0 0
  %1304 = vmatprep.subr.bf16.mxu0 0
  %1305 = vmatpush1.bf16.msra.mxu0 0
  %1306 = vmatprep.subr.bf16.mxu0 0
  %1307 = vmatpush1.bf16.msra.mxu0 0
  %1308 = vmatprep.mubr.bf16.mxu0 0
  %1309 = vmatmul.mubr.bf16.gmra.mrb[0].mxu0 %v1256
  %v1310 = vpop.f32.mrb[0].mxu0
  %v1311 = vadd.f32 0.0, %v1310
  %v1312 = vpop.f32.mrb[0].mxu0
  %v1313 = vadd.f32 0.0, %v1312
  %v1314 = vpop.f32.mrb[0].mxu0
  %v1315 = vpop.f32.mrb[0].mxu0
  %1316 = vdwg.mxu0
  %1317 = vmatprep.subr.bf16.mxu0 %v1268
  %1318 = vmatpush1.bf16.msra.mxu0 %v1265
  %1319 = vmatprep.subr.bf16.mxu0 0
  %1320 = vmatpush1.bf16.msra.mxu0 0
  %1321 = vmatprep.subr.bf16.mxu0 0
  %1322 = vmatpush1.bf16.msra.mxu0 0
  %1323 = vmatprep.subr.bf16.mxu0 0
  %1324 = vmatpush1.bf16.msra.mxu0 0
  %1325 = vmatprep.subr.bf16.mxu0 0
  %1326 = vmatpush1.bf16.msra.mxu0 0
  %1327 = vmatprep.subr.bf16.mxu0 0
  %1328 = vmatpush1.bf16.msra.mxu0 0
  %1329 = vmatprep.subr.bf16.mxu0 0
  %1330 = vmatpush1.bf16.msra.mxu0 0
  %1331 = vmatprep.subr.bf16.mxu0 0
  %1332 = vmatpush1.bf16.msra.mxu0 0
  %1333 = vmatprep.subr.bf16.mxu0 0
  %1334 = vmatpush1.bf16.msra.mxu0 0
  %1335 = vmatprep.subr.bf16.mxu0 0
  %1336 = vmatpush1.bf16.msra.mxu0 0
  %1337 = vmatprep.subr.bf16.mxu0 0
  %1338 = vmatpush1.bf16.msra.mxu0 0
  %1339 = vmatprep.subr.bf16.mxu0 0
  %1340 = vmatpush1.bf16.msra.mxu0 0
  %1341 = vmatprep.subr.bf16.mxu0 0
  %1342 = vmatpush1.bf16.msra.mxu0 0
  %1343 = vmatprep.subr.bf16.mxu0 0
  %1344 = vmatpush1.bf16.msra.mxu0 0
  %1345 = vmatprep.subr.bf16.mxu0 0
  %1346 = vmatpush1.bf16.msra.mxu0 0
  %1347 = vmatprep.subr.bf16.mxu0 0
  %1348 = vmatpush1.bf16.msra.mxu0 0
  %1349 = vmatprep.mubr.bf16.mxu0 0
  %1350 = vmatmul.mubr.bf16.gmra.mrb[0].mxu0 %v1256
  %v1351 = vpop.f32.mrb[0].mxu0
  %v1352 = vadd.f32 0.0, %v1351
  %v1353 = vpop.f32.mrb[0].mxu0
  %v1354 = vadd.f32 0.0, %v1353
  %v1355 = vpop.f32.mrb[0].mxu0
  %v1356 = vpop.f32.mrb[0].mxu0
  %1357 = vdwg.mxu0
  %1358 = vmatprep.subr.bf16.mxu0 %v1274
  %1359 = vmatpush1.bf16.msra.mxu0 %v1271
  %1360 = vmatprep.subr.bf16.mxu0 0
  %1361 = vmatpush1.bf16.msra.mxu0 0
  %1362 = vmatprep.subr.bf16.mxu0 0
  %1363 = vmatpush1.bf16.msra.mxu0 0
  %1364 = vmatprep.subr.bf16.mxu0 0
  %1365 = vmatpush1.bf16.msra.mxu0 0
  %1366 = vmatprep.subr.bf16.mxu0 0
  %1367 = vmatpush1.bf16.msra.mxu0 0
  %1368 = vmatprep.subr.bf16.mxu0 0
  %1369 = vmatpush1.bf16.msra.mxu0 0
  %1370 = vmatprep.subr.bf16.mxu0 0
  %1371 = vmatpush1.bf16.msra.mxu0 0
  %1372 = vmatprep.subr.bf16.mxu0 0
  %1373 = vmatpush1.bf16.msra.mxu0 0
  %1374 = vmatprep.subr.bf16.mxu0 0
  %1375 = vmatpush1.bf16.msra.mxu0 0
  %1376 = vmatprep.subr.bf16.mxu0 0
  %1377 = vmatpush1.bf16.msra.mxu0 0
  %1378 = vmatprep.subr.bf16.mxu0 0
  %1379 = vmatpush1.bf16.msra.mxu0 0
  %1380 = vmatprep.subr.bf16.mxu0 0
  %1381 = vmatpush1.bf16.msra.mxu0 0
  %1382 = vmatprep.subr.bf16.mxu0 0
  %1383 = vmatpush1.bf16.msra.mxu0 0
  %1384 = vmatprep.subr.bf16.mxu0 0
  %1385 = vmatpush1.bf16.msra.mxu0 0
  %1386 = vmatprep.subr.bf16.mxu0 0
  %1387 = vmatpush1.bf16.msra.mxu0 0
  %1388 = vmatprep.subr.bf16.mxu0 0
  %1389 = vmatpush1.bf16.msra.mxu0 0
  %1390 = vmatprep.mubr.bf16.mxu0 0
  %1391 = vmatmul.mubr.bf16.gmra.mrb[0].mxu0 %v1256
  %v1392 = vpop.f32.mrb[0].mxu0
  %v1393 = vadd.f32 0.0, %v1392
  %v1394 = vpop.f32.mrb[0].mxu0
  %v1395 = vadd.f32 0.0, %v1394
  %v1396 = vpop.f32.mrb[0].mxu0
  %v1397 = vpop.f32.mrb[0].mxu0
  %1398 = vdwg.mxu0
  %v1399 = vadd.f32 %v1229, %v1311
  %v1400 = vadd.f32 %v1230, %v1313
  %v1401 = vadd.f32 %v1231, %v1352
  %v1402 = vadd.f32 %v1232, %v1354
  %v1403 = vadd.f32 %v1233, %v1393
  %v1404 = vadd.f32 %v1234, %v1395
  %s1405 = scalar_lea.vmem %s1, 32
  %v1406 = vld [vmem:[%s1405] sm:$0xf]
  %1407 = vrot.lane.b32.xlu0 %v59, 90
  %v1408 = vpop.permute.xlu0 %1407
  %1409 = vrot.lane.b32.xlu0 %v67, 90
  %v1410 = vpop.permute.xlu0 %1409
  %1411 = vrot.lane.b32.xlu0 %v66, 90
  %v1412 = vpop.permute.xlu0 %1411
  %1413 = vrot.lane.b32.xlu0 %v68, 90
  %v1414 = vpop.permute.xlu0 %1413
  %1415 = vrot.lane.b32.xlu0 %v75, 90
  %v1416 = vpop.permute.xlu0 %1415
  %1417 = vrot.lane.b32.xlu0 %v76, 90
  %v1418 = vpop.permute.xlu0 %1417
  %vm1419 = vcmask 736256
  %v1420 = vsel %vm1419, %v1408, %v1410
  %v1421 = vsel %vm1419, %v1410, %v1412
  %v1422 = vsel %vm1419, %v1412, %v1414
  %v1423 = vsel %vm1419, %v1414, %v1416
  %v1424 = vsel %vm1419, %v1416, %v1418
  %v1426 = vsel %vm95, %v1406, 0
  %v1429 = vsel %vm99, %v1420, 0
  %v1432 = vsel %vm99, %v1421, 0
  %v1435 = vsel %vm99, %v1422, 0
  %v1438 = vsel %vm99, %v1423, 0
  %v1441 = vsel %vm99, %v1424, 0
  %v1444 = vsel %vm99, %v1418, 0
  %1446 = vmatprep.subr.bf16.mxu0 %v1432
  %1447 = vmatpush1.bf16.msra.mxu0 %v1429
  %1448 = vmatprep.subr.bf16.mxu0 0
  %1449 = vmatpush1.bf16.msra.mxu0 0
  %1450 = vmatprep.subr.bf16.mxu0 0
  %1451 = vmatpush1.bf16.msra.mxu0 0
  %1452 = vmatprep.subr.bf16.mxu0 0
  %1453 = vmatpush1.bf16.msra.mxu0 0
  %1454 = vmatprep.subr.bf16.mxu0 0
  %1455 = vmatpush1.bf16.msra.mxu0 0
  %1456 = vmatprep.subr.bf16.mxu0 0
  %1457 = vmatpush1.bf16.msra.mxu0 0
  %1458 = vmatprep.subr.bf16.mxu0 0
  %1459 = vmatpush1.bf16.msra.mxu0 0
  %1460 = vmatprep.subr.bf16.mxu0 0
  %1461 = vmatpush1.bf16.msra.mxu0 0
  %1462 = vmatprep.subr.bf16.mxu0 0
  %1463 = vmatpush1.bf16.msra.mxu0 0
  %1464 = vmatprep.subr.bf16.mxu0 0
  %1465 = vmatpush1.bf16.msra.mxu0 0
  %1466 = vmatprep.subr.bf16.mxu0 0
  %1467 = vmatpush1.bf16.msra.mxu0 0
  %1468 = vmatprep.subr.bf16.mxu0 0
  %1469 = vmatpush1.bf16.msra.mxu0 0
  %1470 = vmatprep.subr.bf16.mxu0 0
  %1471 = vmatpush1.bf16.msra.mxu0 0
  %1472 = vmatprep.subr.bf16.mxu0 0
  %1473 = vmatpush1.bf16.msra.mxu0 0
  %1474 = vmatprep.subr.bf16.mxu0 0
  %1475 = vmatpush1.bf16.msra.mxu0 0
  %1476 = vmatprep.subr.bf16.mxu0 0
  %1477 = vmatpush1.bf16.msra.mxu0 0
  %1478 = vmatprep.mubr.bf16.mxu0 0
  %1479 = vmatmul.mubr.bf16.gmra.mrb[0].mxu0 %v1426
  %v1480 = vpop.f32.mrb[0].mxu0
  %v1481 = vadd.f32 0.0, %v1480
  %v1482 = vpop.f32.mrb[0].mxu0
  %v1483 = vadd.f32 0.0, %v1482
  %v1484 = vpop.f32.mrb[0].mxu0
  %v1485 = vpop.f32.mrb[0].mxu0
  %1486 = vdwg.mxu0
  %1487 = vmatprep.subr.bf16.mxu0 %v1438
  %1488 = vmatpush1.bf16.msra.mxu0 %v1435
  %1489 = vmatprep.subr.bf16.mxu0 0
  %1490 = vmatpush1.bf16.msra.mxu0 0
  %1491 = vmatprep.subr.bf16.mxu0 0
  %1492 = vmatpush1.bf16.msra.mxu0 0
  %1493 = vmatprep.subr.bf16.mxu0 0
  %1494 = vmatpush1.bf16.msra.mxu0 0
  %1495 = vmatprep.subr.bf16.mxu0 0
  %1496 = vmatpush1.bf16.msra.mxu0 0
  %1497 = vmatprep.subr.bf16.mxu0 0
  %1498 = vmatpush1.bf16.msra.mxu0 0
  %1499 = vmatprep.subr.bf16.mxu0 0
  %1500 = vmatpush1.bf16.msra.mxu0 0
  %1501 = vmatprep.subr.bf16.mxu0 0
  %1502 = vmatpush1.bf16.msra.mxu0 0
  %1503 = vmatprep.subr.bf16.mxu0 0
  %1504 = vmatpush1.bf16.msra.mxu0 0
  %1505 = vmatprep.subr.bf16.mxu0 0
  %1506 = vmatpush1.bf16.msra.mxu0 0
  %1507 = vmatprep.subr.bf16.mxu0 0
  %1508 = vmatpush1.bf16.msra.mxu0 0
  %1509 = vmatprep.subr.bf16.mxu0 0
  %1510 = vmatpush1.bf16.msra.mxu0 0
  %1511 = vmatprep.subr.bf16.mxu0 0
  %1512 = vmatpush1.bf16.msra.mxu0 0
  %1513 = vmatprep.subr.bf16.mxu0 0
  %1514 = vmatpush1.bf16.msra.mxu0 0
  %1515 = vmatprep.subr.bf16.mxu0 0
  %1516 = vmatpush1.bf16.msra.mxu0 0
  %1517 = vmatprep.subr.bf16.mxu0 0
  %1518 = vmatpush1.bf16.msra.mxu0 0
  %1519 = vmatprep.mubr.bf16.mxu0 0
  %1520 = vmatmul.mubr.bf16.gmra.mrb[0].mxu0 %v1426
  %v1521 = vpop.f32.mrb[0].mxu0
  %v1522 = vadd.f32 0.0, %v1521
  %v1523 = vpop.f32.mrb[0].mxu0
  %v1524 = vadd.f32 0.0, %v1523
  %v1525 = vpop.f32.mrb[0].mxu0
  %v1526 = vpop.f32.mrb[0].mxu0
  %1527 = vdwg.mxu0
  %1528 = vmatprep.subr.bf16.mxu0 %v1444
  %1529 = vmatpush1.bf16.msra.mxu0 %v1441
  %1530 = vmatprep.subr.bf16.mxu0 0
  %1531 = vmatpush1.bf16.msra.mxu0 0
  %1532 = vmatprep.subr.bf16.mxu0 0
  %1533 = vmatpush1.bf16.msra.mxu0 0
  %1534 = vmatprep.subr.bf16.mxu0 0
  %1535 = vmatpush1.bf16.msra.mxu0 0
  %1536 = vmatprep.subr.bf16.mxu0 0
  %1537 = vmatpush1.bf16.msra.mxu0 0
  %1538 = vmatprep.subr.bf16.mxu0 0
  %1539 = vmatpush1.bf16.msra.mxu0 0
  %1540 = vmatprep.subr.bf16.mxu0 0
  %1541 = vmatpush1.bf16.msra.mxu0 0
  %1542 = vmatprep.subr.bf16.mxu0 0
  %1543 = vmatpush1.bf16.msra.mxu0 0
  %1544 = vmatprep.subr.bf16.mxu0 0
  %1545 = vmatpush1.bf16.msra.mxu0 0
  %1546 = vmatprep.subr.bf16.mxu0 0
  %1547 = vmatpush1.bf16.msra.mxu0 0
  %1548 = vmatprep.subr.bf16.mxu0 0
  %1549 = vmatpush1.bf16.msra.mxu0 0
  %1550 = vmatprep.subr.bf16.mxu0 0
  %1551 = vmatpush1.bf16.msra.mxu0 0
  %1552 = vmatprep.subr.bf16.mxu0 0
  %1553 = vmatpush1.bf16.msra.mxu0 0
  %1554 = vmatprep.subr.bf16.mxu0 0
  %1555 = vmatpush1.bf16.msra.mxu0 0
  %1556 = vmatprep.subr.bf16.mxu0 0
  %1557 = vmatpush1.bf16.msra.mxu0 0
  %1558 = vmatprep.subr.bf16.mxu0 0
  %1559 = vmatpush1.bf16.msra.mxu0 0
  %1560 = vmatprep.mubr.bf16.mxu0 0
  %1561 = vmatmul.mubr.bf16.gmra.mrb[0].mxu0 %v1426
  %v1562 = vpop.f32.mrb[0].mxu0
  %v1563 = vadd.f32 0.0, %v1562
  %v1564 = vpop.f32.mrb[0].mxu0
  %v1565 = vadd.f32 0.0, %v1564
  %v1566 = vpop.f32.mrb[0].mxu0
  %v1567 = vpop.f32.mrb[0].mxu0
  %1568 = vdwg.mxu0
  %v1569 = vadd.f32 %v1399, %v1481
  %v1570 = vadd.f32 %v1400, %v1483
  %v1571 = vadd.f32 %v1401, %v1522
  %v1572 = vadd.f32 %v1402, %v1524
  %v1573 = vadd.f32 %v1403, %v1563
  %v1574 = vadd.f32 %v1404, %v1565
  %v1575 = vld [vmem:[%s4] sm:$0x3f]
  %v1577 = vlaneseq
  %v1578 = vshrl.u32 %v1577, 7
  %v1579 = vsub.s32 0, %v1578
  %v1580 = vrot.slane %v1575, %v1579
  %v1581 = vlaneseq
  %v1582 = vshrl.u32 %v1581, 7
  %v1583 = vsub.s32 1, %v1582
  %v1584 = vrot.slane %v1575, %v1583
  %v1585 = vlaneseq
  %v1586 = vshrl.u32 %v1585, 7
  %v1587 = vsub.s32 2, %v1586
  %v1588 = vrot.slane %v1575, %v1587
  %v1589 = vlaneseq
  %v1590 = vshrl.u32 %v1589, 7
  %v1591 = vsub.s32 3, %v1590
  %v1592 = vrot.slane %v1575, %v1591
  %v1593 = vlaneseq
  %v1594 = vshrl.u32 %v1593, 7
  %v1595 = vsub.s32 4, %v1594
  %v1596 = vrot.slane %v1575, %v1595
  %v1597 = vlaneseq
  %v1598 = vshrl.u32 %v1597, 7
  %v1599 = vsub.s32 5, %v1598
  %v1600 = vrot.slane %v1575, %v1599
  %v1607 = vmul.f32 %v1569, %v1580
  %v1608 = vmul.f32 %v1570, %v1584
  %v1609 = vmul.f32 %v1571, %v1588
  %v1610 = vmul.f32 %v1572, %v1592
  %v1611 = vmul.f32 %v1573, %v1596
  %v1612 = vmul.f32 %v1574, %v1600
  %v1613 = vadd.f32 %v1607, %v1608
  %v1614 = vadd.f32 %v1613, %v1609
  %v1615 = vadd.f32 %v1614, %v1610
  %v1616 = vadd.f32 %v1615, %v1611
  %vm1617 = vcmask 64512
  %v1618 = vsel %vm1617, %v1612, 0.0
  %v1619 = vadd.f32 %v1616, %v1618
  %1620 = vadd.xlane.f32.xlu0 %v1619
  %v1621 = vpop.xlane.xlu0 %1620
  %v1622 = vmul.f32 %v1621, 0.001953125
  %v1623 = vsub.f32 %v1569, %v1622
  %v1624 = vsub.f32 %v1570, %v1622
  %v1625 = vsub.f32 %v1571, %v1622
  %v1626 = vsub.f32 %v1572, %v1622
  %v1627 = vsub.f32 %v1573, %v1622
  %v1628 = vsub.f32 %v1574, %v1622
  %v1629 = vmul.f32 %v1623, %v1580
  %v1630 = vmul.f32 %v1624, %v1584
  %v1631 = vmul.f32 %v1625, %v1588
  %v1632 = vmul.f32 %v1626, %v1592
  %v1633 = vmul.f32 %v1627, %v1596
  %v1634 = vmul.f32 %v1628, %v1600
  %v1635 = vmul.f32 %v1629, %v1629
  %v1636 = vmul.f32 %v1630, %v1630
  %v1637 = vmul.f32 %v1631, %v1631
  %v1638 = vmul.f32 %v1632, %v1632
  %v1639 = vmul.f32 %v1633, %v1633
  %v1640 = vmul.f32 %v1634, %v1634
  %v1641 = vadd.f32 %v1635, %v1636
  %v1642 = vadd.f32 %v1641, %v1637
  %v1643 = vadd.f32 %v1642, %v1638
  %v1644 = vadd.f32 %v1643, %v1639
  %v1645 = vsel %vm1617, %v1640, 0.0
  %v1646 = vadd.f32 %v1644, %v1645
  %1647 = vadd.xlane.f32.xlu0 %v1646
  %v1648 = vpop.xlane.xlu0 %1647
  %v1649 = vmul.f32 %v1648, 0.001953125
  %v1650 = vld [vmem:[%s2] sm:$0xff]
  %v1651 = vadd.f32 %v1649, 1e-05
  %v1652 = vrsqrt.pop %v1651
  %v1653 = vmul.f32 %v1650, %v1652
  %v1654 = vld [vmem:[%s3] sm:$0xff]
  %v1655 = vmul.f32 %v1622, %v1653
  %v1656 = vsub.f32 %v1654, %v1655
  %1658 = vset.pattern.permute.xlu0 0
  %1659 = vperm.xlu0 %1658, %v1653
  %v1660 = vpop.permute.xlu0 %1659
  %v1662 = vmul.f32 %v1569, %v1660
  %v1663 = vmul.f32 %v1570, %v1660
  %v1664 = vmul.f32 %v1571, %v1660
  %v1665 = vmul.f32 %v1572, %v1660
  %v1666 = vmul.f32 %v1573, %v1660
  %v1667 = vmul.f32 %v1574, %v1660
  %1669 = vset.pattern.permute.xlu0 0
  %1670 = vperm.xlu0 %1669, %v1656
  %v1671 = vpop.permute.xlu0 %1670
  %v1673 = vadd.f32 %v1662, %v1671
  %v1674 = vadd.f32 %v1663, %v1671
  %v1675 = vadd.f32 %v1664, %v1671
  %v1676 = vadd.f32 %v1665, %v1671
  %v1677 = vadd.f32 %v1666, %v1671
  %v1678 = vadd.f32 %v1667, %v1671
  %v1679 = vmax.f32 %v1673, 0.0
  %v1680 = vmax.f32 %v1674, 0.0
  %v1681 = vmax.f32 %v1675, 0.0
  %v1682 = vmax.f32 %v1676, 0.0
  %v1683 = vmax.f32 %v1677, 0.0
  %v1684 = vmax.f32 %v1678, 0.0
  %1691 = vrot.lane.b32.xlu0 %v1679, 127
  %v1692 = vpop.permute.xlu0 %1691
  %1693 = vrot.lane.b32.xlu0 %v1680, 127
  %v1694 = vpop.permute.xlu0 %1693
  %1695 = vrot.lane.b32.xlu0 %v1681, 127
  %v1696 = vpop.permute.xlu0 %1695
  %1697 = vrot.lane.b32.xlu0 %v1682, 127
  %v1698 = vpop.permute.xlu0 %1697
  %1699 = vrot.lane.b32.xlu0 %v1683, 127
  %v1700 = vpop.permute.xlu0 %1699
  %1701 = vrot.lane.b32.xlu0 %v1684, 127
  %v1702 = vpop.permute.xlu0 %1701
  %vm1703 = vcmask 1039360
  %v1704 = vsel %vm1703, %v1692, %v1694
  %v1705 = vsel %vm1703, %v1694, %v1696
  %v1706 = vsel %vm1703, %v1696, %v1698
  %v1707 = vsel %vm1703, %v1698, %v1700
  %v1708 = vsel %vm1703, %v1700, %v1702
  %v1715 = vmax.f32 %v1679, %v1704
  %v1716 = vmax.f32 %v1680, %v1705
  %v1717 = vmax.f32 %v1681, %v1706
  %v1718 = vmax.f32 %v1682, %v1707
  %v1719 = vmax.f32 %v1683, %v1708
  %v1720 = vmax.f32 %v1684, %v1702
  %1727 = vrot.lane.b32.xlu0 %v1715, 110
  %v1728 = vpop.permute.xlu0 %1727
  %1729 = vrot.lane.b32.xlu0 %v1716, 110
  %v1730 = vpop.permute.xlu0 %1729
  %1731 = vrot.lane.b32.xlu0 %v1717, 110
  %v1732 = vpop.permute.xlu0 %1731
  %1733 = vrot.lane.b32.xlu0 %v1718, 110
  %v1734 = vpop.permute.xlu0 %1733
  %1735 = vrot.lane.b32.xlu0 %v1719, 110
  %v1736 = vpop.permute.xlu0 %1735
  %1737 = vrot.lane.b32.xlu0 %v1720, 110
  %v1738 = vpop.permute.xlu0 %1737
  %vm1739 = vcmask 900096
  %v1740 = vsel %vm1739, %v1728, %v1730
  %v1741 = vsel %vm1739, %v1730, %v1732
  %v1742 = vsel %vm1739, %v1732, %v1734
  %v1743 = vsel %vm1739, %v1734, %v1736
  %v1744 = vsel %vm1739, %v1736, %v1738
  %v1750 = vmax.f32 %v1715, %v1740
  %v1751 = vmax.f32 %v1716, %v1741
  %v1752 = vmax.f32 %v1717, %v1742
  %v1753 = vmax.f32 %v1718, %v1743
  %v1754 = vmax.f32 %v1719, %v1744
  %v1755 = vlaneseq
  %v1756 = vshrl.u32 %v1755, 7
  %v1757 = vadd.s32 %v1756, 8
  %v1758 = vadd.s32 %v1756, 16
  %v1759 = vadd.s32 %v1756, 24
  %v1760 = vadd.s32 %v1756, 32
  %v1761 = vadd.s32 %v1756, 40
  %v1762 = vadd.s32 %v1756, 48
  %v1763 = vadd.s32 %v1756, 56
  %v1764 = vadd.s32 %v1756, 64
  %v1765 = vadd.s32 %v1756, 72
  %v1766 = vadd.s32 %v1756, 80
  %v1767 = vadd.s32 %v1756, 88
  %v1768 = vadd.s32 %v1756, 96
  %v1769 = vadd.s32 %v1756, 104
  %v1770 = vadd.s32 %v1756, 112
  %v1771 = vadd.s32 %v1756, 120
  %v1772 = vadd.s32 %v1756, 128
  %v1773 = vadd.s32 %v1756, 136
  %v1774 = vadd.s32 %v1756, 144
  %v1775 = vadd.s32 %v1756, 152
  %v1776 = vadd.s32 %v1756, 160
  %v1777 = vadd.s32 %v1756, 168
  %v1778 = vadd.s32 %v1756, 176
  %v1779 = vadd.s32 %v1756, 184
  %v1780 = vadd.s32 %v1756, 192
  %v1781 = vadd.s32 %v1756, 200
  %v1782 = vadd.s32 %v1756, 208
  %v1783 = vadd.s32 %v1756, 216
  %v1784 = vadd.s32 %v1756, 224
  %v1785 = vadd.s32 %v1756, 232
  %v1786 = vadd.s32 %v1756, 240
  %v1787 = vadd.s32 %v1756, 248
  %v1788 = vadd.s32 %v1756, 256
  %v1789 = vadd.s32 %v1756, 264
  %v1790 = vadd.s32 %v1756, 272
  %v1791 = vadd.s32 %v1756, 280
  %v1792 = vadd.s32 %v1756, 288
  %v1793 = vadd.s32 %v1756, 296
  %v1794 = vadd.s32 %v1756, 304
  %v1795 = vadd.s32 %v1756, 312
  %v1796 = vadd.s32 %v1756, 320
  %v1797 = vadd.s32 %v1756, 328
  %v1798 = vadd.s32 %v1756, 336
  %v1799 = vadd.s32 %v1756, 344
  %v1800 = vadd.s32 %v1756, 352
  %v1801 = vadd.s32 %v1756, 360
  %v1802 = vadd.s32 %v1756, 368
  %v1803 = vadd.s32 %v1756, 376
  %v1804 = vadd.s32 %v1756, 384
  %v1805 = vadd.s32 %v1756, 392
  %v1806 = vadd.s32 %v1756, 400
  %v1807 = vadd.s32 %v1756, 408
  %v1808 = vadd.s32 %v1756, 416
  %v1809 = vadd.s32 %v1756, 424
  %v1810 = vadd.s32 %v1756, 432
  %v1811 = vadd.s32 %v1756, 440
  %v1812 = vadd.s32 %v1756, 448
  %v1813 = vadd.s32 %v1756, 456
  %v1814 = vadd.s32 %v1756, 464
  %v1815 = vadd.s32 %v1756, 472
  %v1816 = vadd.s32 %v1756, 480
  %v1817 = vadd.s32 %v1756, 488
  %v1818 = vadd.s32 %v1756, 496
  %v1819 = vadd.s32 %v1756, 504
  %v1820 = vadd.s32 %v1756, 512
  %v1821 = vadd.s32 %v1756, 520
  %v1822 = vadd.s32 %v1756, 528
  %v1823 = vadd.s32 %v1756, 536
  %v1824 = vadd.s32 %v1756, 544
  %v1825 = vadd.s32 %v1756, 552
  %v1826 = vadd.s32 %v1756, 560
  %v1827 = vadd.s32 %v1756, 568
  %v1828 = vadd.s32 %v1756, 576
  %v1829 = vadd.s32 %v1756, 584
  %v1830 = vadd.s32 %v1756, 592
  %v1831 = vadd.s32 %v1756, 600
  %v1832 = vadd.s32 %v1756, 608
  %v1833 = vadd.s32 %v1756, 616
  %v1834 = vadd.s32 %v1756, 624
  %v1835 = vld [vmem:[%s5] sm:$0x3]
  %v1836 = vlaneseq
  %v1837 = vshrl.u32 %v1836, 7
  %v1838 = vsub.s32 0, %v1837
  %v1839 = vrot.slane %v1835, %v1838
  %v1840 = vlaneseq
  %v1841 = vshrl.u32 %v1840, 7
  %v1842 = vsub.s32 1, %v1841
  %v1843 = vrot.slane %v1835, %v1842
  %vm1844 = vcmp.eq.s32.totalorder %v1756, %v1839
  %vm1845 = vcmp.eq.s32.totalorder %v1756, %v1843
  %vm1846 = vcmp.eq.s32.totalorder %v1757, %v1839
  %vm1847 = vcmp.eq.s32.totalorder %v1757, %v1843
  %vm1848 = vcmp.eq.s32.totalorder %v1758, %v1839
  %vm1849 = vcmp.eq.s32.totalorder %v1758, %v1843
  %vm1850 = vcmp.eq.s32.totalorder %v1759, %v1839
  %vm1851 = vcmp.eq.s32.totalorder %v1759, %v1843
  %vm1852 = vcmp.eq.s32.totalorder %v1760, %v1839
  %vm1853 = vcmp.eq.s32.totalorder %v1760, %v1843
  %vm1854 = vcmp.eq.s32.totalorder %v1761, %v1839
  %vm1855 = vcmp.eq.s32.totalorder %v1761, %v1843
  %vm1856 = vcmp.eq.s32.totalorder %v1762, %v1839
  %vm1857 = vcmp.eq.s32.totalorder %v1762, %v1843
  %vm1858 = vcmp.eq.s32.totalorder %v1763, %v1839
  %vm1859 = vcmp.eq.s32.totalorder %v1763, %v1843
  %vm1860 = vcmp.eq.s32.totalorder %v1764, %v1839
  %vm1861 = vcmp.eq.s32.totalorder %v1764, %v1843
  %vm1862 = vcmp.eq.s32.totalorder %v1765, %v1839
  %vm1863 = vcmp.eq.s32.totalorder %v1765, %v1843
  %vm1864 = vcmp.eq.s32.totalorder %v1766, %v1839
  %vm1865 = vcmp.eq.s32.totalorder %v1766, %v1843
  %vm1866 = vcmp.eq.s32.totalorder %v1767, %v1839
  %vm1867 = vcmp.eq.s32.totalorder %v1767, %v1843
  %vm1868 = vcmp.eq.s32.totalorder %v1768, %v1839
  %vm1869 = vcmp.eq.s32.totalorder %v1768, %v1843
  %vm1870 = vcmp.eq.s32.totalorder %v1769, %v1839
  %vm1871 = vcmp.eq.s32.totalorder %v1769, %v1843
  %vm1872 = vcmp.eq.s32.totalorder %v1770, %v1839
  %vm1873 = vcmp.eq.s32.totalorder %v1770, %v1843
  %vm1874 = vcmp.eq.s32.totalorder %v1771, %v1839
  %vm1875 = vcmp.eq.s32.totalorder %v1771, %v1843
  %vm1876 = vcmp.eq.s32.totalorder %v1772, %v1839
  %vm1877 = vcmp.eq.s32.totalorder %v1772, %v1843
  %vm1878 = vcmp.eq.s32.totalorder %v1773, %v1839
  %vm1879 = vcmp.eq.s32.totalorder %v1773, %v1843
  %vm1880 = vcmp.eq.s32.totalorder %v1774, %v1839
  %vm1881 = vcmp.eq.s32.totalorder %v1774, %v1843
  %vm1882 = vcmp.eq.s32.totalorder %v1775, %v1839
  %vm1883 = vcmp.eq.s32.totalorder %v1775, %v1843
  %vm1884 = vcmp.eq.s32.totalorder %v1776, %v1839
  %vm1885 = vcmp.eq.s32.totalorder %v1776, %v1843
  %vm1886 = vcmp.eq.s32.totalorder %v1777, %v1839
  %vm1887 = vcmp.eq.s32.totalorder %v1777, %v1843
  %vm1888 = vcmp.eq.s32.totalorder %v1778, %v1839
  %vm1889 = vcmp.eq.s32.totalorder %v1778, %v1843
  %vm1890 = vcmp.eq.s32.totalorder %v1779, %v1839
  %vm1891 = vcmp.eq.s32.totalorder %v1779, %v1843
  %vm1892 = vcmp.eq.s32.totalorder %v1780, %v1839
  %vm1893 = vcmp.eq.s32.totalorder %v1780, %v1843
  %vm1894 = vcmp.eq.s32.totalorder %v1781, %v1839
  %vm1895 = vcmp.eq.s32.totalorder %v1781, %v1843
  %vm1896 = vcmp.eq.s32.totalorder %v1782, %v1839
  %vm1897 = vcmp.eq.s32.totalorder %v1782, %v1843
  %vm1898 = vcmp.eq.s32.totalorder %v1783, %v1839
  %vm1899 = vcmp.eq.s32.totalorder %v1783, %v1843
  %vm1900 = vcmp.eq.s32.totalorder %v1784, %v1839
  %vm1901 = vcmp.eq.s32.totalorder %v1784, %v1843
  %vm1902 = vcmp.eq.s32.totalorder %v1785, %v1839
  %vm1903 = vcmp.eq.s32.totalorder %v1785, %v1843
  %vm1904 = vcmp.eq.s32.totalorder %v1786, %v1839
  %vm1905 = vcmp.eq.s32.totalorder %v1786, %v1843
  %vm1906 = vcmp.eq.s32.totalorder %v1787, %v1839
  %vm1907 = vcmp.eq.s32.totalorder %v1787, %v1843
  %vm1908 = vcmp.eq.s32.totalorder %v1788, %v1839
  %vm1909 = vcmp.eq.s32.totalorder %v1788, %v1843
  %vm1910 = vcmp.eq.s32.totalorder %v1789, %v1839
  %vm1911 = vcmp.eq.s32.totalorder %v1789, %v1843
  %vm1912 = vcmp.eq.s32.totalorder %v1790, %v1839
  %vm1913 = vcmp.eq.s32.totalorder %v1790, %v1843
  %vm1914 = vcmp.eq.s32.totalorder %v1791, %v1839
  %vm1915 = vcmp.eq.s32.totalorder %v1791, %v1843
  %vm1916 = vcmp.eq.s32.totalorder %v1792, %v1839
  %vm1917 = vcmp.eq.s32.totalorder %v1792, %v1843
  %vm1918 = vcmp.eq.s32.totalorder %v1793, %v1839
  %vm1919 = vcmp.eq.s32.totalorder %v1793, %v1843
  %vm1920 = vcmp.eq.s32.totalorder %v1794, %v1839
  %vm1921 = vcmp.eq.s32.totalorder %v1794, %v1843
  %vm1922 = vcmp.eq.s32.totalorder %v1795, %v1839
  %vm1923 = vcmp.eq.s32.totalorder %v1795, %v1843
  %vm1924 = vcmp.eq.s32.totalorder %v1796, %v1839
  %vm1925 = vcmp.eq.s32.totalorder %v1796, %v1843
  %vm1926 = vcmp.eq.s32.totalorder %v1797, %v1839
  %vm1927 = vcmp.eq.s32.totalorder %v1797, %v1843
  %vm1928 = vcmp.eq.s32.totalorder %v1798, %v1839
  %vm1929 = vcmp.eq.s32.totalorder %v1798, %v1843
  %vm1930 = vcmp.eq.s32.totalorder %v1799, %v1839
  %vm1931 = vcmp.eq.s32.totalorder %v1799, %v1843
  %vm1932 = vcmp.eq.s32.totalorder %v1800, %v1839
  %vm1933 = vcmp.eq.s32.totalorder %v1800, %v1843
  %vm1934 = vcmp.eq.s32.totalorder %v1801, %v1839
  %vm1935 = vcmp.eq.s32.totalorder %v1801, %v1843
  %vm1936 = vcmp.eq.s32.totalorder %v1802, %v1839
  %vm1937 = vcmp.eq.s32.totalorder %v1802, %v1843
  %vm1938 = vcmp.eq.s32.totalorder %v1803, %v1839
  %vm1939 = vcmp.eq.s32.totalorder %v1803, %v1843
  %vm1940 = vcmp.eq.s32.totalorder %v1804, %v1839
  %vm1941 = vcmp.eq.s32.totalorder %v1804, %v1843
  %vm1942 = vcmp.eq.s32.totalorder %v1805, %v1839
  %vm1943 = vcmp.eq.s32.totalorder %v1805, %v1843
  %vm1944 = vcmp.eq.s32.totalorder %v1806, %v1839
  %vm1945 = vcmp.eq.s32.totalorder %v1806, %v1843
  %vm1946 = vcmp.eq.s32.totalorder %v1807, %v1839
  %vm1947 = vcmp.eq.s32.totalorder %v1807, %v1843
  %vm1948 = vcmp.eq.s32.totalorder %v1808, %v1839
  %vm1949 = vcmp.eq.s32.totalorder %v1808, %v1843
  %vm1950 = vcmp.eq.s32.totalorder %v1809, %v1839
  %vm1951 = vcmp.eq.s32.totalorder %v1809, %v1843
  %vm1952 = vcmp.eq.s32.totalorder %v1810, %v1839
  %vm1953 = vcmp.eq.s32.totalorder %v1810, %v1843
  %vm1954 = vcmp.eq.s32.totalorder %v1811, %v1839
  %vm1955 = vcmp.eq.s32.totalorder %v1811, %v1843
  %vm1956 = vcmp.eq.s32.totalorder %v1812, %v1839
  %vm1957 = vcmp.eq.s32.totalorder %v1812, %v1843
  %vm1958 = vcmp.eq.s32.totalorder %v1813, %v1839
  %vm1959 = vcmp.eq.s32.totalorder %v1813, %v1843
  %vm1960 = vcmp.eq.s32.totalorder %v1814, %v1839
  %vm1961 = vcmp.eq.s32.totalorder %v1814, %v1843
  %vm1962 = vcmp.eq.s32.totalorder %v1815, %v1839
  %vm1963 = vcmp.eq.s32.totalorder %v1815, %v1843
  %vm1964 = vcmp.eq.s32.totalorder %v1816, %v1839
  %vm1965 = vcmp.eq.s32.totalorder %v1816, %v1843
  %vm1966 = vcmp.eq.s32.totalorder %v1817, %v1839
  %vm1967 = vcmp.eq.s32.totalorder %v1817, %v1843
  %vm1968 = vcmp.eq.s32.totalorder %v1818, %v1839
  %vm1969 = vcmp.eq.s32.totalorder %v1818, %v1843
  %vm1970 = vcmp.eq.s32.totalorder %v1819, %v1839
  %vm1971 = vcmp.eq.s32.totalorder %v1819, %v1843
  %vm1972 = vcmp.eq.s32.totalorder %v1820, %v1839
  %vm1973 = vcmp.eq.s32.totalorder %v1820, %v1843
  %vm1974 = vcmp.eq.s32.totalorder %v1821, %v1839
  %vm1975 = vcmp.eq.s32.totalorder %v1821, %v1843
  %vm1976 = vcmp.eq.s32.totalorder %v1822, %v1839
  %vm1977 = vcmp.eq.s32.totalorder %v1822, %v1843
  %vm1978 = vcmp.eq.s32.totalorder %v1823, %v1839
  %vm1979 = vcmp.eq.s32.totalorder %v1823, %v1843
  %vm1980 = vcmp.eq.s32.totalorder %v1824, %v1839
  %vm1981 = vcmp.eq.s32.totalorder %v1824, %v1843
  %vm1982 = vcmp.eq.s32.totalorder %v1825, %v1839
  %vm1983 = vcmp.eq.s32.totalorder %v1825, %v1843
  %vm1984 = vcmp.eq.s32.totalorder %v1826, %v1839
  %vm1985 = vcmp.eq.s32.totalorder %v1826, %v1843
  %vm1986 = vcmp.eq.s32.totalorder %v1827, %v1839
  %vm1987 = vcmp.eq.s32.totalorder %v1827, %v1843
  %vm1988 = vcmp.eq.s32.totalorder %v1828, %v1839
  %vm1989 = vcmp.eq.s32.totalorder %v1828, %v1843
  %vm1990 = vcmp.eq.s32.totalorder %v1829, %v1839
  %vm1991 = vcmp.eq.s32.totalorder %v1829, %v1843
  %vm1992 = vcmp.eq.s32.totalorder %v1830, %v1839
  %vm1993 = vcmp.eq.s32.totalorder %v1830, %v1843
  %vm1994 = vcmp.eq.s32.totalorder %v1831, %v1839
  %vm1995 = vcmp.eq.s32.totalorder %v1831, %v1843
  %vm1996 = vcmp.eq.s32.totalorder %v1832, %v1839
  %vm1997 = vcmp.eq.s32.totalorder %v1832, %v1843
  %vm1998 = vcmp.eq.s32.totalorder %v1833, %v1839
  %vm1999 = vcmp.eq.s32.totalorder %v1833, %v1843
  %vm2000 = vcmp.eq.s32.totalorder %v1834, %v1839
  %vm2001 = vcmp.eq.s32.totalorder %v1834, %v1843
  %v2002 = vsel %vm1844, 1, 0
  %v2003 = vsel %vm1845, 1, 0
  %v2004 = vsel %vm1846, 1, 0
  %v2005 = vsel %vm1847, 1, 0
  %v2006 = vsel %vm1848, 1, 0
  %v2007 = vsel %vm1849, 1, 0
  %v2008 = vsel %vm1850, 1, 0
  %v2009 = vsel %vm1851, 1, 0
  %v2010 = vsel %vm1852, 1, 0
  %v2011 = vsel %vm1853, 1, 0
  %v2012 = vsel %vm1854, 1, 0
  %v2013 = vsel %vm1855, 1, 0
  %v2014 = vsel %vm1856, 1, 0
  %v2015 = vsel %vm1857, 1, 0
  %v2016 = vsel %vm1858, 1, 0
  %v2017 = vsel %vm1859, 1, 0
  %v2018 = vsel %vm1860, 1, 0
  %v2019 = vsel %vm1861, 1, 0
  %v2020 = vsel %vm1862, 1, 0
  %v2021 = vsel %vm1863, 1, 0
  %v2022 = vsel %vm1864, 1, 0
  %v2023 = vsel %vm1865, 1, 0
  %v2024 = vsel %vm1866, 1, 0
  %v2025 = vsel %vm1867, 1, 0
  %v2026 = vsel %vm1868, 1, 0
  %v2027 = vsel %vm1869, 1, 0
  %v2028 = vsel %vm1870, 1, 0
  %v2029 = vsel %vm1871, 1, 0
  %v2030 = vsel %vm1872, 1, 0
  %v2031 = vsel %vm1873, 1, 0
  %v2032 = vsel %vm1874, 1, 0
  %v2033 = vsel %vm1875, 1, 0
  %v2034 = vsel %vm1876, 1, 0
  %v2035 = vsel %vm1877, 1, 0
  %v2036 = vsel %vm1878, 1, 0
  %v2037 = vsel %vm1879, 1, 0
  %v2038 = vsel %vm1880, 1, 0
  %v2039 = vsel %vm1881, 1, 0
  %v2040 = vsel %vm1882, 1, 0
  %v2041 = vsel %vm1883, 1, 0
  %v2042 = vsel %vm1884, 1, 0
  %v2043 = vsel %vm1885, 1, 0
  %v2044 = vsel %vm1886, 1, 0
  %v2045 = vsel %vm1887, 1, 0
  %v2046 = vsel %vm1888, 1, 0
  %v2047 = vsel %vm1889, 1, 0
  %v2048 = vsel %vm1890, 1, 0
  %v2049 = vsel %vm1891, 1, 0
  %v2050 = vsel %vm1892, 1, 0
  %v2051 = vsel %vm1893, 1, 0
  %v2052 = vsel %vm1894, 1, 0
  %v2053 = vsel %vm1895, 1, 0
  %v2054 = vsel %vm1896, 1, 0
  %v2055 = vsel %vm1897, 1, 0
  %v2056 = vsel %vm1898, 1, 0
  %v2057 = vsel %vm1899, 1, 0
  %v2058 = vsel %vm1900, 1, 0
  %v2059 = vsel %vm1901, 1, 0
  %v2060 = vsel %vm1902, 1, 0
  %v2061 = vsel %vm1903, 1, 0
  %v2062 = vsel %vm1904, 1, 0
  %v2063 = vsel %vm1905, 1, 0
  %v2064 = vsel %vm1906, 1, 0
  %v2065 = vsel %vm1907, 1, 0
  %v2066 = vsel %vm1908, 1, 0
  %v2067 = vsel %vm1909, 1, 0
  %v2068 = vsel %vm1910, 1, 0
  %v2069 = vsel %vm1911, 1, 0
  %v2070 = vsel %vm1912, 1, 0
  %v2071 = vsel %vm1913, 1, 0
  %v2072 = vsel %vm1914, 1, 0
  %v2073 = vsel %vm1915, 1, 0
  %v2074 = vsel %vm1916, 1, 0
  %v2075 = vsel %vm1917, 1, 0
  %v2076 = vsel %vm1918, 1, 0
  %v2077 = vsel %vm1919, 1, 0
  %v2078 = vsel %vm1920, 1, 0
  %v2079 = vsel %vm1921, 1, 0
  %v2080 = vsel %vm1922, 1, 0
  %v2081 = vsel %vm1923, 1, 0
  %v2082 = vsel %vm1924, 1, 0
  %v2083 = vsel %vm1925, 1, 0
  %v2084 = vsel %vm1926, 1, 0
  %v2085 = vsel %vm1927, 1, 0
  %v2086 = vsel %vm1928, 1, 0
  %v2087 = vsel %vm1929, 1, 0
  %v2088 = vsel %vm1930, 1, 0
  %v2089 = vsel %vm1931, 1, 0
  %v2090 = vsel %vm1932, 1, 0
  %v2091 = vsel %vm1933, 1, 0
  %v2092 = vsel %vm1934, 1, 0
  %v2093 = vsel %vm1935, 1, 0
  %v2094 = vsel %vm1936, 1, 0
  %v2095 = vsel %vm1937, 1, 0
  %v2096 = vsel %vm1938, 1, 0
  %v2097 = vsel %vm1939, 1, 0
  %v2098 = vsel %vm1940, 1, 0
  %v2099 = vsel %vm1941, 1, 0
  %v2100 = vsel %vm1942, 1, 0
  %v2101 = vsel %vm1943, 1, 0
  %v2102 = vsel %vm1944, 1, 0
  %v2103 = vsel %vm1945, 1, 0
  %v2104 = vsel %vm1946, 1, 0
  %v2105 = vsel %vm1947, 1, 0
  %v2106 = vsel %vm1948, 1, 0
  %v2107 = vsel %vm1949, 1, 0
  %v2108 = vsel %vm1950, 1, 0
  %v2109 = vsel %vm1951, 1, 0
  %v2110 = vsel %vm1952, 1, 0
  %v2111 = vsel %vm1953, 1, 0
  %v2112 = vsel %vm1954, 1, 0
  %v2113 = vsel %vm1955, 1, 0
  %v2114 = vsel %vm1956, 1, 0
  %v2115 = vsel %vm1957, 1, 0
  %v2116 = vsel %vm1958, 1, 0
  %v2117 = vsel %vm1959, 1, 0
  %v2118 = vsel %vm1960, 1, 0
  %v2119 = vsel %vm1961, 1, 0
  %v2120 = vsel %vm1962, 1, 0
  %v2121 = vsel %vm1963, 1, 0
  %v2122 = vsel %vm1964, 1, 0
  %v2123 = vsel %vm1965, 1, 0
  %v2124 = vsel %vm1966, 1, 0
  %v2125 = vsel %vm1967, 1, 0
  %v2126 = vsel %vm1968, 1, 0
  %v2127 = vsel %vm1969, 1, 0
  %v2128 = vsel %vm1970, 1, 0
  %v2129 = vsel %vm1971, 1, 0
  %v2130 = vsel %vm1972, 1, 0
  %v2131 = vsel %vm1973, 1, 0
  %v2132 = vsel %vm1974, 1, 0
  %v2133 = vsel %vm1975, 1, 0
  %v2134 = vsel %vm1976, 1, 0
  %v2135 = vsel %vm1977, 1, 0
  %v2136 = vsel %vm1978, 1, 0
  %v2137 = vsel %vm1979, 1, 0
  %v2138 = vsel %vm1980, 1, 0
  %v2139 = vsel %vm1981, 1, 0
  %v2140 = vsel %vm1982, 1, 0
  %v2141 = vsel %vm1983, 1, 0
  %v2142 = vsel %vm1984, 1, 0
  %v2143 = vsel %vm1985, 1, 0
  %v2144 = vsel %vm1986, 1, 0
  %v2145 = vsel %vm1987, 1, 0
  %v2146 = vsel %vm1988, 1, 0
  %v2147 = vsel %vm1989, 1, 0
  %v2148 = vsel %vm1990, 1, 0
  %v2149 = vsel %vm1991, 1, 0
  %v2150 = vsel %vm1992, 1, 0
  %v2151 = vsel %vm1993, 1, 0
  %v2152 = vsel %vm1994, 1, 0
  %v2153 = vsel %vm1995, 1, 0
  %v2154 = vsel %vm1996, 1, 0
  %v2155 = vsel %vm1997, 1, 0
  %v2156 = vsel %vm1998, 1, 0
  %v2157 = vsel %vm1999, 1, 0
  %v2158 = vsel %vm2000, 1, 0
  %v2159 = vsel %vm2001, 1, 0
  %v2160 = vcvt.s32.f32 %v2002
  %v2161 = vcvt.s32.f32 %v2003
  %v2162 = vcvt.s32.f32 %v2004
  %v2163 = vcvt.s32.f32 %v2005
  %v2164 = vcvt.s32.f32 %v2006
  %v2165 = vcvt.s32.f32 %v2007
  %v2166 = vcvt.s32.f32 %v2008
  %v2167 = vcvt.s32.f32 %v2009
  %v2168 = vcvt.s32.f32 %v2010
  %v2169 = vcvt.s32.f32 %v2011
  %v2170 = vcvt.s32.f32 %v2012
  %v2171 = vcvt.s32.f32 %v2013
  %v2172 = vcvt.s32.f32 %v2014
  %v2173 = vcvt.s32.f32 %v2015
  %v2174 = vcvt.s32.f32 %v2016
  %v2175 = vcvt.s32.f32 %v2017
  %v2176 = vcvt.s32.f32 %v2018
  %v2177 = vcvt.s32.f32 %v2019
  %v2178 = vcvt.s32.f32 %v2020
  %v2179 = vcvt.s32.f32 %v2021
  %v2180 = vcvt.s32.f32 %v2022
  %v2181 = vcvt.s32.f32 %v2023
  %v2182 = vcvt.s32.f32 %v2024
  %v2183 = vcvt.s32.f32 %v2025
  %v2184 = vcvt.s32.f32 %v2026
  %v2185 = vcvt.s32.f32 %v2027
  %v2186 = vcvt.s32.f32 %v2028
  %v2187 = vcvt.s32.f32 %v2029
  %v2188 = vcvt.s32.f32 %v2030
  %v2189 = vcvt.s32.f32 %v2031
  %v2190 = vcvt.s32.f32 %v2032
  %v2191 = vcvt.s32.f32 %v2033
  %v2192 = vcvt.s32.f32 %v2034
  %v2193 = vcvt.s32.f32 %v2035
  %v2194 = vcvt.s32.f32 %v2036
  %v2195 = vcvt.s32.f32 %v2037
  %v2196 = vcvt.s32.f32 %v2038
  %v2197 = vcvt.s32.f32 %v2039
  %v2198 = vcvt.s32.f32 %v2040
  %v2199 = vcvt.s32.f32 %v2041
  %v2200 = vcvt.s32.f32 %v2042
  %v2201 = vcvt.s32.f32 %v2043
  %v2202 = vcvt.s32.f32 %v2044
  %v2203 = vcvt.s32.f32 %v2045
  %v2204 = vcvt.s32.f32 %v2046
  %v2205 = vcvt.s32.f32 %v2047
  %v2206 = vcvt.s32.f32 %v2048
  %v2207 = vcvt.s32.f32 %v2049
  %v2208 = vcvt.s32.f32 %v2050
  %v2209 = vcvt.s32.f32 %v2051
  %v2210 = vcvt.s32.f32 %v2052
  %v2211 = vcvt.s32.f32 %v2053
  %v2212 = vcvt.s32.f32 %v2054
  %v2213 = vcvt.s32.f32 %v2055
  %v2214 = vcvt.s32.f32 %v2056
  %v2215 = vcvt.s32.f32 %v2057
  %v2216 = vcvt.s32.f32 %v2058
  %v2217 = vcvt.s32.f32 %v2059
  %v2218 = vcvt.s32.f32 %v2060
  %v2219 = vcvt.s32.f32 %v2061
  %v2220 = vcvt.s32.f32 %v2062
  %v2221 = vcvt.s32.f32 %v2063
  %v2222 = vcvt.s32.f32 %v2064
  %v2223 = vcvt.s32.f32 %v2065
  %v2224 = vcvt.s32.f32 %v2066
  %v2225 = vcvt.s32.f32 %v2067
  %v2226 = vcvt.s32.f32 %v2068
  %v2227 = vcvt.s32.f32 %v2069
  %v2228 = vcvt.s32.f32 %v2070
  %v2229 = vcvt.s32.f32 %v2071
  %v2230 = vcvt.s32.f32 %v2072
  %v2231 = vcvt.s32.f32 %v2073
  %v2232 = vcvt.s32.f32 %v2074
  %v2233 = vcvt.s32.f32 %v2075
  %v2234 = vcvt.s32.f32 %v2076
  %v2235 = vcvt.s32.f32 %v2077
  %v2236 = vcvt.s32.f32 %v2078
  %v2237 = vcvt.s32.f32 %v2079
  %v2238 = vcvt.s32.f32 %v2080
  %v2239 = vcvt.s32.f32 %v2081
  %v2240 = vcvt.s32.f32 %v2082
  %v2241 = vcvt.s32.f32 %v2083
  %v2242 = vcvt.s32.f32 %v2084
  %v2243 = vcvt.s32.f32 %v2085
  %v2244 = vcvt.s32.f32 %v2086
  %v2245 = vcvt.s32.f32 %v2087
  %v2246 = vcvt.s32.f32 %v2088
  %v2247 = vcvt.s32.f32 %v2089
  %v2248 = vcvt.s32.f32 %v2090
  %v2249 = vcvt.s32.f32 %v2091
  %v2250 = vcvt.s32.f32 %v2092
  %v2251 = vcvt.s32.f32 %v2093
  %v2252 = vcvt.s32.f32 %v2094
  %v2253 = vcvt.s32.f32 %v2095
  %v2254 = vcvt.s32.f32 %v2096
  %v2255 = vcvt.s32.f32 %v2097
  %v2256 = vcvt.s32.f32 %v2098
  %v2257 = vcvt.s32.f32 %v2099
  %v2258 = vcvt.s32.f32 %v2100
  %v2259 = vcvt.s32.f32 %v2101
  %v2260 = vcvt.s32.f32 %v2102
  %v2261 = vcvt.s32.f32 %v2103
  %v2262 = vcvt.s32.f32 %v2104
  %v2263 = vcvt.s32.f32 %v2105
  %v2264 = vcvt.s32.f32 %v2106
  %v2265 = vcvt.s32.f32 %v2107
  %v2266 = vcvt.s32.f32 %v2108
  %v2267 = vcvt.s32.f32 %v2109
  %v2268 = vcvt.s32.f32 %v2110
  %v2269 = vcvt.s32.f32 %v2111
  %v2270 = vcvt.s32.f32 %v2112
  %v2271 = vcvt.s32.f32 %v2113
  %v2272 = vcvt.s32.f32 %v2114
  %v2273 = vcvt.s32.f32 %v2115
  %v2274 = vcvt.s32.f32 %v2116
  %v2275 = vcvt.s32.f32 %v2117
  %v2276 = vcvt.s32.f32 %v2118
  %v2277 = vcvt.s32.f32 %v2119
  %v2278 = vcvt.s32.f32 %v2120
  %v2279 = vcvt.s32.f32 %v2121
  %v2280 = vcvt.s32.f32 %v2122
  %v2281 = vcvt.s32.f32 %v2123
  %v2282 = vcvt.s32.f32 %v2124
  %v2283 = vcvt.s32.f32 %v2125
  %v2284 = vcvt.s32.f32 %v2126
  %v2285 = vcvt.s32.f32 %v2127
  %v2286 = vcvt.s32.f32 %v2128
  %v2287 = vcvt.s32.f32 %v2129
  %v2288 = vcvt.s32.f32 %v2130
  %v2289 = vcvt.s32.f32 %v2131
  %v2290 = vcvt.s32.f32 %v2132
  %v2291 = vcvt.s32.f32 %v2133
  %v2292 = vcvt.s32.f32 %v2134
  %v2293 = vcvt.s32.f32 %v2135
  %v2294 = vcvt.s32.f32 %v2136
  %v2295 = vcvt.s32.f32 %v2137
  %v2296 = vcvt.s32.f32 %v2138
  %v2297 = vcvt.s32.f32 %v2139
  %v2298 = vcvt.s32.f32 %v2140
  %v2299 = vcvt.s32.f32 %v2141
  %v2300 = vcvt.s32.f32 %v2142
  %v2301 = vcvt.s32.f32 %v2143
  %v2302 = vcvt.s32.f32 %v2144
  %v2303 = vcvt.s32.f32 %v2145
  %v2304 = vcvt.s32.f32 %v2146
  %v2305 = vcvt.s32.f32 %v2147
  %v2306 = vcvt.s32.f32 %v2148
  %v2307 = vcvt.s32.f32 %v2149
  %v2308 = vcvt.s32.f32 %v2150
  %v2309 = vcvt.s32.f32 %v2151
  %v2310 = vcvt.s32.f32 %v2152
  %v2311 = vcvt.s32.f32 %v2153
  %v2312 = vcvt.s32.f32 %v2154
  %v2313 = vcvt.s32.f32 %v2155
  %v2314 = vcvt.s32.f32 %v2156
  %v2315 = vcvt.s32.f32 %v2157
  %v2316 = vcvt.s32.f32 %v2158
  %v2317 = vcvt.s32.f32 %v2159
  %v2318 = vld [vmem:[%s6] sm:$0x3]
  %v2320 = vlaneseq
  %v2321 = vshrl.u32 %v2320, 7
  %v2322 = vsub.s32 0, %v2321
  %v2323 = vrot.slane %v2318, %v2322
  %v2324 = vlaneseq
  %v2325 = vshrl.u32 %v2324, 7
  %v2326 = vsub.s32 1, %v2325
  %v2327 = vrot.slane %v2318, %v2326
  %v2330 = vmul.f32 %v2160, %v2323
  %v2331 = vmul.f32 %v2161, %v2327
  %v2332 = vmul.f32 %v2162, %v2323
  %v2333 = vmul.f32 %v2163, %v2327
  %v2334 = vmul.f32 %v2164, %v2323
  %v2335 = vmul.f32 %v2165, %v2327
  %v2336 = vmul.f32 %v2166, %v2323
  %v2337 = vmul.f32 %v2167, %v2327
  %v2338 = vmul.f32 %v2168, %v2323
  %v2339 = vmul.f32 %v2169, %v2327
  %v2340 = vmul.f32 %v2170, %v2323
  %v2341 = vmul.f32 %v2171, %v2327
  %v2342 = vmul.f32 %v2172, %v2323
  %v2343 = vmul.f32 %v2173, %v2327
  %v2344 = vmul.f32 %v2174, %v2323
  %v2345 = vmul.f32 %v2175, %v2327
  %v2346 = vmul.f32 %v2176, %v2323
  %v2347 = vmul.f32 %v2177, %v2327
  %v2348 = vmul.f32 %v2178, %v2323
  %v2349 = vmul.f32 %v2179, %v2327
  %v2350 = vmul.f32 %v2180, %v2323
  %v2351 = vmul.f32 %v2181, %v2327
  %v2352 = vmul.f32 %v2182, %v2323
  %v2353 = vmul.f32 %v2183, %v2327
  %v2354 = vmul.f32 %v2184, %v2323
  %v2355 = vmul.f32 %v2185, %v2327
  %v2356 = vmul.f32 %v2186, %v2323
  %v2357 = vmul.f32 %v2187, %v2327
  %v2358 = vmul.f32 %v2188, %v2323
  %v2359 = vmul.f32 %v2189, %v2327
  %v2360 = vmul.f32 %v2190, %v2323
  %v2361 = vmul.f32 %v2191, %v2327
  %v2362 = vmul.f32 %v2192, %v2323
  %v2363 = vmul.f32 %v2193, %v2327
  %v2364 = vmul.f32 %v2194, %v2323
  %v2365 = vmul.f32 %v2195, %v2327
  %v2366 = vmul.f32 %v2196, %v2323
  %v2367 = vmul.f32 %v2197, %v2327
  %v2368 = vmul.f32 %v2198, %v2323
  %v2369 = vmul.f32 %v2199, %v2327
  %v2370 = vmul.f32 %v2200, %v2323
  %v2371 = vmul.f32 %v2201, %v2327
  %v2372 = vmul.f32 %v2202, %v2323
  %v2373 = vmul.f32 %v2203, %v2327
  %v2374 = vmul.f32 %v2204, %v2323
  %v2375 = vmul.f32 %v2205, %v2327
  %v2376 = vmul.f32 %v2206, %v2323
  %v2377 = vmul.f32 %v2207, %v2327
  %v2378 = vmul.f32 %v2208, %v2323
  %v2379 = vmul.f32 %v2209, %v2327
  %v2380 = vmul.f32 %v2210, %v2323
  %v2381 = vmul.f32 %v2211, %v2327
  %v2382 = vmul.f32 %v2212, %v2323
  %v2383 = vmul.f32 %v2213, %v2327
  %v2384 = vmul.f32 %v2214, %v2323
  %v2385 = vmul.f32 %v2215, %v2327
  %v2386 = vmul.f32 %v2216, %v2323
  %v2387 = vmul.f32 %v2217, %v2327
  %v2388 = vmul.f32 %v2218, %v2323
  %v2389 = vmul.f32 %v2219, %v2327
  %v2390 = vmul.f32 %v2220, %v2323
  %v2391 = vmul.f32 %v2221, %v2327
  %v2392 = vmul.f32 %v2222, %v2323
  %v2393 = vmul.f32 %v2223, %v2327
  %v2394 = vmul.f32 %v2224, %v2323
  %v2395 = vmul.f32 %v2225, %v2327
  %v2396 = vmul.f32 %v2226, %v2323
  %v2397 = vmul.f32 %v2227, %v2327
  %v2398 = vmul.f32 %v2228, %v2323
  %v2399 = vmul.f32 %v2229, %v2327
  %v2400 = vmul.f32 %v2230, %v2323
  %v2401 = vmul.f32 %v2231, %v2327
  %v2402 = vmul.f32 %v2232, %v2323
  %v2403 = vmul.f32 %v2233, %v2327
  %v2404 = vmul.f32 %v2234, %v2323
  %v2405 = vmul.f32 %v2235, %v2327
  %v2406 = vmul.f32 %v2236, %v2323
  %v2407 = vmul.f32 %v2237, %v2327
  %v2408 = vmul.f32 %v2238, %v2323
  %v2409 = vmul.f32 %v2239, %v2327
  %v2410 = vmul.f32 %v2240, %v2323
  %v2411 = vmul.f32 %v2241, %v2327
  %v2412 = vmul.f32 %v2242, %v2323
  %v2413 = vmul.f32 %v2243, %v2327
  %v2414 = vmul.f32 %v2244, %v2323
  %v2415 = vmul.f32 %v2245, %v2327
  %v2416 = vmul.f32 %v2246, %v2323
  %v2417 = vmul.f32 %v2247, %v2327
  %v2418 = vmul.f32 %v2248, %v2323
  %v2419 = vmul.f32 %v2249, %v2327
  %v2420 = vmul.f32 %v2250, %v2323
  %v2421 = vmul.f32 %v2251, %v2327
  %v2422 = vmul.f32 %v2252, %v2323
  %v2423 = vmul.f32 %v2253, %v2327
  %v2424 = vmul.f32 %v2254, %v2323
  %v2425 = vmul.f32 %v2255, %v2327
  %v2426 = vmul.f32 %v2256, %v2323
  %v2427 = vmul.f32 %v2257, %v2327
  %v2428 = vmul.f32 %v2258, %v2323
  %v2429 = vmul.f32 %v2259, %v2327
  %v2430 = vmul.f32 %v2260, %v2323
  %v2431 = vmul.f32 %v2261, %v2327
  %v2432 = vmul.f32 %v2262, %v2323
  %v2433 = vmul.f32 %v2263, %v2327
  %v2434 = vmul.f32 %v2264, %v2323
  %v2435 = vmul.f32 %v2265, %v2327
  %v2436 = vmul.f32 %v2266, %v2323
  %v2437 = vmul.f32 %v2267, %v2327
  %v2438 = vmul.f32 %v2268, %v2323
  %v2439 = vmul.f32 %v2269, %v2327
  %v2440 = vmul.f32 %v2270, %v2323
  %v2441 = vmul.f32 %v2271, %v2327
  %v2442 = vmul.f32 %v2272, %v2323
  %v2443 = vmul.f32 %v2273, %v2327
  %v2444 = vmul.f32 %v2274, %v2323
  %v2445 = vmul.f32 %v2275, %v2327
  %v2446 = vmul.f32 %v2276, %v2323
  %v2447 = vmul.f32 %v2277, %v2327
  %v2448 = vmul.f32 %v2278, %v2323
  %v2449 = vmul.f32 %v2279, %v2327
  %v2450 = vmul.f32 %v2280, %v2323
  %v2451 = vmul.f32 %v2281, %v2327
  %v2452 = vmul.f32 %v2282, %v2323
  %v2453 = vmul.f32 %v2283, %v2327
  %v2454 = vmul.f32 %v2284, %v2323
  %v2455 = vmul.f32 %v2285, %v2327
  %v2456 = vmul.f32 %v2286, %v2323
  %v2457 = vmul.f32 %v2287, %v2327
  %v2458 = vmul.f32 %v2288, %v2323
  %v2459 = vmul.f32 %v2289, %v2327
  %v2460 = vmul.f32 %v2290, %v2323
  %v2461 = vmul.f32 %v2291, %v2327
  %v2462 = vmul.f32 %v2292, %v2323
  %v2463 = vmul.f32 %v2293, %v2327
  %v2464 = vmul.f32 %v2294, %v2323
  %v2465 = vmul.f32 %v2295, %v2327
  %v2466 = vmul.f32 %v2296, %v2323
  %v2467 = vmul.f32 %v2297, %v2327
  %v2468 = vmul.f32 %v2298, %v2323
  %v2469 = vmul.f32 %v2299, %v2327
  %v2470 = vmul.f32 %v2300, %v2323
  %v2471 = vmul.f32 %v2301, %v2327
  %v2472 = vmul.f32 %v2302, %v2323
  %v2473 = vmul.f32 %v2303, %v2327
  %v2474 = vmul.f32 %v2304, %v2323
  %v2475 = vmul.f32 %v2305, %v2327
  %v2476 = vmul.f32 %v2306, %v2323
  %v2477 = vmul.f32 %v2307, %v2327
  %v2478 = vmul.f32 %v2308, %v2323
  %v2479 = vmul.f32 %v2309, %v2327
  %v2480 = vmul.f32 %v2310, %v2323
  %v2481 = vmul.f32 %v2311, %v2327
  %v2482 = vmul.f32 %v2312, %v2323
  %v2483 = vmul.f32 %v2313, %v2327
  %v2484 = vmul.f32 %v2314, %v2323
  %v2485 = vmul.f32 %v2315, %v2327
  %v2486 = vmul.f32 %v2316, %v2323
  %v2487 = vmul.f32 %v2317, %v2327
  %vm2488 = vcmask 957440
  %v2490 = vsel %vm2488, %v1754, 0
  %vm2492 = vcmask 1044480
  %v2494 = vsel %vm2492, %v2486, 0
  %v2497 = vsel %vm2492, %v2487, 0
  %2499 = vmatprep.subr.mxu0 %v2331
  %2500 = vmatpush1.msra.mxu0 %v2330
  %2501 = vmatprep.subr.mxu0 %v2333
  %2502 = vmatpush1.msra.mxu0 %v2332
  %2503 = vmatprep.subr.mxu0 %v2335
  %2504 = vmatpush1.msra.mxu0 %v2334
  %2505 = vmatprep.subr.mxu0 %v2337
  %2506 = vmatpush1.msra.mxu0 %v2336
  %2507 = vmatprep.subr.mxu0 %v2339
  %2508 = vmatpush1.msra.mxu0 %v2338
  %2509 = vmatprep.subr.mxu0 %v2341
  %2510 = vmatpush1.msra.mxu0 %v2340
  %2511 = vmatprep.subr.mxu0 %v2343
  %2512 = vmatpush1.msra.mxu0 %v2342
  %2513 = vmatprep.subr.mxu0 %v2345
  %2514 = vmatpush1.msra.mxu0 %v2344
  %2515 = vmatprep.subr.mxu0 %v2347
  %2516 = vmatpush1.msra.mxu0 %v2346
  %2517 = vmatprep.subr.mxu0 %v2349
  %2518 = vmatpush1.msra.mxu0 %v2348
  %2519 = vmatprep.subr.mxu0 %v2351
  %2520 = vmatpush1.msra.mxu0 %v2350
  %2521 = vmatprep.subr.mxu0 %v2353
  %2522 = vmatpush1.msra.mxu0 %v2352
  %2523 = vmatprep.subr.mxu0 %v2355
  %2524 = vmatpush1.msra.mxu0 %v2354
  %2525 = vmatprep.subr.mxu0 %v2357
  %2526 = vmatpush1.msra.mxu0 %v2356
  %2527 = vmatprep.subr.mxu0 %v2359
  %2528 = vmatpush1.msra.mxu0 %v2358
  %2529 = vmatprep.subr.mxu0 %v2361
  %2530 = vmatpush1.msra.mxu0 %v2360
  %2531 = vmatprep.subr.mxu0 %v2363
  %2532 = vmatpush1.msra.mxu0 %v2362
  %2533 = vmatprep.subr.mxu0 %v2365
  %2534 = vmatpush1.msra.mxu0 %v2364
  %2535 = vmatprep.subr.mxu0 %v2367
  %2536 = vmatpush1.msra.mxu0 %v2366
  %2537 = vmatprep.subr.mxu0 %v2369
  %2538 = vmatpush1.msra.mxu0 %v2368
  %2539 = vmatprep.subr.mxu0 %v2371
  %2540 = vmatpush1.msra.mxu0 %v2370
  %2541 = vmatprep.subr.mxu0 %v2373
  %2542 = vmatpush1.msra.mxu0 %v2372
  %2543 = vmatprep.subr.mxu0 %v2375
  %2544 = vmatpush1.msra.mxu0 %v2374
  %2545 = vmatprep.subr.mxu0 %v2377
  %2546 = vmatpush1.msra.mxu0 %v2376
  %2547 = vmatprep.subr.mxu0 %v2379
  %2548 = vmatpush1.msra.mxu0 %v2378
  %2549 = vmatprep.subr.mxu0 %v2381
  %2550 = vmatpush1.msra.mxu0 %v2380
  %2551 = vmatprep.subr.mxu0 %v2383
  %2552 = vmatpush1.msra.mxu0 %v2382
  %2553 = vmatprep.subr.mxu0 %v2385
  %2554 = vmatpush1.msra.mxu0 %v2384
  %2555 = vmatprep.subr.mxu0 %v2387
  %2556 = vmatpush1.msra.mxu0 %v2386
  %2557 = vmatprep.subr.mxu0 %v2389
  %2558 = vmatpush1.msra.mxu0 %v2388
  %2559 = vmatprep.subr.mxu0 %v2391
  %2560 = vmatpush1.msra.mxu0 %v2390
  %2561 = vmatprep.subr.mxu0 %v2393
  %2562 = vmatpush1.msra.mxu0 %v2392
  %2563 = vmatprep.mubr.f32.mxu0 %v1751
  %2564 = vmatmul.mubr.f32.gmra.mrb[0].mxu0 %v1750
  %v2565 = vpop.f32.mrb[0].mxu0
  %v2566 = vadd.f32 0.0, %v2565
  %v2567 = vpop.f32.mrb[0].mxu0
  %v2568 = vadd.f32 0.0, %v2567
  %2569 = vdwg.mxu0
  %2570 = vmatprep.subr.mxu0 %v2395
  %2571 = vmatpush1.msra.mxu0 %v2394
  %2572 = vmatprep.subr.mxu0 %v2397
  %2573 = vmatpush1.msra.mxu0 %v2396
  %2574 = vmatprep.subr.mxu0 %v2399
  %2575 = vmatpush1.msra.mxu0 %v2398
  %2576 = vmatprep.subr.mxu0 %v2401
  %2577 = vmatpush1.msra.mxu0 %v2400
  %2578 = vmatprep.subr.mxu0 %v2403
  %2579 = vmatpush1.msra.mxu0 %v2402
  %2580 = vmatprep.subr.mxu0 %v2405
  %2581 = vmatpush1.msra.mxu0 %v2404
  %2582 = vmatprep.subr.mxu0 %v2407
  %2583 = vmatpush1.msra.mxu0 %v2406
  %2584 = vmatprep.subr.mxu0 %v2409
  %2585 = vmatpush1.msra.mxu0 %v2408
  %2586 = vmatprep.subr.mxu0 %v2411
  %2587 = vmatpush1.msra.mxu0 %v2410
  %2588 = vmatprep.subr.mxu0 %v2413
  %2589 = vmatpush1.msra.mxu0 %v2412
  %2590 = vmatprep.subr.mxu0 %v2415
  %2591 = vmatpush1.msra.mxu0 %v2414
  %2592 = vmatprep.subr.mxu0 %v2417
  %2593 = vmatpush1.msra.mxu0 %v2416
  %2594 = vmatprep.subr.mxu0 %v2419
  %2595 = vmatpush1.msra.mxu0 %v2418
  %2596 = vmatprep.subr.mxu0 %v2421
  %2597 = vmatpush1.msra.mxu0 %v2420
  %2598 = vmatprep.subr.mxu0 %v2423
  %2599 = vmatpush1.msra.mxu0 %v2422
  %2600 = vmatprep.subr.mxu0 %v2425
  %2601 = vmatpush1.msra.mxu0 %v2424
  %2602 = vmatprep.subr.mxu0 %v2427
  %2603 = vmatpush1.msra.mxu0 %v2426
  %2604 = vmatprep.subr.mxu0 %v2429
  %2605 = vmatpush1.msra.mxu0 %v2428
  %2606 = vmatprep.subr.mxu0 %v2431
  %2607 = vmatpush1.msra.mxu0 %v2430
  %2608 = vmatprep.subr.mxu0 %v2433
  %2609 = vmatpush1.msra.mxu0 %v2432
  %2610 = vmatprep.subr.mxu0 %v2435
  %2611 = vmatpush1.msra.mxu0 %v2434
  %2612 = vmatprep.subr.mxu0 %v2437
  %2613 = vmatpush1.msra.mxu0 %v2436
  %2614 = vmatprep.subr.mxu0 %v2439
  %2615 = vmatpush1.msra.mxu0 %v2438
  %2616 = vmatprep.subr.mxu0 %v2441
  %2617 = vmatpush1.msra.mxu0 %v2440
  %2618 = vmatprep.subr.mxu0 %v2443
  %2619 = vmatpush1.msra.mxu0 %v2442
  %2620 = vmatprep.subr.mxu0 %v2445
  %2621 = vmatpush1.msra.mxu0 %v2444
  %2622 = vmatprep.subr.mxu0 %v2447
  %2623 = vmatpush1.msra.mxu0 %v2446
  %2624 = vmatprep.subr.mxu0 %v2449
  %2625 = vmatpush1.msra.mxu0 %v2448
  %2626 = vmatprep.subr.mxu0 %v2451
  %2627 = vmatpush1.msra.mxu0 %v2450
  %2628 = vmatprep.subr.mxu0 %v2453
  %2629 = vmatpush1.msra.mxu0 %v2452
  %2630 = vmatprep.subr.mxu0 %v2455
  %2631 = vmatpush1.msra.mxu0 %v2454
  %2632 = vmatprep.subr.mxu0 %v2457
  %2633 = vmatpush1.msra.mxu0 %v2456
  %2634 = vmatprep.mubr.f32.mxu0 %v1753
  %2635 = vmatmul.mubr.f32.gmra.mrb[0].mxu0 %v1752
  %v2636 = vpop.f32.mrb[0].mxu0
  %v2637 = vadd.f32 %v2566, %v2636
  %v2638 = vpop.f32.mrb[0].mxu0
  %v2639 = vadd.f32 %v2568, %v2638
  %2640 = vdwg.mxu0
  %2641 = vmatprep.subr.mxu0 %v2459
  %2642 = vmatpush1.msra.mxu0 %v2458
  %2643 = vmatprep.subr.mxu0 %v2461
  %2644 = vmatpush1.msra.mxu0 %v2460
  %2645 = vmatprep.subr.mxu0 %v2463
  %2646 = vmatpush1.msra.mxu0 %v2462
  %2647 = vmatprep.subr.mxu0 %v2465
  %2648 = vmatpush1.msra.mxu0 %v2464
  %2649 = vmatprep.subr.mxu0 %v2467
  %2650 = vmatpush1.msra.mxu0 %v2466
  %2651 = vmatprep.subr.mxu0 %v2469
  %2652 = vmatpush1.msra.mxu0 %v2468
  %2653 = vmatprep.subr.mxu0 %v2471
  %2654 = vmatpush1.msra.mxu0 %v2470
  %2655 = vmatprep.subr.mxu0 %v2473
  %2656 = vmatpush1.msra.mxu0 %v2472
  %2657 = vmatprep.subr.mxu0 %v2475
  %2658 = vmatpush1.msra.mxu0 %v2474
  %2659 = vmatprep.subr.mxu0 %v2477
  %2660 = vmatpush1.msra.mxu0 %v2476
  %2661 = vmatprep.subr.mxu0 %v2479
  %2662 = vmatpush1.msra.mxu0 %v2478
  %2663 = vmatprep.subr.mxu0 %v2481
  %2664 = vmatpush1.msra.mxu0 %v2480
  %2665 = vmatprep.subr.mxu0 %v2483
  %2666 = vmatpush1.msra.mxu0 %v2482
  %2667 = vmatprep.subr.mxu0 %v2485
  %2668 = vmatpush1.msra.mxu0 %v2484
  %2669 = vmatprep.subr.mxu0 %v2497
  %2670 = vmatpush1.msra.mxu0 %v2494
  %2671 = vmatprep.subr.mxu0 0.0
  %2672 = vmatpush1.msra.mxu0 0.0
  %2673 = vmatprep.subr.mxu0 0.0
  %2674 = vmatpush1.msra.mxu0 0.0
  %2675 = vmatprep.subr.mxu0 0.0
  %2676 = vmatpush1.msra.mxu0 0.0
  %2677 = vmatprep.subr.mxu0 0.0
  %2678 = vmatpush1.msra.mxu0 0.0
  %2679 = vmatprep.subr.mxu0 0.0
  %2680 = vmatpush1.msra.mxu0 0.0
  %2681 = vmatprep.subr.mxu0 0.0
  %2682 = vmatpush1.msra.mxu0 0.0
  %2683 = vmatprep.subr.mxu0 0.0
  %2684 = vmatpush1.msra.mxu0 0.0
  %2685 = vmatprep.subr.mxu0 0.0
  %2686 = vmatpush1.msra.mxu0 0.0
  %2687 = vmatprep.subr.mxu0 0.0
  %2688 = vmatpush1.msra.mxu0 0.0
  %2689 = vmatprep.subr.mxu0 0.0
  %2690 = vmatpush1.msra.mxu0 0.0
  %2691 = vmatprep.subr.mxu0 0.0
  %2692 = vmatpush1.msra.mxu0 0.0
  %2693 = vmatprep.subr.mxu0 0.0
  %2694 = vmatpush1.msra.mxu0 0.0
  %2695 = vmatprep.subr.mxu0 0.0
  %2696 = vmatpush1.msra.mxu0 0.0
  %2697 = vmatprep.subr.mxu0 0.0
  %2698 = vmatpush1.msra.mxu0 0.0
  %2699 = vmatprep.subr.mxu0 0.0
  %2700 = vmatpush1.msra.mxu0 0.0
  %2701 = vmatprep.subr.mxu0 0.0
  %2702 = vmatpush1.msra.mxu0 0.0
  %2703 = vmatprep.subr.mxu0 0.0
  %2704 = vmatpush1.msra.mxu0 0.0
  %2705 = vmatprep.mubr.f32.mxu0 0.0
  %2706 = vmatmul.mubr.f32.gmra.mrb[0].mxu0 %v2490
  %v2707 = vpop.f32.mrb[0].mxu0
  %v2708 = vadd.f32 %v2637, %v2707
  %v2709 = vpop.f32.mrb[0].mxu0
  %v2710 = vadd.f32 %v2639, %v2709
  %2711 = vdwg.mxu0
  %v2712 = vpack.c.bf16 %v2708, %v2708
  %v2713 = vpack.c.bf16 %v2710, %v2710
  %v2714 = vld [vmem:[%s7] sm:$0xf]
  %s2715 = scalar_lea.vmem %s7, 4
  %v2716 = vld [vmem:[%s2715] sm:$0xf]
  %2719 = vrot.lane.b32.xlu0 %v2712, 127
  %v2720 = vpop.permute.xlu0 %2719
  %2721 = vrot.lane.b32.xlu0 %v2713, 127
  %v2722 = vpop.permute.xlu0 %2721
  %v2723 = vsel %vm89, %v2720, %v2722
  %v2725 = vsel %vm1617, %v2716, 0
  %vm2727 = vcmask 1043456
  %v2729 = vsel %vm2727, %v2723, 0
  %v2732 = vsel %vm2727, %v2722, 0
  %2734 = vmatprep.subr.bf16.mxu0 %v2732
  %2735 = vmatpush1.bf16.msra.mxu0 %v2729
  %2736 = vmatprep.subr.bf16.mxu0 0
  %2737 = vmatpush1.bf16.msra.mxu0 0
  %2738 = vmatprep.subr.bf16.mxu0 0
  %2739 = vmatpush1.bf16.msra.mxu0 0
  %2740 = vmatprep.subr.bf16.mxu0 0
  %2741 = vmatpush1.bf16.msra.mxu0 0
  %2742 = vmatprep.subr.bf16.mxu0 0
  %2743 = vmatpush1.bf16.msra.mxu0 0
  %2744 = vmatprep.subr.bf16.mxu0 0
  %2745 = vmatpush1.bf16.msra.mxu0 0
  %2746 = vmatprep.subr.bf16.mxu0 0
  %2747 = vmatpush1.bf16.msra.mxu0 0
  %2748 = vmatprep.subr.bf16.mxu0 0
  %2749 = vmatpush1.bf16.msra.mxu0 0
  %2750 = vmatprep.subr.bf16.mxu0 0
  %2751 = vmatpush1.bf16.msra.mxu0 0
  %2752 = vmatprep.subr.bf16.mxu0 0
  %2753 = vmatpush1.bf16.msra.mxu0 0
  %2754 = vmatprep.subr.bf16.mxu0 0
  %2755 = vmatpush1.bf16.msra.mxu0 0
  %2756 = vmatprep.subr.bf16.mxu0 0
  %2757 = vmatpush1.bf16.msra.mxu0 0
  %2758 = vmatprep.subr.bf16.mxu0 0
  %2759 = vmatpush1.bf16.msra.mxu0 0
  %2760 = vmatprep.subr.bf16.mxu0 0
  %2761 = vmatpush1.bf16.msra.mxu0 0
  %2762 = vmatprep.subr.bf16.mxu0 0
  %2763 = vmatpush1.bf16.msra.mxu0 0
  %2764 = vmatprep.subr.bf16.mxu0 0
  %2765 = vmatpush1.bf16.msra.mxu0 0
  %2766 = vmatprep.mubr.bf16.mxu0 0
  %2767 = vmatmul.mubr.bf16.gmra.mrb[0].mxu0 %v2725
  %v2768 = vpop.f32.mrb[0].mxu0
  %v2769 = vadd.f32 0.0, %v2768
  %v2770 = vpop.f32.mrb[0].mxu0
  %v2771 = vadd.f32 0.0, %v2770
  %v2772 = vpop.f32.mrb[0].mxu0
  %v2773 = vpop.f32.mrb[0].mxu0
  %2774 = vdwg.mxu0
  %v2776 = vsel %vm1617, %v2714, 0
  %v2779 = vsel %vm2727, %v2712, 0
  %v2782 = vsel %vm2727, %v2713, 0
  %2784 = vmatprep.subr.bf16.mxu0 %v2782
  %2785 = vmatpush1.bf16.msra.mxu0 %v2779
  %2786 = vmatprep.subr.bf16.mxu0 0
  %2787 = vmatpush1.bf16.msra.mxu0 0
  %2788 = vmatprep.subr.bf16.mxu0 0
  %2789 = vmatpush1.bf16.msra.mxu0 0
  %2790 = vmatprep.subr.bf16.mxu0 0
  %2791 = vmatpush1.bf16.msra.mxu0 0
  %2792 = vmatprep.subr.bf16.mxu0 0
  %2793 = vmatpush1.bf16.msra.mxu0 0
  %2794 = vmatprep.subr.bf16.mxu0 0
  %2795 = vmatpush1.bf16.msra.mxu0 0
  %2796 = vmatprep.subr.bf16.mxu0 0
  %2797 = vmatpush1.bf16.msra.mxu0 0
  %2798 = vmatprep.subr.bf16.mxu0 0
  %2799 = vmatpush1.bf16.msra.mxu0 0
  %2800 = vmatprep.subr.bf16.mxu0 0
  %2801 = vmatpush1.bf16.msra.mxu0 0
  %2802 = vmatprep.subr.bf16.mxu0 0
  %2803 = vmatpush1.bf16.msra.mxu0 0
  %2804 = vmatprep.subr.bf16.mxu0 0
  %2805 = vmatpush1.bf16.msra.mxu0 0
  %2806 = vmatprep.subr.bf16.mxu0 0
  %2807 = vmatpush1.bf16.msra.mxu0 0
  %2808 = vmatprep.subr.bf16.mxu0 0
  %2809 = vmatpush1.bf16.msra.mxu0 0
  %2810 = vmatprep.subr.bf16.mxu0 0
  %2811 = vmatpush1.bf16.msra.mxu0 0
  %2812 = vmatprep.subr.bf16.mxu0 0
  %2813 = vmatpush1.bf16.msra.mxu0 0
  %2814 = vmatprep.subr.bf16.mxu0 0
  %2815 = vmatpush1.bf16.msra.mxu0 0
  %2816 = vmatprep.mubr.bf16.mxu0 0
  %2817 = vmatmul.mubr.bf16.gmra.mrb[0].mxu0 %v2776
  %v2818 = vpop.f32.mrb[0].mxu0
  %v2819 = vadd.f32 %v2769, %v2818
  %v2820 = vpop.f32.mrb[0].mxu0
  %v2821 = vadd.f32 %v2771, %v2820
  %v2822 = vpop.f32.mrb[0].mxu0
  %v2823 = vpop.f32.mrb[0].mxu0
  %2824 = vdwg.mxu0
  %s2825 = scalar_lea.vmem %s7, 8
  %v2826 = vld [vmem:[%s2825] sm:$0xf]
  %2827 = vrot.lane.b32.xlu0 %v2712, 126
  %v2828 = vpop.permute.xlu0 %2827
  %2829 = vrot.lane.b32.xlu0 %v2713, 126
  %v2830 = vpop.permute.xlu0 %2829
  %v2831 = vsel %vm399, %v2828, %v2830
  %v2833 = vsel %vm1617, %v2826, 0
  %v2836 = vsel %vm2727, %v2831, 0
  %v2839 = vsel %vm2727, %v2830, 0
  %2841 = vmatprep.subr.bf16.mxu0 %v2839
  %2842 = vmatpush1.bf16.msra.mxu0 %v2836
  %2843 = vmatprep.subr.bf16.mxu0 0
  %2844 = vmatpush1.bf16.msra.mxu0 0
  %2845 = vmatprep.subr.bf16.mxu0 0
  %2846 = vmatpush1.bf16.msra.mxu0 0
  %2847 = vmatprep.subr.bf16.mxu0 0
  %2848 = vmatpush1.bf16.msra.mxu0 0
  %2849 = vmatprep.subr.bf16.mxu0 0
  %2850 = vmatpush1.bf16.msra.mxu0 0
  %2851 = vmatprep.subr.bf16.mxu0 0
  %2852 = vmatpush1.bf16.msra.mxu0 0
  %2853 = vmatprep.subr.bf16.mxu0 0
  %2854 = vmatpush1.bf16.msra.mxu0 0
  %2855 = vmatprep.subr.bf16.mxu0 0
  %2856 = vmatpush1.bf16.msra.mxu0 0
  %2857 = vmatprep.subr.bf16.mxu0 0
  %2858 = vmatpush1.bf16.msra.mxu0 0
  %2859 = vmatprep.subr.bf16.mxu0 0
  %2860 = vmatpush1.bf16.msra.mxu0 0
  %2861 = vmatprep.subr.bf16.mxu0 0
  %2862 = vmatpush1.bf16.msra.mxu0 0
  %2863 = vmatprep.subr.bf16.mxu0 0
  %2864 = vmatpush1.bf16.msra.mxu0 0
  %2865 = vmatprep.subr.bf16.mxu0 0
  %2866 = vmatpush1.bf16.msra.mxu0 0
  %2867 = vmatprep.subr.bf16.mxu0 0
  %2868 = vmatpush1.bf16.msra.mxu0 0
  %2869 = vmatprep.subr.bf16.mxu0 0
  %2870 = vmatpush1.bf16.msra.mxu0 0
  %2871 = vmatprep.subr.bf16.mxu0 0
  %2872 = vmatpush1.bf16.msra.mxu0 0
  %2873 = vmatprep.mubr.bf16.mxu0 0
  %2874 = vmatmul.mubr.bf16.gmra.mrb[0].mxu0 %v2833
  %v2875 = vpop.f32.mrb[0].mxu0
  %v2876 = vadd.f32 0.0, %v2875
  %v2877 = vpop.f32.mrb[0].mxu0
  %v2878 = vadd.f32 0.0, %v2877
  %v2879 = vpop.f32.mrb[0].mxu0
  %v2880 = vpop.f32.mrb[0].mxu0
  %2881 = vdwg.mxu0
  %v2882 = vadd.f32 %v2819, %v2876
  %v2883 = vadd.f32 %v2821, %v2878
  %s2884 = scalar_lea.vmem %s7, 12
  %v2885 = vld [vmem:[%s2884] sm:$0xf]
  %2886 = vrot.lane.b32.xlu0 %v2712, 118
  %v2887 = vpop.permute.xlu0 %2886
  %2888 = vrot.lane.b32.xlu0 %v2713, 118
  %v2889 = vpop.permute.xlu0 %2888
  %vm2890 = vcmask 965632
  %v2891 = vsel %vm2890, %v2887, %v2889
  %v2893 = vsel %vm1617, %v2885, 0
  %v2896 = vsel %vm2727, %v2891, 0
  %v2899 = vsel %vm2727, %v2889, 0
  %2901 = vmatprep.subr.bf16.mxu0 %v2899
  %2902 = vmatpush1.bf16.msra.mxu0 %v2896
  %2903 = vmatprep.subr.bf16.mxu0 0
  %2904 = vmatpush1.bf16.msra.mxu0 0
  %2905 = vmatprep.subr.bf16.mxu0 0
  %2906 = vmatpush1.bf16.msra.mxu0 0
  %2907 = vmatprep.subr.bf16.mxu0 0
  %2908 = vmatpush1.bf16.msra.mxu0 0
  %2909 = vmatprep.subr.bf16.mxu0 0
  %2910 = vmatpush1.bf16.msra.mxu0 0
  %2911 = vmatprep.subr.bf16.mxu0 0
  %2912 = vmatpush1.bf16.msra.mxu0 0
  %2913 = vmatprep.subr.bf16.mxu0 0
  %2914 = vmatpush1.bf16.msra.mxu0 0
  %2915 = vmatprep.subr.bf16.mxu0 0
  %2916 = vmatpush1.bf16.msra.mxu0 0
  %2917 = vmatprep.subr.bf16.mxu0 0
  %2918 = vmatpush1.bf16.msra.mxu0 0
  %2919 = vmatprep.subr.bf16.mxu0 0
  %2920 = vmatpush1.bf16.msra.mxu0 0
  %2921 = vmatprep.subr.bf16.mxu0 0
  %2922 = vmatpush1.bf16.msra.mxu0 0
  %2923 = vmatprep.subr.bf16.mxu0 0
  %2924 = vmatpush1.bf16.msra.mxu0 0
  %2925 = vmatprep.subr.bf16.mxu0 0
  %2926 = vmatpush1.bf16.msra.mxu0 0
  %2927 = vmatprep.subr.bf16.mxu0 0
  %2928 = vmatpush1.bf16.msra.mxu0 0
  %2929 = vmatprep.subr.bf16.mxu0 0
  %2930 = vmatpush1.bf16.msra.mxu0 0
  %2931 = vmatprep.subr.bf16.mxu0 0
  %2932 = vmatpush1.bf16.msra.mxu0 0
  %2933 = vmatprep.mubr.bf16.mxu0 0
  %2934 = vmatmul.mubr.bf16.gmra.mrb[0].mxu0 %v2893
  %v2935 = vpop.f32.mrb[0].mxu0
  %v2936 = vadd.f32 0.0, %v2935
  %v2937 = vpop.f32.mrb[0].mxu0
  %v2938 = vadd.f32 0.0, %v2937
  %v2939 = vpop.f32.mrb[0].mxu0
  %v2940 = vpop.f32.mrb[0].mxu0
  %2941 = vdwg.mxu0
  %v2942 = vadd.f32 %v2882, %v2936
  %v2943 = vadd.f32 %v2883, %v2938
  %s2944 = scalar_lea.vmem %s7, 16
  %v2945 = vld [vmem:[%s2944] sm:$0xf]
  %2946 = vrot.lane.b32.xlu0 %v2712, 117
  %v2947 = vpop.permute.xlu0 %2946
  %2948 = vrot.lane.b32.xlu0 %v2713, 117
  %v2949 = vpop.permute.xlu0 %2948
  %vm2950 = vcmask 957440
  %v2951 = vsel %vm2950, %v2947, %v2949
  %v2953 = vsel %vm1617, %v2945, 0
  %v2956 = vsel %vm2727, %v2951, 0
  %v2959 = vsel %vm2727, %v2949, 0
  %2961 = vmatprep.subr.bf16.mxu0 %v2959
  %2962 = vmatpush1.bf16.msra.mxu0 %v2956
  %2963 = vmatprep.subr.bf16.mxu0 0
  %2964 = vmatpush1.bf16.msra.mxu0 0
  %2965 = vmatprep.subr.bf16.mxu0 0
  %2966 = vmatpush1.bf16.msra.mxu0 0
  %2967 = vmatprep.subr.bf16.mxu0 0
  %2968 = vmatpush1.bf16.msra.mxu0 0
  %2969 = vmatprep.subr.bf16.mxu0 0
  %2970 = vmatpush1.bf16.msra.mxu0 0
  %2971 = vmatprep.subr.bf16.mxu0 0
  %2972 = vmatpush1.bf16.msra.mxu0 0
  %2973 = vmatprep.subr.bf16.mxu0 0
  %2974 = vmatpush1.bf16.msra.mxu0 0
  %2975 = vmatprep.subr.bf16.mxu0 0
  %2976 = vmatpush1.bf16.msra.mxu0 0
  %2977 = vmatprep.subr.bf16.mxu0 0
  %2978 = vmatpush1.bf16.msra.mxu0 0
  %2979 = vmatprep.subr.bf16.mxu0 0
  %2980 = vmatpush1.bf16.msra.mxu0 0
  %2981 = vmatprep.subr.bf16.mxu0 0
  %2982 = vmatpush1.bf16.msra.mxu0 0
  %2983 = vmatprep.subr.bf16.mxu0 0
  %2984 = vmatpush1.bf16.msra.mxu0 0
  %2985 = vmatprep.subr.bf16.mxu0 0
  %2986 = vmatpush1.bf16.msra.mxu0 0
  %2987 = vmatprep.subr.bf16.mxu0 0
  %2988 = vmatpush1.bf16.msra.mxu0 0
  %2989 = vmatprep.subr.bf16.mxu0 0
  %2990 = vmatpush1.bf16.msra.mxu0 0
  %2991 = vmatprep.subr.bf16.mxu0 0
  %2992 = vmatpush1.bf16.msra.mxu0 0
  %2993 = vmatprep.mubr.bf16.mxu0 0
  %2994 = vmatmul.mubr.bf16.gmra.mrb[0].mxu0 %v2953
  %v2995 = vpop.f32.mrb[0].mxu0
  %v2996 = vadd.f32 0.0, %v2995
  %v2997 = vpop.f32.mrb[0].mxu0
  %v2998 = vadd.f32 0.0, %v2997
  %v2999 = vpop.f32.mrb[0].mxu0
  %v3000 = vpop.f32.mrb[0].mxu0
  %3001 = vdwg.mxu0
  %v3002 = vadd.f32 %v2942, %v2996
  %v3003 = vadd.f32 %v2943, %v2998
  %s3004 = scalar_lea.vmem %s7, 20
  %v3005 = vld [vmem:[%s3004] sm:$0xf]
  %3006 = vrot.lane.b32.xlu0 %v2712, 116
  %v3007 = vpop.permute.xlu0 %3006
  %3008 = vrot.lane.b32.xlu0 %v2713, 116
  %v3009 = vpop.permute.xlu0 %3008
  %vm3010 = vcmask 949248
  %v3011 = vsel %vm3010, %v3007, %v3009
  %v3013 = vsel %vm1617, %v3005, 0
  %v3016 = vsel %vm2727, %v3011, 0
  %v3019 = vsel %vm2727, %v3009, 0
  %3021 = vmatprep.subr.bf16.mxu0 %v3019
  %3022 = vmatpush1.bf16.msra.mxu0 %v3016
  %3023 = vmatprep.subr.bf16.mxu0 0
  %3024 = vmatpush1.bf16.msra.mxu0 0
  %3025 = vmatprep.subr.bf16.mxu0 0
  %3026 = vmatpush1.bf16.msra.mxu0 0
  %3027 = vmatprep.subr.bf16.mxu0 0
  %3028 = vmatpush1.bf16.msra.mxu0 0
  %3029 = vmatprep.subr.bf16.mxu0 0
  %3030 = vmatpush1.bf16.msra.mxu0 0
  %3031 = vmatprep.subr.bf16.mxu0 0
  %3032 = vmatpush1.bf16.msra.mxu0 0
  %3033 = vmatprep.subr.bf16.mxu0 0
  %3034 = vmatpush1.bf16.msra.mxu0 0
  %3035 = vmatprep.subr.bf16.mxu0 0
  %3036 = vmatpush1.bf16.msra.mxu0 0
  %3037 = vmatprep.subr.bf16.mxu0 0
  %3038 = vmatpush1.bf16.msra.mxu0 0
  %3039 = vmatprep.subr.bf16.mxu0 0
  %3040 = vmatpush1.bf16.msra.mxu0 0
  %3041 = vmatprep.subr.bf16.mxu0 0
  %3042 = vmatpush1.bf16.msra.mxu0 0
  %3043 = vmatprep.subr.bf16.mxu0 0
  %3044 = vmatpush1.bf16.msra.mxu0 0
  %3045 = vmatprep.subr.bf16.mxu0 0
  %3046 = vmatpush1.bf16.msra.mxu0 0
  %3047 = vmatprep.subr.bf16.mxu0 0
  %3048 = vmatpush1.bf16.msra.mxu0 0
  %3049 = vmatprep.subr.bf16.mxu0 0
  %3050 = vmatpush1.bf16.msra.mxu0 0
  %3051 = vmatprep.subr.bf16.mxu0 0
  %3052 = vmatpush1.bf16.msra.mxu0 0
  %3053 = vmatprep.mubr.bf16.mxu0 0
  %3054 = vmatmul.mubr.bf16.gmra.mrb[0].mxu0 %v3013
  %v3055 = vpop.f32.mrb[0].mxu0
  %v3056 = vadd.f32 0.0, %v3055
  %v3057 = vpop.f32.mrb[0].mxu0
  %v3058 = vadd.f32 0.0, %v3057
  %v3059 = vpop.f32.mrb[0].mxu0
  %v3060 = vpop.f32.mrb[0].mxu0
  %3061 = vdwg.mxu0
  %v3062 = vadd.f32 %v3002, %v3056
  %v3063 = vadd.f32 %v3003, %v3058
  %s3064 = scalar_lea.vmem %s7, 24
  %v3065 = vld [vmem:[%s3064] sm:$0xf]
  %3066 = vrot.lane.b32.xlu0 %v2712, 108
  %v3067 = vpop.permute.xlu0 %3066
  %3068 = vrot.lane.b32.xlu0 %v2713, 108
  %v3069 = vpop.permute.xlu0 %3068
  %v3070 = vsel %vm909, %v3067, %v3069
  %v3072 = vsel %vm1617, %v3065, 0
  %v3075 = vsel %vm2727, %v3070, 0
  %v3078 = vsel %vm2727, %v3069, 0
  %3080 = vmatprep.subr.bf16.mxu0 %v3078
  %3081 = vmatpush1.bf16.msra.mxu0 %v3075
  %3082 = vmatprep.subr.bf16.mxu0 0
  %3083 = vmatpush1.bf16.msra.mxu0 0
  %3084 = vmatprep.subr.bf16.mxu0 0
  %3085 = vmatpush1.bf16.msra.mxu0 0
  %3086 = vmatprep.subr.bf16.mxu0 0
  %3087 = vmatpush1.bf16.msra.mxu0 0
  %3088 = vmatprep.subr.bf16.mxu0 0
  %3089 = vmatpush1.bf16.msra.mxu0 0
  %3090 = vmatprep.subr.bf16.mxu0 0
  %3091 = vmatpush1.bf16.msra.mxu0 0
  %3092 = vmatprep.subr.bf16.mxu0 0
  %3093 = vmatpush1.bf16.msra.mxu0 0
  %3094 = vmatprep.subr.bf16.mxu0 0
  %3095 = vmatpush1.bf16.msra.mxu0 0
  %3096 = vmatprep.subr.bf16.mxu0 0
  %3097 = vmatpush1.bf16.msra.mxu0 0
  %3098 = vmatprep.subr.bf16.mxu0 0
  %3099 = vmatpush1.bf16.msra.mxu0 0
  %3100 = vmatprep.subr.bf16.mxu0 0
  %3101 = vmatpush1.bf16.msra.mxu0 0
  %3102 = vmatprep.subr.bf16.mxu0 0
  %3103 = vmatpush1.bf16.msra.mxu0 0
  %3104 = vmatprep.subr.bf16.mxu0 0
  %3105 = vmatpush1.bf16.msra.mxu0 0
  %3106 = vmatprep.subr.bf16.mxu0 0
  %3107 = vmatpush1.bf16.msra.mxu0 0
  %3108 = vmatprep.subr.bf16.mxu0 0
  %3109 = vmatpush1.bf16.msra.mxu0 0
  %3110 = vmatprep.subr.bf16.mxu0 0
  %3111 = vmatpush1.bf16.msra.mxu0 0
  %3112 = vmatprep.mubr.bf16.mxu0 0
  %3113 = vmatmul.mubr.bf16.gmra.mrb[0].mxu0 %v3072
  %v3114 = vpop.f32.mrb[0].mxu0
  %v3115 = vadd.f32 0.0, %v3114
  %v3116 = vpop.f32.mrb[0].mxu0
  %v3117 = vadd.f32 0.0, %v3116
  %v3118 = vpop.f32.mrb[0].mxu0
  %v3119 = vpop.f32.mrb[0].mxu0
  %3120 = vdwg.mxu0
  %v3121 = vadd.f32 %v3062, %v3115
  %v3122 = vadd.f32 %v3063, %v3117
  %s3123 = scalar_lea.vmem %s7, 28
  %v3124 = vld [vmem:[%s3123] sm:$0xf]
  %3125 = vrot.lane.b32.xlu0 %v2712, 107
  %v3126 = vpop.permute.xlu0 %3125
  %3127 = vrot.lane.b32.xlu0 %v2713, 107
  %v3128 = vpop.permute.xlu0 %3127
  %vm3129 = vcmask 875520
  %v3130 = vsel %vm3129, %v3126, %v3128
  %v3132 = vsel %vm1617, %v3124, 0
  %v3135 = vsel %vm2727, %v3130, 0
  %v3138 = vsel %vm2727, %v3128, 0
  %3140 = vmatprep.subr.bf16.mxu0 %v3138
  %3141 = vmatpush1.bf16.msra.mxu0 %v3135
  %3142 = vmatprep.subr.bf16.mxu0 0
  %3143 = vmatpush1.bf16.msra.mxu0 0
  %3144 = vmatprep.subr.bf16.mxu0 0
  %3145 = vmatpush1.bf16.msra.mxu0 0
  %3146 = vmatprep.subr.bf16.mxu0 0
  %3147 = vmatpush1.bf16.msra.mxu0 0
  %3148 = vmatprep.subr.bf16.mxu0 0
  %3149 = vmatpush1.bf16.msra.mxu0 0
  %3150 = vmatprep.subr.bf16.mxu0 0
  %3151 = vmatpush1.bf16.msra.mxu0 0
  %3152 = vmatprep.subr.bf16.mxu0 0
  %3153 = vmatpush1.bf16.msra.mxu0 0
  %3154 = vmatprep.subr.bf16.mxu0 0
  %3155 = vmatpush1.bf16.msra.mxu0 0
  %3156 = vmatprep.subr.bf16.mxu0 0
  %3157 = vmatpush1.bf16.msra.mxu0 0
  %3158 = vmatprep.subr.bf16.mxu0 0
  %3159 = vmatpush1.bf16.msra.mxu0 0
  %3160 = vmatprep.subr.bf16.mxu0 0
  %3161 = vmatpush1.bf16.msra.mxu0 0
  %3162 = vmatprep.subr.bf16.mxu0 0
  %3163 = vmatpush1.bf16.msra.mxu0 0
  %3164 = vmatprep.subr.bf16.mxu0 0
  %3165 = vmatpush1.bf16.msra.mxu0 0
  %3166 = vmatprep.subr.bf16.mxu0 0
  %3167 = vmatpush1.bf16.msra.mxu0 0
  %3168 = vmatprep.subr.bf16.mxu0 0
  %3169 = vmatpush1.bf16.msra.mxu0 0
  %3170 = vmatprep.subr.bf16.mxu0 0
  %3171 = vmatpush1.bf16.msra.mxu0 0
  %3172 = vmatprep.mubr.bf16.mxu0 0
  %3173 = vmatmul.mubr.bf16.gmra.mrb[0].mxu0 %v3132
  %v3174 = vpop.f32.mrb[0].mxu0
  %v3175 = vadd.f32 0.0, %v3174
  %v3176 = vpop.f32.mrb[0].mxu0
  %v3177 = vadd.f32 0.0, %v3176
  %v3178 = vpop.f32.mrb[0].mxu0
  %v3179 = vpop.f32.mrb[0].mxu0
  %3180 = vdwg.mxu0
  %v3181 = vadd.f32 %v3121, %v3175
  %v3182 = vadd.f32 %v3122, %v3177
  %s3183 = scalar_lea.vmem %s7, 32
  %v3184 = vld [vmem:[%s3183] sm:$0xf]
  %3185 = vrot.lane.b32.xlu0 %v2712, 106
  %v3186 = vpop.permute.xlu0 %3185
  %3187 = vrot.lane.b32.xlu0 %v2713, 106
  %v3188 = vpop.permute.xlu0 %3187
  %vm3189 = vcmask 867328
  %v3190 = vsel %vm3189, %v3186, %v3188
  %v3192 = vsel %vm1617, %v3184, 0
  %v3195 = vsel %vm2727, %v3190, 0
  %v3198 = vsel %vm2727, %v3188, 0
  %3200 = vmatprep.subr.bf16.mxu0 %v3198
  %3201 = vmatpush1.bf16.msra.mxu0 %v3195
  %3202 = vmatprep.subr.bf16.mxu0 0
  %3203 = vmatpush1.bf16.msra.mxu0 0
  %3204 = vmatprep.subr.bf16.mxu0 0
  %3205 = vmatpush1.bf16.msra.mxu0 0
  %3206 = vmatprep.subr.bf16.mxu0 0
  %3207 = vmatpush1.bf16.msra.mxu0 0
  %3208 = vmatprep.subr.bf16.mxu0 0
  %3209 = vmatpush1.bf16.msra.mxu0 0
  %3210 = vmatprep.subr.bf16.mxu0 0
  %3211 = vmatpush1.bf16.msra.mxu0 0
  %3212 = vmatprep.subr.bf16.mxu0 0
  %3213 = vmatpush1.bf16.msra.mxu0 0
  %3214 = vmatprep.subr.bf16.mxu0 0
  %3215 = vmatpush1.bf16.msra.mxu0 0
  %3216 = vmatprep.subr.bf16.mxu0 0
  %3217 = vmatpush1.bf16.msra.mxu0 0
  %3218 = vmatprep.subr.bf16.mxu0 0
  %3219 = vmatpush1.bf16.msra.mxu0 0
  %3220 = vmatprep.subr.bf16.mxu0 0
  %3221 = vmatpush1.bf16.msra.mxu0 0
  %3222 = vmatprep.subr.bf16.mxu0 0
  %3223 = vmatpush1.bf16.msra.mxu0 0
  %3224 = vmatprep.subr.bf16.mxu0 0
  %3225 = vmatpush1.bf16.msra.mxu0 0
  %3226 = vmatprep.subr.bf16.mxu0 0
  %3227 = vmatpush1.bf16.msra.mxu0 0
  %3228 = vmatprep.subr.bf16.mxu0 0
  %3229 = vmatpush1.bf16.msra.mxu0 0
  %3230 = vmatprep.subr.bf16.mxu0 0
  %3231 = vmatpush1.bf16.msra.mxu0 0
  %3232 = vmatprep.mubr.bf16.mxu0 0
  %3233 = vmatmul.mubr.bf16.gmra.mrb[0].mxu0 %v3192
  %v3234 = vpop.f32.mrb[0].mxu0
  %v3235 = vadd.f32 0.0, %v3234
  %v3236 = vpop.f32.mrb[0].mxu0
  %v3237 = vadd.f32 0.0, %v3236
  %v3238 = vpop.f32.mrb[0].mxu0
  %v3239 = vpop.f32.mrb[0].mxu0
  %3240 = vdwg.mxu0
  %v3241 = vadd.f32 %v3181, %v3235
  %v3242 = vadd.f32 %v3182, %v3237
  %v3243 = vld [vmem:[%s10] sm:$0x3]
  %v3245 = vlaneseq
  %v3246 = vshrl.u32 %v3245, 7
  %v3247 = vsub.s32 0, %v3246
  %v3248 = vrot.slane %v3243, %v3247
  %v3249 = vlaneseq
  %v3250 = vshrl.u32 %v3249, 7
  %v3251 = vsub.s32 1, %v3250
  %v3252 = vrot.slane %v3243, %v3251
  %v3255 = vmul.f32 %v3241, %v3248
  %v3256 = vmul.f32 %v3242, %v3252
  %vm3257 = vcmask 588800
  %v3258 = vsel %vm3257, %v3256, 0.0
  %v3259 = vadd.f32 %v3255, %v3258
  %3260 = vadd.xlane.f32.xlu0 %v3259
  %v3261 = vpop.xlane.xlu0 %3260
  %v3262 = vmul.f32 %v3261, 0.0078125
  %v3263 = vsub.f32 %v3241, %v3262
  %v3264 = vsub.f32 %v3242, %v3262
  %v3265 = vmul.f32 %v3263, %v3248
  %v3266 = vmul.f32 %v3264, %v3252
  %v3267 = vmul.f32 %v3265, %v3265
  %v3268 = vmul.f32 %v3266, %v3266
  %v3269 = vsel %vm3257, %v3268, 0.0
  %v3270 = vadd.f32 %v3267, %v3269
  %3271 = vadd.xlane.f32.xlu0 %v3270
  %v3272 = vpop.xlane.xlu0 %3271
  %v3273 = vmul.f32 %v3272, 0.0078125
  %v3274 = vld [vmem:[%s8] sm:$0xff]
  %v3275 = vadd.f32 %v3273, 1e-05
  %v3276 = vrsqrt.pop %v3275
  %v3277 = vmul.f32 %v3274, %v3276
  %v3278 = vld [vmem:[%s9] sm:$0xff]
  %v3279 = vmul.f32 %v3262, %v3277
  %v3280 = vsub.f32 %v3278, %v3279
  %3282 = vset.pattern.permute.xlu0 0
  %3283 = vperm.xlu0 %3282, %v3277
  %v3284 = vpop.permute.xlu0 %3283
  %v3286 = vmul.f32 %v3241, %v3284
  %v3287 = vmul.f32 %v3242, %v3284
  %3289 = vset.pattern.permute.xlu0 0
  %3290 = vperm.xlu0 %3289, %v3280
  %v3291 = vpop.permute.xlu0 %3290
  %v3293 = vadd.f32 %v3286, %v3291
  %v3294 = vadd.f32 %v3287, %v3291
  %v3295 = vmax.f32 %v3293, 0.0
  %v3296 = vmax.f32 %v3294, 0.0
  %3299 = vrot.lane.b32.xlu0 %v3295, 127
  %v3300 = vpop.permute.xlu0 %3299
  %3301 = vrot.lane.b32.xlu0 %v3296, 127
  %v3302 = vpop.permute.xlu0 %3301
  %v3303 = vsel %vm1703, %v3300, %v3302
  %v3306 = vmax.f32 %v3295, %v3303
  %v3307 = vmax.f32 %v3296, %v3302
  %3310 = vrot.lane.b32.xlu0 %v3306, 118
  %v3311 = vpop.permute.xlu0 %3310
  %3312 = vrot.lane.b32.xlu0 %v3307, 118
  %v3313 = vpop.permute.xlu0 %3312
  %vm3314 = vcmask 965632
  %v3315 = vsel %vm3314, %v3311, %v3313
  %v3318 = vmax.f32 %v3306, %v3315
  %v3319 = vmax.f32 %v3307, %v3313
  %v3320 = vld [vmem:[%s11] sm:$0x1]
  %v3321 = vlaneseq
  %v3322 = vshrl.u32 %v3321, 7
  %v3323 = vsub.s32 0, %v3322
  %v3324 = vrot.slane %v3320, %v3323
  %vm3325 = vcmp.eq.s32.totalorder %v1756, %v3324
  %vm3326 = vcmp.eq.s32.totalorder %v1757, %v3324
  %vm3327 = vcmp.eq.s32.totalorder %v1758, %v3324
  %vm3328 = vcmp.eq.s32.totalorder %v1759, %v3324
  %vm3329 = vcmp.eq.s32.totalorder %v1760, %v3324
  %vm3330 = vcmp.eq.s32.totalorder %v1761, %v3324
  %vm3331 = vcmp.eq.s32.totalorder %v1762, %v3324
  %vm3332 = vcmp.eq.s32.totalorder %v1763, %v3324
  %vm3333 = vcmp.eq.s32.totalorder %v1764, %v3324
  %vm3334 = vcmp.eq.s32.totalorder %v1765, %v3324
  %vm3335 = vcmp.eq.s32.totalorder %v1766, %v3324
  %vm3336 = vcmp.eq.s32.totalorder %v1767, %v3324
  %vm3337 = vcmp.eq.s32.totalorder %v1768, %v3324
  %vm3338 = vcmp.eq.s32.totalorder %v1769, %v3324
  %vm3339 = vcmp.eq.s32.totalorder %v1770, %v3324
  %vm3340 = vcmp.eq.s32.totalorder %v1771, %v3324
  %vm3341 = vcmp.eq.s32.totalorder %v1772, %v3324
  %vm3342 = vcmp.eq.s32.totalorder %v1773, %v3324
  %vm3343 = vcmp.eq.s32.totalorder %v1774, %v3324
  %vm3344 = vcmp.eq.s32.totalorder %v1775, %v3324
  %vm3345 = vcmp.eq.s32.totalorder %v1776, %v3324
  %vm3346 = vcmp.eq.s32.totalorder %v1777, %v3324
  %vm3347 = vcmp.eq.s32.totalorder %v1778, %v3324
  %vm3348 = vcmp.eq.s32.totalorder %v1779, %v3324
  %v3349 = vsel %vm3325, 1, 0
  %v3350 = vsel %vm3326, 1, 0
  %v3351 = vsel %vm3327, 1, 0
  %v3352 = vsel %vm3328, 1, 0
  %v3353 = vsel %vm3329, 1, 0
  %v3354 = vsel %vm3330, 1, 0
  %v3355 = vsel %vm3331, 1, 0
  %v3356 = vsel %vm3332, 1, 0
  %v3357 = vsel %vm3333, 1, 0
  %v3358 = vsel %vm3334, 1, 0
  %v3359 = vsel %vm3335, 1, 0
  %v3360 = vsel %vm3336, 1, 0
  %v3361 = vsel %vm3337, 1, 0
  %v3362 = vsel %vm3338, 1, 0
  %v3363 = vsel %vm3339, 1, 0
  %v3364 = vsel %vm3340, 1, 0
  %v3365 = vsel %vm3341, 1, 0
  %v3366 = vsel %vm3342, 1, 0
  %v3367 = vsel %vm3343, 1, 0
  %v3368 = vsel %vm3344, 1, 0
  %v3369 = vsel %vm3345, 1, 0
  %v3370 = vsel %vm3346, 1, 0
  %v3371 = vsel %vm3347, 1, 0
  %v3372 = vsel %vm3348, 1, 0
  %v3373 = vcvt.s32.f32 %v3349
  %v3374 = vcvt.s32.f32 %v3350
  %v3375 = vcvt.s32.f32 %v3351
  %v3376 = vcvt.s32.f32 %v3352
  %v3377 = vcvt.s32.f32 %v3353
  %v3378 = vcvt.s32.f32 %v3354
  %v3379 = vcvt.s32.f32 %v3355
  %v3380 = vcvt.s32.f32 %v3356
  %v3381 = vcvt.s32.f32 %v3357
  %v3382 = vcvt.s32.f32 %v3358
  %v3383 = vcvt.s32.f32 %v3359
  %v3384 = vcvt.s32.f32 %v3360
  %v3385 = vcvt.s32.f32 %v3361
  %v3386 = vcvt.s32.f32 %v3362
  %v3387 = vcvt.s32.f32 %v3363
  %v3388 = vcvt.s32.f32 %v3364
  %v3389 = vcvt.s32.f32 %v3365
  %v3390 = vcvt.s32.f32 %v3366
  %v3391 = vcvt.s32.f32 %v3367
  %v3392 = vcvt.s32.f32 %v3368
  %v3393 = vcvt.s32.f32 %v3369
  %v3394 = vcvt.s32.f32 %v3370
  %v3395 = vcvt.s32.f32 %v3371
  %v3396 = vcvt.s32.f32 %v3372
  %v3397 = vld [vmem:[%s12] sm:$0x1]
  %v3399 = vlaneseq
  %v3400 = vshrl.u32 %v3399, 7
  %v3401 = vsub.s32 0, %v3400
  %v3402 = vrot.slane %v3397, %v3401
  %v3404 = vmul.f32 %v3373, %v3402
  %v3405 = vmul.f32 %v3374, %v3402
  %v3406 = vmul.f32 %v3375, %v3402
  %v3407 = vmul.f32 %v3376, %v3402
  %v3408 = vmul.f32 %v3377, %v3402
  %v3409 = vmul.f32 %v3378, %v3402
  %v3410 = vmul.f32 %v3379, %v3402
  %v3411 = vmul.f32 %v3380, %v3402
  %v3412 = vmul.f32 %v3381, %v3402
  %v3413 = vmul.f32 %v3382, %v3402
  %v3414 = vmul.f32 %v3383, %v3402
  %v3415 = vmul.f32 %v3384, %v3402
  %v3416 = vmul.f32 %v3385, %v3402
  %v3417 = vmul.f32 %v3386, %v3402
  %v3418 = vmul.f32 %v3387, %v3402
  %v3419 = vmul.f32 %v3388, %v3402
  %v3420 = vmul.f32 %v3389, %v3402
  %v3421 = vmul.f32 %v3390, %v3402
  %v3422 = vmul.f32 %v3391, %v3402
  %v3423 = vmul.f32 %v3392, %v3402
  %v3424 = vmul.f32 %v3393, %v3402
  %v3425 = vmul.f32 %v3394, %v3402
  %v3426 = vmul.f32 %v3395, %v3402
  %v3427 = vmul.f32 %v3396, %v3402
  %vm3428 = vcmask 498688
  %v3430 = vsel %vm3428, %v3319, 0
  %v3433 = vsel %vm2492, %v3427, 0
  %3435 = vmatprep.subr.mxu0 0.0
  %3436 = vmatpush1.msra.mxu0 %v3404
  %3437 = vmatprep.subr.mxu0 0.0
  %3438 = vmatpush1.msra.mxu0 %v3405
  %3439 = vmatprep.subr.mxu0 0.0
  %3440 = vmatpush1.msra.mxu0 %v3406
  %3441 = vmatprep.subr.mxu0 0.0
  %3442 = vmatpush1.msra.mxu0 %v3407
  %3443 = vmatprep.subr.mxu0 0.0
  %3444 = vmatpush1.msra.mxu0 %v3408
  %3445 = vmatprep.subr.mxu0 0.0
  %3446 = vmatpush1.msra.mxu0 %v3409
  %3447 = vmatprep.subr.mxu0 0.0
  %3448 = vmatpush1.msra.mxu0 %v3410
  %3449 = vmatprep.subr.mxu0 0.0
  %3450 = vmatpush1.msra.mxu0 %v3411
  %3451 = vmatprep.subr.mxu0 0.0
  %3452 = vmatpush1.msra.mxu0 %v3412
  %3453 = vmatprep.subr.mxu0 0.0
  %3454 = vmatpush1.msra.mxu0 %v3413
  %3455 = vmatprep.subr.mxu0 0.0
  %3456 = vmatpush1.msra.mxu0 %v3414
  %3457 = vmatprep.subr.mxu0 0.0
  %3458 = vmatpush1.msra.mxu0 %v3415
  %3459 = vmatprep.subr.mxu0 0.0
  %3460 = vmatpush1.msra.mxu0 %v3416
  %3461 = vmatprep.subr.mxu0 0.0
  %3462 = vmatpush1.msra.mxu0 %v3417
  %3463 = vmatprep.subr.mxu0 0.0
  %3464 = vmatpush1.msra.mxu0 %v3418
  %3465 = vmatprep.subr.mxu0 0.0
  %3466 = vmatpush1.msra.mxu0 %v3419
  %3467 = vmatprep.subr.mxu0 0.0
  %3468 = vmatpush1.msra.mxu0 %v3420
  %3469 = vmatprep.subr.mxu0 0.0
  %3470 = vmatpush1.msra.mxu0 %v3421
  %3471 = vmatprep.subr.mxu0 0.0
  %3472 = vmatpush1.msra.mxu0 %v3422
  %3473 = vmatprep.subr.mxu0 0.0
  %3474 = vmatpush1.msra.mxu0 %v3423
  %3475 = vmatprep.subr.mxu0 0.0
  %3476 = vmatpush1.msra.mxu0 %v3424
  %3477 = vmatprep.subr.mxu0 0.0
  %3478 = vmatpush1.msra.mxu0 %v3425
  %3479 = vmatprep.subr.mxu0 0.0
  %3480 = vmatpush1.msra.mxu0 %v3426
  %3481 = vmatprep.subr.mxu0 0.0
  %3482 = vmatpush1.msra.mxu0 %v3433
  %3483 = vmatprep.subr.mxu0 0.0
  %3484 = vmatpush1.msra.mxu0 0.0
  %3485 = vmatprep.subr.mxu0 0.0
  %3486 = vmatpush1.msra.mxu0 0.0
  %3487 = vmatprep.subr.mxu0 0.0
  %3488 = vmatpush1.msra.mxu0 0.0
  %3489 = vmatprep.subr.mxu0 0.0
  %3490 = vmatpush1.msra.mxu0 0.0
  %3491 = vmatprep.subr.mxu0 0.0
  %3492 = vmatpush1.msra.mxu0 0.0
  %3493 = vmatprep.subr.mxu0 0.0
  %3494 = vmatpush1.msra.mxu0 0.0
  %3495 = vmatprep.subr.mxu0 0.0
  %3496 = vmatpush1.msra.mxu0 0.0
  %3497 = vmatprep.subr.mxu0 0.0
  %3498 = vmatpush1.msra.mxu0 0.0
  %3499 = vmatprep.mubr.f32.mxu0 %v3430
  %3500 = vmatmul.mubr.f32.gmra.mrb[0].mxu0 %v3318
  %v3501 = vpop.f32.mrb[0].mxu0
  %v3502 = vadd.f32 0.0, %v3501
  %v3503 = vpop.f32.mrb[0].mxu0
  %3504 = vdwg.mxu0
  %vm3505 = vcmask 261120
  %3506 = vst.msk [vmem:[%s13] sm:$0xff] %vm3505, %v3502
  // Predicated region
  $region54: #{conv_block_forward.1} parent=0 // pred_check
    _
  $region55: #{conv_block_forward.1} parent=0 // pred_check_branch
    %3508 = sbr.rel (0) target = $region57
  $region56: #{conv_block_forward.1} parent=0 // pred_region
    _
  $region57: #{conv_block_forward.1} parent=0 // pred_fallthru
    _
  // Predicated region
  $region58: #{conv_block_forward.1} parent=0 // pred_check
    _
  $region59: #{conv_block_forward.1} parent=0 // pred_check_branch
    %3510 = sbr.rel (0) target = $region61
  $region60: #{conv_block_forward.1} parent=0 // pred_region
    _
  $region61: #{conv_block_forward.1} parent=0 // pred_fallthru
    _

</llo_original>
